<compile_context>
chip_gen: v6e
topology: v6e:2x2x1
jax: 0.10.0
libtpu: 0.0.40
codegen_flags: <defaults>
</compile_context>

<pallas_src>
import jax
import jax.numpy as jnp
from jax.experimental import pallas as pl
from jax.experimental.pallas import tpu as pltpu


def make_decoder_block_kernel(Bt, L, Le, D, NH, H):
    DH = D // NH
    bf16 = jnp.bfloat16
    f32 = jnp.float32

    def kernel(x_ref, enc_ref, tbias_ref,
               s_qkv_w_ref, s_qkv_b_ref, s_wo_ref, s_bo_ref,
               c_q_w_ref, c_q_b_ref, c_kv_w_ref, c_kv_b_ref, c_wo_ref, c_bo_ref,
               lng_ref, lnb_ref,
               w1_ref, b1_ref, w2_ref, b2_ref,
               out_ref,
               ctx_scr):
        # Residual stream kept flat (Bt*L, D): big M for every matmul.
        x_bf = x_ref[...].reshape(Bt * L, D)            # bf16 (streamed in bf16)
        x = x_bf.astype(f32)                            # f32 residual stream
        enc_bf = enc_ref[...].reshape(Bt * Le, D)       # bf16
        # Hoist the additive-mask broadcast out of the per-head loop.
        tbias = jnp.broadcast_to(tbias_ref[...], (Bt, L, L))

        def layer_norm(v, g, b):
            mu = jnp.mean(v, axis=-1, keepdims=True)
            d = v - mu
            var = jnp.mean(d * d, axis=-1, keepdims=True)
            return d * jax.lax.rsqrt(var + 1e-5) * g + b

        def attention(q_mat, kv_mat, Lq, Lk, wo_ref, bo_row, bias):
            # q_mat: (Bt*Lq, D) bf16 (1/sqrt(DH) already folded into Wq/bq).
            # kv_mat: (Bt*Lk, 2D) bf16 laid out [K | V].
            # Per-head scores/softmax/context; each head's context is written to
            # the (Bt*Lq, D) f32 VMEM scratch at lane offset h*DH so the output
            # projection is a single full-depth (K=D) matmul against W_o.
            for h in range(NH):
                qh = q_mat[:, h * DH:(h + 1) * DH].reshape(Bt, Lq, DH)
                kh = kv_mat[:, h * DH:(h + 1) * DH].reshape(Bt, Lk, DH)
                vh = kv_mat[:, D + h * DH:D + (h + 1) * DH].reshape(Bt, Lk, DH)
                s = jnp.einsum("bqd,bkd->bqk", qh, kh,
                               preferred_element_type=f32)
                if bias is not None:
                    s = s + bias            # single add, broadcast hoisted above
                m = jnp.max(s, axis=-1, keepdims=True)
                e = jnp.exp(s - m)
                p = e * pl.reciprocal(jnp.sum(e, axis=-1, keepdims=True),
                                      approx=True)
                ctx = jnp.einsum("bqk,bkd->bqd", p.astype(bf16), vh,
                                 preferred_element_type=f32)
                ctx_scr[:, h * DH:(h + 1) * DH] = ctx.reshape(Bt * Lq, DH)
            return (jnp.dot(ctx_scr[...].astype(bf16), wo_ref[...],
                            preferred_element_type=f32) + bo_row)

        # --- masked self-attention: one fused (Bt*L, D) x (D, 3D) projection ---
        qkv = (jnp.dot(x_bf, s_qkv_w_ref[...], preferred_element_type=f32)
               + s_qkv_b_ref[0]).astype(bf16)            # single f32->bf16 cast
        sa = attention(qkv[:, :D], qkv[:, D:], L, L, s_wo_ref, s_bo_ref[0], tbias)
        x1 = layer_norm(x + sa, lng_ref[0], lnb_ref[0])

        # --- cross-attention (encoder_mask=None in the reference call) ---
        # TODO(synk): plumb an encoder padding-mask bias if one is ever supplied,
        # and chunk K/V over Le (flash-style) for long encoder contexts on v7x.
        x1_bf = x1.astype(bf16)
        q_c = (jnp.dot(x1_bf, c_q_w_ref[...], preferred_element_type=f32)
               + c_q_b_ref[0]).astype(bf16)
        kv_c = (jnp.dot(enc_bf, c_kv_w_ref[...], preferred_element_type=f32)
                + c_kv_b_ref[0]).astype(bf16)
        ca = attention(q_c, kv_c, L, Le, c_wo_ref, c_bo_ref[0], None)
        x2 = layer_norm(x1 + ca, lng_ref[1], lnb_ref[1])

        # --- FFN (Linear -> ReLU -> Linear) + residual + norm_3 ---
        # TODO(synk): tile the FFN over H (extra "arbitrary" grid axis) once
        # D*H bf16 exceeds ~16 MiB so the weights still fit v7x's 64 MiB VMEM.
        hdn = jnp.maximum(
            jnp.dot(x2.astype(bf16), w1_ref[...], preferred_element_type=f32)
            + b1_ref[0], 0.0)
        ffn = (jnp.dot(hdn.astype(bf16), w2_ref[...], preferred_element_type=f32)
               + b2_ref[0])
        x3 = layer_norm(x2 + ffn, lng_ref[2], lnb_ref[2])

        # At production D (>=128) this store is lane-dense.
        # TODO(synk): for tiny D (<128) emit a (Bt, L*D) lane-dense output slab.
        out_ref[...] = x3.reshape(Bt, L, D)

    return kernel


def decoder_block_pallas(x_emb, enc_out, mask_bias, params):
    B, L, D = x_emb.shape
    _, Le, _ = enc_out.shape
    NH = int(params["num_heads"])
    assert D % NH == 0, "embed_dim must be divisible by num_heads"
    DH = D // NH
    H = params["ffn_w1"].shape[1]
    bf16 = jnp.bfloat16
    f32 = jnp.float32

    def prep_attn(w4, b4):
        # w4: (4, D, D) = [Wq, Wk, Wv, Wo] stored (in, out); b4: (4, D).
        scale = 1.0 / float(DH) ** 0.5
        wq = (w4[0] * scale).astype(bf16)                     # fold 1/sqrt(DH) into Wq
        bq = (b4[0] * scale).astype(f32)[None, :]
        wkv = jnp.concatenate([w4[1], w4[2]], axis=1).astype(bf16)   # (D, 2D) = [K|V]
        bkv = jnp.concatenate([b4[1], b4[2]]).astype(f32)[None, :]   # (1, 2D)
        wo = w4[3].astype(bf16)
        bo = b4[3].astype(f32)[None, :]
        return wq, bq, wkv, bkv, wo, bo

    s_wq, s_bq, s_wkv, s_bkv, s_wo, s_bo = prep_attn(params["self_w"], params["self_b"])
    c_wq, c_bq, c_wkv, c_bkv, c_wo, c_bo = prep_attn(params["cross_w"], params["cross_b"])

    # Self-attention Q/K/V fused into one (D, 3D) projection laid out [Q | K | V].
    s_qkv_w = jnp.concatenate([s_wq, s_wkv], axis=1)          # (D, 3D) bf16
    s_qkv_b = jnp.concatenate([s_bq, s_bkv], axis=1)          # (1, 3D) f32

    # Fuse batch rows per grid step (target ~256 MXU rows), but keep >= 2
    # "parallel" grid steps when B allows so both v7x TensorCores stay busy.
    ROWS_TARGET = 256
    Bt = max(1, min(B, ROWS_TARGET // max(L, 1)))
    if B >= 2:
        Bt = max(1, min(Bt, B // 2))
    while B % Bt:
        Bt -= 1   # TODO(synk): pad B instead, so awkward batch sizes don't fall to Bt=1
    grid = (B // Bt,)

    kernel = make_decoder_block_kernel(Bt, L, Le, D, NH, H)

    operands = (
        x_emb.astype(bf16), enc_out.astype(bf16), mask_bias,
        s_qkv_w, s_qkv_b, s_wo, s_bo,
        c_wq, c_bq, c_wkv, c_bkv, c_wo, c_bo,
        params["ln_g"], params["ln_b"],
        params["ffn_w1"].astype(bf16), params["ffn_b1"],
        params["ffn_w2"].astype(bf16), params["ffn_b2"],
    )

    def build_in_specs(weight_kwargs):
        def wspec(shape):
            n = len(shape)
            return pl.BlockSpec(shape, lambda b: (0,) * n, **weight_kwargs)
        return [
            pl.BlockSpec((Bt, L, D), lambda b: (b, 0, 0)),    # x (bf16, grid-varying)
            pl.BlockSpec((Bt, Le, D), lambda b: (b, 0, 0)),   # encoder output (bf16)
            wspec((L, L)),                                    # target mask bias
            wspec((D, 3 * D)), wspec((1, 3 * D)),             # self QKV (fused) W / b
            wspec((D, D)), wspec((1, D)),                     # self Wo / bo
            wspec((D, D)), wspec((1, D)),                     # cross Wq / bq
            wspec((D, 2 * D)), wspec((1, 2 * D)),             # cross [K|V] W / b
            wspec((D, D)), wspec((1, D)),                     # cross Wo / bo
            wspec((3, D)), wspec((3, D)),                     # LN gammas / betas
            wspec((D, H)), wspec((1, H)),                     # FFN W1 / b1
            wspec((H, D)), wspec((1, D)),                     # FFN W2 / b2
        ]

    def run(single_buffer_weights):
        # Grid-invariant weights: single-buffer them (their index maps are
        # constant), halving the resident weight footprint (key for v7x 64 MiB).
        weight_kwargs = ({"pipeline_mode": pl.Buffered(1)}
                         if single_buffer_weights else {})
        grid_spec = pltpu.PrefetchScalarGridSpec(
            num_scalar_prefetch=0,
            grid=grid,
            in_specs=build_in_specs(weight_kwargs),
            out_specs=pl.BlockSpec((Bt, L, D), lambda b: (b, 0, 0)),
            scratch_shapes=[pltpu.VMEM((Bt * L, D), jnp.float32)],  # per-head ctx slab
        )
        return pl.pallas_call(
            kernel,
            out_shape=jax.ShapeDtypeStruct((B, L, D), jnp.float32),
            grid_spec=grid_spec,
            compiler_params=pltpu.CompilerParams(
                dimension_semantics=("parallel",),
                vmem_limit_bytes=64 * 1024 * 1024),
        )(*operands)

    try:
        return run(True)
    except Exception:
        # Fallback: pl.Buffered(1) single-buffering unsupported -> default buffering.
        return run(False)


def decoder_forward(token_ids, encoder_output, target_mask, params):
    """Full Decoder.forward: embeddings (plain JAX glue) + Pallas decoder block."""
    B, L = token_ids.shape
    tok_emb = jnp.take(params["token_embedding"], token_ids, axis=0)      # (B, L, D)
    pos_emb = params["position_embedding"][:L]                            # (L, D)
    x = tok_emb + pos_emb[None, :, :]
    # dropout is identity at inference time
    if target_mask is None:
        mask_bias = jnp.zeros((L, L), jnp.float32)
    else:
        mask_bias = (target_mask.astype(jnp.float32) - 1.0) * 1e9  # 0 keep, -1e9 mask
    return decoder_block_pallas(x, encoder_output, mask_bias, params)


def init_params(key, vocab_size, max_len, D, NH, H):
    ks = jax.random.split(key, 12)
    scale = 0.05
    p = {
        "num_heads": NH,
        "token_embedding": scale * jax.random.normal(ks[0], (vocab_size, D), jnp.float32),
        "position_embedding": scale * jax.random.normal(ks[1], (max_len, D), jnp.float32),
        # self-attention: [Wq, Wk, Wv, Wo] stacked, stored (in, out)
        "self_w": scale * jax.random.normal(ks[2], (4, D, D), jnp.float32),
        "self_b": scale * jax.random.normal(ks[3], (4, D), jnp.float32),
        "cross_w": scale * jax.random.normal(ks[4], (4, D, D), jnp.float32),
        "cross_b": scale * jax.random.normal(ks[5], (4, D), jnp.float32),
        # LayerNorm (norm_1, norm_2, norm_3)
        "ln_g": jnp.ones((3, D), jnp.float32),
        "ln_b": jnp.zeros((3, D), jnp.float32),
        # FFN
        "ffn_w1": scale * jax.random.normal(ks[6], (D, H), jnp.float32),
        "ffn_b1": scale * jax.random.normal(ks[7], (1, H), jnp.float32),
        "ffn_w2": scale * jax.random.normal(ks[8], (H, D), jnp.float32),
        "ffn_b2": scale * jax.random.normal(ks[9], (1, D), jnp.float32),
    }
    return p


if __name__ == "__main__":
    # small shapes consistent with the module
    B, L, Le = 2, 8, 8
    vocab_size, max_len = 50, 16
    D, NH, H = 32, 4, 64

    key = jax.random.PRNGKey(0)
    k_param, k_tok, k_enc = jax.random.split(key, 3)

    params = init_params(k_param, vocab_size, max_len, D, NH, H)

    token_ids = jax.random.randint(k_tok, (B, L), 0, vocab_size, dtype=jnp.int32)
    encoder_output = 0.1 * jax.random.normal(k_enc, (B, Le, D), jnp.float32)
    # causal target mask: 1.0 = attend, 0.0 = masked (future positions)
    target_mask = jnp.tril(jnp.ones((L, L), jnp.float32))

    out = decoder_forward(token_ids, encoder_output, target_mask, params)
    out = jax.block_until_ready(out)

    assert out.shape == (B, L, D)
    assert bool(jnp.all(jnp.isfinite(out)))
    print("KERNEL_OK")
</pallas_src>

<mosaic_0001>
module attributes {stable_mosaic.version = 11 : i64} {
  func.func @kernel(%arg0: i32, %arg1: memref<1x8x32xbf16, #tpu.memory_space<vmem>>, %arg2: memref<1x8x32xbf16, #tpu.memory_space<vmem>>, %arg3: memref<8x8xf32, #tpu.memory_space<vmem>>, %arg4: memref<32x96xbf16, #tpu.memory_space<vmem>>, %arg5: memref<1x96xf32, #tpu.memory_space<vmem>>, %arg6: memref<32x32xbf16, #tpu.memory_space<vmem>>, %arg7: memref<1x32xf32, #tpu.memory_space<vmem>>, %arg8: memref<32x32xbf16, #tpu.memory_space<vmem>>, %arg9: memref<1x32xf32, #tpu.memory_space<vmem>>, %arg10: memref<32x64xbf16, #tpu.memory_space<vmem>>, %arg11: memref<1x64xf32, #tpu.memory_space<vmem>>, %arg12: memref<32x32xbf16, #tpu.memory_space<vmem>>, %arg13: memref<1x32xf32, #tpu.memory_space<vmem>>, %arg14: memref<3x32xf32, #tpu.memory_space<vmem>>, %arg15: memref<3x32xf32, #tpu.memory_space<vmem>>, %arg16: memref<32x64xbf16, #tpu.memory_space<vmem>>, %arg17: memref<1x64xf32, #tpu.memory_space<vmem>>, %arg18: memref<64x32xbf16, #tpu.memory_space<vmem>>, %arg19: memref<1x32xf32, #tpu.memory_space<vmem>>, %arg20: memref<1x8x32xf32, #tpu.memory_space<vmem>>, %arg21: memref<8x32xf32, #tpu.memory_space<vmem>>) attributes {dimension_semantics = [#tpu.dimension_semantics<parallel>], iteration_bounds = array<i64: 2>, scalar_prefetch = 0 : i64, scratch_operands = 1 : i64, tpu.core_type = #tpu.core_type<tc>, window_params = [{transform_indices = @transform_0, window_bounds = array<i64: 1, 8, 32>}, {transform_indices = @transform_1, window_bounds = array<i64: 1, 8, 32>}, {pipeline_mode = #tpu.pipeline_mode<synchronous>, transform_indices = @transform_2, window_bounds = array<i64: 8, 8>}, {pipeline_mode = #tpu.pipeline_mode<synchronous>, transform_indices = @transform_3, window_bounds = array<i64: 32, 96>}, {pipeline_mode = #tpu.pipeline_mode<synchronous>, transform_indices = @transform_4, window_bounds = array<i64: 1, 96>}, {pipeline_mode = #tpu.pipeline_mode<synchronous>, transform_indices = @transform_5, window_bounds = array<i64: 32, 32>}, {pipeline_mode = #tpu.pipeline_mode<synchronous>, transform_indices = @transform_6, window_bounds = array<i64: 1, 32>}, {pipeline_mode = #tpu.pipeline_mode<synchronous>, transform_indices = @transform_7, window_bounds = array<i64: 32, 32>}, {pipeline_mode = #tpu.pipeline_mode<synchronous>, transform_indices = @transform_8, window_bounds = array<i64: 1, 32>}, {pipeline_mode = #tpu.pipeline_mode<synchronous>, transform_indices = @transform_9, window_bounds = array<i64: 32, 64>}, {pipeline_mode = #tpu.pipeline_mode<synchronous>, transform_indices = @transform_10, window_bounds = array<i64: 1, 64>}, {pipeline_mode = #tpu.pipeline_mode<synchronous>, transform_indices = @transform_11, window_bounds = array<i64: 32, 32>}, {pipeline_mode = #tpu.pipeline_mode<synchronous>, transform_indices = @transform_12, window_bounds = array<i64: 1, 32>}, {pipeline_mode = #tpu.pipeline_mode<synchronous>, transform_indices = @transform_13, window_bounds = array<i64: 3, 32>}, {pipeline_mode = #tpu.pipeline_mode<synchronous>, transform_indices = @transform_14, window_bounds = array<i64: 3, 32>}, {pipeline_mode = #tpu.pipeline_mode<synchronous>, transform_indices = @transform_15, window_bounds = array<i64: 32, 64>}, {pipeline_mode = #tpu.pipeline_mode<synchronous>, transform_indices = @transform_16, window_bounds = array<i64: 1, 64>}, {pipeline_mode = #tpu.pipeline_mode<synchronous>, transform_indices = @transform_17, window_bounds = array<i64: 64, 32>}, {pipeline_mode = #tpu.pipeline_mode<synchronous>, transform_indices = @transform_18, window_bounds = array<i64: 1, 32>}, {transform_indices = @transform_19, window_bounds = array<i64: 1, 8, 32>}]} {
    %c0 = arith.constant 0 : index
    %c0_0 = arith.constant 0 : index
    %c0_1 = arith.constant 0 : index
    %0 = vector.load %arg1[%c0, %c0_0, %c0_1] : memref<1x8x32xbf16, #tpu.memory_space<vmem>>, vector<1x8x32xbf16>
    %1 = vector.shape_cast %0 : vector<1x8x32xbf16> to vector<8x32xbf16>
    %2 = arith.extf %1 : vector<8x32xbf16> to vector<8x32xf32>
    %c0_2 = arith.constant 0 : index
    %c0_3 = arith.constant 0 : index
    %c0_4 = arith.constant 0 : index
    %3 = vector.load %arg2[%c0_2, %c0_3, %c0_4] : memref<1x8x32xbf16, #tpu.memory_space<vmem>>, vector<1x8x32xbf16>
    %4 = vector.shape_cast %3 : vector<1x8x32xbf16> to vector<8x32xbf16>
    %c0_5 = arith.constant 0 : index
    %c0_6 = arith.constant 0 : index
    %5 = vector.load %arg3[%c0_5, %c0_6] : memref<8x8xf32, #tpu.memory_space<vmem>>, vector<8x8xf32>
    %6 = vector.shape_cast %5 : vector<8x8xf32> to vector<1x8x8xf32>
    %c0_7 = arith.constant 0 : index
    %c0_8 = arith.constant 0 : index
    %7 = vector.load %arg4[%c0_7, %c0_8] : memref<32x96xbf16, #tpu.memory_space<vmem>>, vector<32x96xbf16>
    %cst = arith.constant dense<0.000000e+00> : vector<8x96xf32>
    %8 = tpu.matmul %1, %7, %cst {dimension_numbers = #tpu.dot_dimension_numbers<[1], [0], [0], [1], [0, 0, 1, 1], [], []>} : vector<8x32xbf16>, vector<32x96xbf16>, vector<8x96xf32> -> vector<8x96xf32>
    %c0_9 = arith.constant 0 : index
    %c0_10 = arith.constant 0 : index
    %9 = vector.load %arg5[%c0_9, %c0_10] : memref<1x96xf32, #tpu.memory_space<vmem>>, vector<1x96xf32>
    %10 = vector.shape_cast %9 : vector<1x96xf32> to vector<96xf32>
    %11 = vector.shape_cast %10 : vector<96xf32> to vector<1x96xf32>
    %12 = vector.broadcast %11 : vector<1x96xf32> to vector<8x96xf32>
    %13 = arith.addf %8, %12 : vector<8x96xf32>
    %14 = arith.truncf %13 : vector<8x96xf32> to vector<8x96xbf16>
    %15 = vector.extract_strided_slice %14 {offsets = [0, 0], sizes = [8, 32], strides = [1, 1]} : vector<8x96xbf16> to vector<8x32xbf16>
    %16 = vector.extract_strided_slice %14 {offsets = [0, 32], sizes = [8, 64], strides = [1, 1]} : vector<8x96xbf16> to vector<8x64xbf16>
    %c0_11 = arith.constant 0 : index
    %c0_12 = arith.constant 0 : index
    %17 = vector.load %arg7[%c0_11, %c0_12] : memref<1x32xf32, #tpu.memory_space<vmem>>, vector<1x32xf32>
    %18 = vector.shape_cast %17 : vector<1x32xf32> to vector<32xf32>
    %19 = vector.extract_strided_slice %15 {offsets = [0, 0], sizes = [8, 8], strides = [1, 1]} : vector<8x32xbf16> to vector<8x8xbf16>
    %20 = vector.shape_cast %19 : vector<8x8xbf16> to vector<1x8x8xbf16>
    %21 = vector.extract_strided_slice %16 {offsets = [0, 0], sizes = [8, 8], strides = [1, 1]} : vector<8x64xbf16> to vector<8x8xbf16>
    %22 = vector.shape_cast %21 : vector<8x8xbf16> to vector<1x8x8xbf16>
    %23 = vector.extract_strided_slice %16 {offsets = [0, 32], sizes = [8, 8], strides = [1, 1]} : vector<8x64xbf16> to vector<8x8xbf16>
    %24 = vector.shape_cast %23 : vector<8x8xbf16> to vector<1x8x8xbf16>
    "tpu.trace_start"() <{level = 10 : i32, message = "bqd,bkd->bqk"}> : () -> ()
    %cst_13 = arith.constant dense<0.000000e+00> : vector<1x8x8xf32>
    %25 = tpu.matmul %20, %22, %cst_13 {dimension_numbers = #tpu.dot_dimension_numbers<[2], [2], [1], [1], [0, 0, 0, 1, 1, 1], [0], [0]>} : vector<1x8x8xbf16>, vector<1x8x8xbf16>, vector<1x8x8xf32> -> vector<1x8x8xf32>
    "tpu.trace_stop"() : () -> ()
    %26 = arith.addf %25, %6 : vector<1x8x8xf32>
    %cst_14 = arith.constant dense<0xFF800000> : vector<1x8xf32>
    %27 = vector.multi_reduction <maximumf>, %26, %cst_14 [2] : vector<1x8x8xf32> to vector<1x8xf32>
    %28 = vector.shape_cast %27 : vector<1x8xf32> to vector<1x8x1xf32>
    %29 = vector.broadcast %28 : vector<1x8x1xf32> to vector<1x8x8xf32>
    %30 = arith.subf %26, %29 : vector<1x8x8xf32>
    %31 = math.exp %30 : vector<1x8x8xf32>
    %cst_15 = arith.constant dense<0.000000e+00> : vector<1x8xf32>
    %32 = vector.multi_reduction <add>, %31, %cst_15 [2] : vector<1x8x8xf32> to vector<1x8xf32>
    %33 = vector.shape_cast %32 : vector<1x8xf32> to vector<1x8x1xf32>
    %34 = tpu.reciprocal %33 {approx = true} : vector<1x8x1xf32> -> vector<1x8x1xf32>
    %35 = vector.broadcast %34 : vector<1x8x1xf32> to vector<1x8x8xf32>
    %36 = arith.mulf %31, %35 : vector<1x8x8xf32>
    %37 = arith.truncf %36 : vector<1x8x8xf32> to vector<1x8x8xbf16>
    "tpu.trace_start"() <{level = 10 : i32, message = "bqk,bkd->bqd"}> : () -> ()
    %cst_16 = arith.constant dense<0.000000e+00> : vector<1x8x8xf32>
    %38 = tpu.matmul %37, %24, %cst_16 {dimension_numbers = #tpu.dot_dimension_numbers<[2], [1], [1], [2], [0, 0, 0, 1, 1, 2], [0], [0]>} : vector<1x8x8xbf16>, vector<1x8x8xbf16>, vector<1x8x8xf32> -> vector<1x8x8xf32>
    "tpu.trace_stop"() : () -> ()
    %39 = vector.shape_cast %38 : vector<1x8x8xf32> to vector<8x8xf32>
    %c0_17 = arith.constant 0 : index
    %c0_18 = arith.constant 0 : index
    %40 = vector.load %arg21[%c0_17, %c0_18] : memref<8x32xf32, #tpu.memory_space<vmem>>, vector<8x8xf32>
    tpu.vector_store %arg21[%c0_17, %c0_18], %39 {strides = array<i32>} : memref<8x32xf32, #tpu.memory_space<vmem>>, vector<8x8xf32>,
    %41 = vector.extract_strided_slice %15 {offsets = [0, 8], sizes = [8, 8], strides = [1, 1]} : vector<8x32xbf16> to vector<8x8xbf16>
    %42 = vector.shape_cast %41 : vector<8x8xbf16> to vector<1x8x8xbf16>
    %43 = vector.extract_strided_slice %16 {offsets = [0, 8], sizes = [8, 8], strides = [1, 1]} : vector<8x64xbf16> to vector<8x8xbf16>
    %44 = vector.shape_cast %43 : vector<8x8xbf16> to vector<1x8x8xbf16>
    %45 = vector.extract_strided_slice %16 {offsets = [0, 40], sizes = [8, 8], strides = [1, 1]} : vector<8x64xbf16> to vector<8x8xbf16>
    %46 = vector.shape_cast %45 : vector<8x8xbf16> to vector<1x8x8xbf16>
    "tpu.trace_start"() <{level = 10 : i32, message = "bqd,bkd->bqk"}> : () -> ()
    %cst_19 = arith.constant dense<0.000000e+00> : vector<1x8x8xf32>
    %47 = tpu.matmul %42, %44, %cst_19 {dimension_numbers = #tpu.dot_dimension_numbers<[2], [2], [1], [1], [0, 0, 0, 1, 1, 1], [0], [0]>} : vector<1x8x8xbf16>, vector<1x8x8xbf16>, vector<1x8x8xf32> -> vector<1x8x8xf32>
    "tpu.trace_stop"() : () -> ()
    %48 = arith.addf %47, %6 : vector<1x8x8xf32>
    %cst_20 = arith.constant dense<0xFF800000> : vector<1x8xf32>
    %49 = vector.multi_reduction <maximumf>, %48, %cst_20 [2] : vector<1x8x8xf32> to vector<1x8xf32>
    %50 = vector.shape_cast %49 : vector<1x8xf32> to vector<1x8x1xf32>
    %51 = vector.broadcast %50 : vector<1x8x1xf32> to vector<1x8x8xf32>
    %52 = arith.subf %48, %51 : vector<1x8x8xf32>
    %53 = math.exp %52 : vector<1x8x8xf32>
    %cst_21 = arith.constant dense<0.000000e+00> : vector<1x8xf32>
    %54 = vector.multi_reduction <add>, %53, %cst_21 [2] : vector<1x8x8xf32> to vector<1x8xf32>
    %55 = vector.shape_cast %54 : vector<1x8xf32> to vector<1x8x1xf32>
    %56 = tpu.reciprocal %55 {approx = true} : vector<1x8x1xf32> -> vector<1x8x1xf32>
    %57 = vector.broadcast %56 : vector<1x8x1xf32> to vector<1x8x8xf32>
    %58 = arith.mulf %53, %57 : vector<1x8x8xf32>
    %59 = arith.truncf %58 : vector<1x8x8xf32> to vector<1x8x8xbf16>
    "tpu.trace_start"() <{level = 10 : i32, message = "bqk,bkd->bqd"}> : () -> ()
    %cst_22 = arith.constant dense<0.000000e+00> : vector<1x8x8xf32>
    %60 = tpu.matmul %59, %46, %cst_22 {dimension_numbers = #tpu.dot_dimension_numbers<[2], [1], [1], [2], [0, 0, 0, 1, 1, 2], [0], [0]>} : vector<1x8x8xbf16>, vector<1x8x8xbf16>, vector<1x8x8xf32> -> vector<1x8x8xf32>
    "tpu.trace_stop"() : () -> ()
    %61 = vector.shape_cast %60 : vector<1x8x8xf32> to vector<8x8xf32>
    %c0_23 = arith.constant 0 : index
    %c8 = arith.constant 8 : index
    %62 = vector.load %arg21[%c0_23, %c8] : memref<8x32xf32, #tpu.memory_space<vmem>>, vector<8x8xf32>
    tpu.vector_store %arg21[%c0_23, %c8], %61 {strides = array<i32>} : memref<8x32xf32, #tpu.memory_space<vmem>>, vector<8x8xf32>,
    %63 = vector.extract_strided_slice %15 {offsets = [0, 16], sizes = [8, 8], strides = [1, 1]} : vector<8x32xbf16> to vector<8x8xbf16>
    %64 = vector.shape_cast %63 : vector<8x8xbf16> to vector<1x8x8xbf16>
    %65 = vector.extract_strided_slice %16 {offsets = [0, 16], sizes = [8, 8], strides = [1, 1]} : vector<8x64xbf16> to vector<8x8xbf16>
    %66 = vector.shape_cast %65 : vector<8x8xbf16> to vector<1x8x8xbf16>
    %67 = vector.extract_strided_slice %16 {offsets = [0, 48], sizes = [8, 8], strides = [1, 1]} : vector<8x64xbf16> to vector<8x8xbf16>
    %68 = vector.shape_cast %67 : vector<8x8xbf16> to vector<1x8x8xbf16>
    "tpu.trace_start"() <{level = 10 : i32, message = "bqd,bkd->bqk"}> : () -> ()
    %cst_24 = arith.constant dense<0.000000e+00> : vector<1x8x8xf32>
    %69 = tpu.matmul %64, %66, %cst_24 {dimension_numbers = #tpu.dot_dimension_numbers<[2], [2], [1], [1], [0, 0, 0, 1, 1, 1], [0], [0]>} : vector<1x8x8xbf16>, vector<1x8x8xbf16>, vector<1x8x8xf32> -> vector<1x8x8xf32>
    "tpu.trace_stop"() : () -> ()
    %70 = arith.addf %69, %6 : vector<1x8x8xf32>
    %cst_25 = arith.constant dense<0xFF800000> : vector<1x8xf32>
    %71 = vector.multi_reduction <maximumf>, %70, %cst_25 [2] : vector<1x8x8xf32> to vector<1x8xf32>
    %72 = vector.shape_cast %71 : vector<1x8xf32> to vector<1x8x1xf32>
    %73 = vector.broadcast %72 : vector<1x8x1xf32> to vector<1x8x8xf32>
    %74 = arith.subf %70, %73 : vector<1x8x8xf32>
    %75 = math.exp %74 : vector<1x8x8xf32>
    %cst_26 = arith.constant dense<0.000000e+00> : vector<1x8xf32>
    %76 = vector.multi_reduction <add>, %75, %cst_26 [2] : vector<1x8x8xf32> to vector<1x8xf32>
    %77 = vector.shape_cast %76 : vector<1x8xf32> to vector<1x8x1xf32>
    %78 = tpu.reciprocal %77 {approx = true} : vector<1x8x1xf32> -> vector<1x8x1xf32>
    %79 = vector.broadcast %78 : vector<1x8x1xf32> to vector<1x8x8xf32>
    %80 = arith.mulf %75, %79 : vector<1x8x8xf32>
    %81 = arith.truncf %80 : vector<1x8x8xf32> to vector<1x8x8xbf16>
    "tpu.trace_start"() <{level = 10 : i32, message = "bqk,bkd->bqd"}> : () -> ()
    %cst_27 = arith.constant dense<0.000000e+00> : vector<1x8x8xf32>
    %82 = tpu.matmul %81, %68, %cst_27 {dimension_numbers = #tpu.dot_dimension_numbers<[2], [1], [1], [2], [0, 0, 0, 1, 1, 2], [0], [0]>} : vector<1x8x8xbf16>, vector<1x8x8xbf16>, vector<1x8x8xf32> -> vector<1x8x8xf32>
    "tpu.trace_stop"() : () -> ()
    %83 = vector.shape_cast %82 : vector<1x8x8xf32> to vector<8x8xf32>
    %c0_28 = arith.constant 0 : index
    %c16 = arith.constant 16 : index
    %84 = vector.load %arg21[%c0_28, %c16] : memref<8x32xf32, #tpu.memory_space<vmem>>, vector<8x8xf32>
    tpu.vector_store %arg21[%c0_28, %c16], %83 {strides = array<i32>} : memref<8x32xf32, #tpu.memory_space<vmem>>, vector<8x8xf32>,
    %85 = vector.extract_strided_slice %15 {offsets = [0, 24], sizes = [8, 8], strides = [1, 1]} : vector<8x32xbf16> to vector<8x8xbf16>
    %86 = vector.shape_cast %85 : vector<8x8xbf16> to vector<1x8x8xbf16>
    %87 = vector.extract_strided_slice %16 {offsets = [0, 24], sizes = [8, 8], strides = [1, 1]} : vector<8x64xbf16> to vector<8x8xbf16>
    %88 = vector.shape_cast %87 : vector<8x8xbf16> to vector<1x8x8xbf16>
    %89 = vector.extract_strided_slice %16 {offsets = [0, 56], sizes = [8, 8], strides = [1, 1]} : vector<8x64xbf16> to vector<8x8xbf16>
    %90 = vector.shape_cast %89 : vector<8x8xbf16> to vector<1x8x8xbf16>
    "tpu.trace_start"() <{level = 10 : i32, message = "bqd,bkd->bqk"}> : () -> ()
    %cst_29 = arith.constant dense<0.000000e+00> : vector<1x8x8xf32>
    %91 = tpu.matmul %86, %88, %cst_29 {dimension_numbers = #tpu.dot_dimension_numbers<[2], [2], [1], [1], [0, 0, 0, 1, 1, 1], [0], [0]>} : vector<1x8x8xbf16>, vector<1x8x8xbf16>, vector<1x8x8xf32> -> vector<1x8x8xf32>
    "tpu.trace_stop"() : () -> ()
    %92 = arith.addf %91, %6 : vector<1x8x8xf32>
    %cst_30 = arith.constant dense<0xFF800000> : vector<1x8xf32>
    %93 = vector.multi_reduction <maximumf>, %92, %cst_30 [2] : vector<1x8x8xf32> to vector<1x8xf32>
    %94 = vector.shape_cast %93 : vector<1x8xf32> to vector<1x8x1xf32>
    %95 = vector.broadcast %94 : vector<1x8x1xf32> to vector<1x8x8xf32>
    %96 = arith.subf %92, %95 : vector<1x8x8xf32>
    %97 = math.exp %96 : vector<1x8x8xf32>
    %cst_31 = arith.constant dense<0.000000e+00> : vector<1x8xf32>
    %98 = vector.multi_reduction <add>, %97, %cst_31 [2] : vector<1x8x8xf32> to vector<1x8xf32>
    %99 = vector.shape_cast %98 : vector<1x8xf32> to vector<1x8x1xf32>
    %100 = tpu.reciprocal %99 {approx = true} : vector<1x8x1xf32> -> vector<1x8x1xf32>
    %101 = vector.broadcast %100 : vector<1x8x1xf32> to vector<1x8x8xf32>
    %102 = arith.mulf %97, %101 : vector<1x8x8xf32>
    %103 = arith.truncf %102 : vector<1x8x8xf32> to vector<1x8x8xbf16>
    "tpu.trace_start"() <{level = 10 : i32, message = "bqk,bkd->bqd"}> : () -> ()
    %cst_32 = arith.constant dense<0.000000e+00> : vector<1x8x8xf32>
    %104 = tpu.matmul %103, %90, %cst_32 {dimension_numbers = #tpu.dot_dimension_numbers<[2], [1], [1], [2], [0, 0, 0, 1, 1, 2], [0], [0]>} : vector<1x8x8xbf16>, vector<1x8x8xbf16>, vector<1x8x8xf32> -> vector<1x8x8xf32>
    "tpu.trace_stop"() : () -> ()
    %105 = vector.shape_cast %104 : vector<1x8x8xf32> to vector<8x8xf32>
    %c0_33 = arith.constant 0 : index
    %c24 = arith.constant 24 : index
    %106 = vector.load %arg21[%c0_33, %c24] : memref<8x32xf32, #tpu.memory_space<vmem>>, vector<8x8xf32>
    tpu.vector_store %arg21[%c0_33, %c24], %105 {strides = array<i32>} : memref<8x32xf32, #tpu.memory_space<vmem>>, vector<8x8xf32>,
    %c0_34 = arith.constant 0 : index
    %c0_35 = arith.constant 0 : index
    %107 = vector.load %arg21[%c0_34, %c0_35] : memref<8x32xf32, #tpu.memory_space<vmem>>, vector<8x32xf32>
    %108 = arith.truncf %107 : vector<8x32xf32> to vector<8x32xbf16>
    %c0_36 = arith.constant 0 : index
    %c0_37 = arith.constant 0 : index
    %109 = vector.load %arg6[%c0_36, %c0_37] : memref<32x32xbf16, #tpu.memory_space<vmem>>, vector<32x32xbf16>
    %cst_38 = arith.constant dense<0.000000e+00> : vector<8x32xf32>
    %110 = tpu.matmul %108, %109, %cst_38 {dimension_numbers = #tpu.dot_dimension_numbers<[1], [0], [0], [1], [0, 0, 1, 1], [], []>} : vector<8x32xbf16>, vector<32x32xbf16>, vector<8x32xf32> -> vector<8x32xf32>
    %111 = vector.shape_cast %18 : vector<32xf32> to vector<1x32xf32>
    %112 = vector.broadcast %111 : vector<1x32xf32> to vector<8x32xf32>
    %113 = arith.addf %110, %112 : vector<8x32xf32>
    %114 = arith.addf %2, %113 : vector<8x32xf32>
    %c0_39 = arith.constant 0 : index
    %c0_40 = arith.constant 0 : index
    %115 = vector.load %arg14[%c0_39, %c0_40] : memref<3x32xf32, #tpu.memory_space<vmem>>, vector<1x32xf32>
    %116 = vector.shape_cast %115 : vector<1x32xf32> to vector<32xf32>
    %c0_41 = arith.constant 0 : index
    %c0_42 = arith.constant 0 : index
    %117 = vector.load %arg15[%c0_41, %c0_42] : memref<3x32xf32, #tpu.memory_space<vmem>>, vector<1x32xf32>
    %118 = vector.shape_cast %117 : vector<1x32xf32> to vector<32xf32>
    %cst_43 = arith.constant dense<0.000000e+00> : vector<8xf32>
    %119 = vector.multi_reduction <add>, %114, %cst_43 [1] : vector<8x32xf32> to vector<8xf32>
    %120 = vector.shape_cast %119 : vector<8xf32> to vector<8x1xf32>
    %cst_44 = arith.constant 3.200000e+01 : f32
    %121 = vector.broadcast %cst_44 : f32 to vector<8x1xf32>
    %122 = arith.divf %120, %121 : vector<8x1xf32>
    %123 = vector.broadcast %122 : vector<8x1xf32> to vector<8x32xf32>
    %124 = arith.subf %114, %123 : vector<8x32xf32>
    %125 = arith.mulf %124, %124 : vector<8x32xf32>
    %cst_45 = arith.constant dense<0.000000e+00> : vector<8xf32>
    %126 = vector.multi_reduction <add>, %125, %cst_45 [1] : vector<8x32xf32> to vector<8xf32>
    %127 = vector.shape_cast %126 : vector<8xf32> to vector<8x1xf32>
    %cst_46 = arith.constant 3.200000e+01 : f32
    %128 = vector.broadcast %cst_46 : f32 to vector<8x1xf32>
    %129 = arith.divf %127, %128 : vector<8x1xf32>
    %cst_47 = arith.constant 9.99999974E-6 : f32
    %130 = vector.broadcast %cst_47 : f32 to vector<8x1xf32>
    %131 = arith.addf %129, %130 : vector<8x1xf32>
    %132 = math.rsqrt %131 : vector<8x1xf32>
    %133 = vector.broadcast %132 : vector<8x1xf32> to vector<8x32xf32>
    %134 = arith.mulf %124, %133 : vector<8x32xf32>
    %135 = vector.shape_cast %116 : vector<32xf32> to vector<1x32xf32>
    %136 = vector.broadcast %135 : vector<1x32xf32> to vector<8x32xf32>
    %137 = arith.mulf %134, %136 : vector<8x32xf32>
    %138 = vector.shape_cast %118 : vector<32xf32> to vector<1x32xf32>
    %139 = vector.broadcast %138 : vector<1x32xf32> to vector<8x32xf32>
    %140 = arith.addf %137, %139 : vector<8x32xf32>
    %141 = arith.truncf %140 : vector<8x32xf32> to vector<8x32xbf16>
    %c0_48 = arith.constant 0 : index
    %c0_49 = arith.constant 0 : index
    %142 = vector.load %arg8[%c0_48, %c0_49] : memref<32x32xbf16, #tpu.memory_space<vmem>>, vector<32x32xbf16>
    %cst_50 = arith.constant dense<0.000000e+00> : vector<8x32xf32>
    %143 = tpu.matmul %141, %142, %cst_50 {dimension_numbers = #tpu.dot_dimension_numbers<[1], [0], [0], [1], [0, 0, 1, 1], [], []>} : vector<8x32xbf16>, vector<32x32xbf16>, vector<8x32xf32> -> vector<8x32xf32>
    %c0_51 = arith.constant 0 : index
    %c0_52 = arith.constant 0 : index
    %144 = vector.load %arg9[%c0_51, %c0_52] : memref<1x32xf32, #tpu.memory_space<vmem>>, vector<1x32xf32>
    %145 = vector.shape_cast %144 : vector<1x32xf32> to vector<32xf32>
    %146 = vector.shape_cast %145 : vector<32xf32> to vector<1x32xf32>
    %147 = vector.broadcast %146 : vector<1x32xf32> to vector<8x32xf32>
    %148 = arith.addf %143, %147 : vector<8x32xf32>
    %149 = arith.truncf %148 : vector<8x32xf32> to vector<8x32xbf16>
    %c0_53 = arith.constant 0 : index
    %c0_54 = arith.constant 0 : index
    %150 = vector.load %arg10[%c0_53, %c0_54] : memref<32x64xbf16, #tpu.memory_space<vmem>>, vector<32x64xbf16>
    %cst_55 = arith.constant dense<0.000000e+00> : vector<8x64xf32>
    %151 = tpu.matmul %4, %150, %cst_55 {dimension_numbers = #tpu.dot_dimension_numbers<[1], [0], [0], [1], [0, 0, 1, 1], [], []>} : vector<8x32xbf16>, vector<32x64xbf16>, vector<8x64xf32> -> vector<8x64xf32>
    %c0_56 = arith.constant 0 : index
    %c0_57 = arith.constant 0 : index
    %152 = vector.load %arg11[%c0_56, %c0_57] : memref<1x64xf32, #tpu.memory_space<vmem>>, vector<1x64xf32>
    %153 = vector.shape_cast %152 : vector<1x64xf32> to vector<64xf32>
    %154 = vector.shape_cast %153 : vector<64xf32> to vector<1x64xf32>
    %155 = vector.broadcast %154 : vector<1x64xf32> to vector<8x64xf32>
    %156 = arith.addf %151, %155 : vector<8x64xf32>
    %157 = arith.truncf %156 : vector<8x64xf32> to vector<8x64xbf16>
    %c0_58 = arith.constant 0 : index
    %c0_59 = arith.constant 0 : index
    %158 = vector.load %arg13[%c0_58, %c0_59] : memref<1x32xf32, #tpu.memory_space<vmem>>, vector<1x32xf32>
    %159 = vector.shape_cast %158 : vector<1x32xf32> to vector<32xf32>
    %160 = vector.extract_strided_slice %149 {offsets = [0, 0], sizes = [8, 8], strides = [1, 1]} : vector<8x32xbf16> to vector<8x8xbf16>
    %161 = vector.shape_cast %160 : vector<8x8xbf16> to vector<1x8x8xbf16>
    %162 = vector.extract_strided_slice %157 {offsets = [0, 0], sizes = [8, 8], strides = [1, 1]} : vector<8x64xbf16> to vector<8x8xbf16>
    %163 = vector.shape_cast %162 : vector<8x8xbf16> to vector<1x8x8xbf16>
    %164 = vector.extract_strided_slice %157 {offsets = [0, 32], sizes = [8, 8], strides = [1, 1]} : vector<8x64xbf16> to vector<8x8xbf16>
    %165 = vector.shape_cast %164 : vector<8x8xbf16> to vector<1x8x8xbf16>
    "tpu.trace_start"() <{level = 10 : i32, message = "bqd,bkd->bqk"}> : () -> ()
    %cst_60 = arith.constant dense<0.000000e+00> : vector<1x8x8xf32>
    %166 = tpu.matmul %161, %163, %cst_60 {dimension_numbers = #tpu.dot_dimension_numbers<[2], [2], [1], [1], [0, 0, 0, 1, 1, 1], [0], [0]>} : vector<1x8x8xbf16>, vector<1x8x8xbf16>, vector<1x8x8xf32> -> vector<1x8x8xf32>
    "tpu.trace_stop"() : () -> ()
    %cst_61 = arith.constant dense<0xFF800000> : vector<1x8xf32>
    %167 = vector.multi_reduction <maximumf>, %166, %cst_61 [2] : vector<1x8x8xf32> to vector<1x8xf32>
    %168 = vector.shape_cast %167 : vector<1x8xf32> to vector<1x8x1xf32>
    %169 = vector.broadcast %168 : vector<1x8x1xf32> to vector<1x8x8xf32>
    %170 = arith.subf %166, %169 : vector<1x8x8xf32>
    %171 = math.exp %170 : vector<1x8x8xf32>
    %cst_62 = arith.constant dense<0.000000e+00> : vector<1x8xf32>
    %172 = vector.multi_reduction <add>, %171, %cst_62 [2] : vector<1x8x8xf32> to vector<1x8xf32>
    %173 = vector.shape_cast %172 : vector<1x8xf32> to vector<1x8x1xf32>
    %174 = tpu.reciprocal %173 {approx = true} : vector<1x8x1xf32> -> vector<1x8x1xf32>
    %175 = vector.broadcast %174 : vector<1x8x1xf32> to vector<1x8x8xf32>
    %176 = arith.mulf %171, %175 : vector<1x8x8xf32>
    %177 = arith.truncf %176 : vector<1x8x8xf32> to vector<1x8x8xbf16>
    "tpu.trace_start"() <{level = 10 : i32, message = "bqk,bkd->bqd"}> : () -> ()
    %cst_63 = arith.constant dense<0.000000e+00> : vector<1x8x8xf32>
    %178 = tpu.matmul %177, %165, %cst_63 {dimension_numbers = #tpu.dot_dimension_numbers<[2], [1], [1], [2], [0, 0, 0, 1, 1, 2], [0], [0]>} : vector<1x8x8xbf16>, vector<1x8x8xbf16>, vector<1x8x8xf32> -> vector<1x8x8xf32>
    "tpu.trace_stop"() : () -> ()
    %179 = vector.shape_cast %178 : vector<1x8x8xf32> to vector<8x8xf32>
    %c0_64 = arith.constant 0 : index
    %c0_65 = arith.constant 0 : index
    %180 = vector.load %arg21[%c0_64, %c0_65] : memref<8x32xf32, #tpu.memory_space<vmem>>, vector<8x8xf32>
    tpu.vector_store %arg21[%c0_64, %c0_65], %179 {strides = array<i32>} : memref<8x32xf32, #tpu.memory_space<vmem>>, vector<8x8xf32>,
    %181 = vector.extract_strided_slice %149 {offsets = [0, 8], sizes = [8, 8], strides = [1, 1]} : vector<8x32xbf16> to vector<8x8xbf16>
    %182 = vector.shape_cast %181 : vector<8x8xbf16> to vector<1x8x8xbf16>
    %183 = vector.extract_strided_slice %157 {offsets = [0, 8], sizes = [8, 8], strides = [1, 1]} : vector<8x64xbf16> to vector<8x8xbf16>
    %184 = vector.shape_cast %183 : vector<8x8xbf16> to vector<1x8x8xbf16>
    %185 = vector.extract_strided_slice %157 {offsets = [0, 40], sizes = [8, 8], strides = [1, 1]} : vector<8x64xbf16> to vector<8x8xbf16>
    %186 = vector.shape_cast %185 : vector<8x8xbf16> to vector<1x8x8xbf16>
    "tpu.trace_start"() <{level = 10 : i32, message = "bqd,bkd->bqk"}> : () -> ()
    %cst_66 = arith.constant dense<0.000000e+00> : vector<1x8x8xf32>
    %187 = tpu.matmul %182, %184, %cst_66 {dimension_numbers = #tpu.dot_dimension_numbers<[2], [2], [1], [1], [0, 0, 0, 1, 1, 1], [0], [0]>} : vector<1x8x8xbf16>, vector<1x8x8xbf16>, vector<1x8x8xf32> -> vector<1x8x8xf32>
    "tpu.trace_stop"() : () -> ()
    %cst_67 = arith.constant dense<0xFF800000> : vector<1x8xf32>
    %188 = vector.multi_reduction <maximumf>, %187, %cst_67 [2] : vector<1x8x8xf32> to vector<1x8xf32>
    %189 = vector.shape_cast %188 : vector<1x8xf32> to vector<1x8x1xf32>
    %190 = vector.broadcast %189 : vector<1x8x1xf32> to vector<1x8x8xf32>
    %191 = arith.subf %187, %190 : vector<1x8x8xf32>
    %192 = math.exp %191 : vector<1x8x8xf32>
    %cst_68 = arith.constant dense<0.000000e+00> : vector<1x8xf32>
    %193 = vector.multi_reduction <add>, %192, %cst_68 [2] : vector<1x8x8xf32> to vector<1x8xf32>
    %194 = vector.shape_cast %193 : vector<1x8xf32> to vector<1x8x1xf32>
    %195 = tpu.reciprocal %194 {approx = true} : vector<1x8x1xf32> -> vector<1x8x1xf32>
    %196 = vector.broadcast %195 : vector<1x8x1xf32> to vector<1x8x8xf32>
    %197 = arith.mulf %192, %196 : vector<1x8x8xf32>
    %198 = arith.truncf %197 : vector<1x8x8xf32> to vector<1x8x8xbf16>
    "tpu.trace_start"() <{level = 10 : i32, message = "bqk,bkd->bqd"}> : () -> ()
    %cst_69 = arith.constant dense<0.000000e+00> : vector<1x8x8xf32>
    %199 = tpu.matmul %198, %186, %cst_69 {dimension_numbers = #tpu.dot_dimension_numbers<[2], [1], [1], [2], [0, 0, 0, 1, 1, 2], [0], [0]>} : vector<1x8x8xbf16>, vector<1x8x8xbf16>, vector<1x8x8xf32> -> vector<1x8x8xf32>
    "tpu.trace_stop"() : () -> ()
    %200 = vector.shape_cast %199 : vector<1x8x8xf32> to vector<8x8xf32>
    %c0_70 = arith.constant 0 : index
    %c8_71 = arith.constant 8 : index
    %201 = vector.load %arg21[%c0_70, %c8_71] : memref<8x32xf32, #tpu.memory_space<vmem>>, vector<8x8xf32>
    tpu.vector_store %arg21[%c0_70, %c8_71], %200 {strides = array<i32>} : memref<8x32xf32, #tpu.memory_space<vmem>>, vector<8x8xf32>,
    %202 = vector.extract_strided_slice %149 {offsets = [0, 16], sizes = [8, 8], strides = [1, 1]} : vector<8x32xbf16> to vector<8x8xbf16>
    %203 = vector.shape_cast %202 : vector<8x8xbf16> to vector<1x8x8xbf16>
    %204 = vector.extract_strided_slice %157 {offsets = [0, 16], sizes = [8, 8], strides = [1, 1]} : vector<8x64xbf16> to vector<8x8xbf16>
    %205 = vector.shape_cast %204 : vector<8x8xbf16> to vector<1x8x8xbf16>
    %206 = vector.extract_strided_slice %157 {offsets = [0, 48], sizes = [8, 8], strides = [1, 1]} : vector<8x64xbf16> to vector<8x8xbf16>
    %207 = vector.shape_cast %206 : vector<8x8xbf16> to vector<1x8x8xbf16>
    "tpu.trace_start"() <{level = 10 : i32, message = "bqd,bkd->bqk"}> : () -> ()
    %cst_72 = arith.constant dense<0.000000e+00> : vector<1x8x8xf32>
    %208 = tpu.matmul %203, %205, %cst_72 {dimension_numbers = #tpu.dot_dimension_numbers<[2], [2], [1], [1], [0, 0, 0, 1, 1, 1], [0], [0]>} : vector<1x8x8xbf16>, vector<1x8x8xbf16>, vector<1x8x8xf32> -> vector<1x8x8xf32>
    "tpu.trace_stop"() : () -> ()
    %cst_73 = arith.constant dense<0xFF800000> : vector<1x8xf32>
    %209 = vector.multi_reduction <maximumf>, %208, %cst_73 [2] : vector<1x8x8xf32> to vector<1x8xf32>
    %210 = vector.shape_cast %209 : vector<1x8xf32> to vector<1x8x1xf32>
    %211 = vector.broadcast %210 : vector<1x8x1xf32> to vector<1x8x8xf32>
    %212 = arith.subf %208, %211 : vector<1x8x8xf32>
    %213 = math.exp %212 : vector<1x8x8xf32>
    %cst_74 = arith.constant dense<0.000000e+00> : vector<1x8xf32>
    %214 = vector.multi_reduction <add>, %213, %cst_74 [2] : vector<1x8x8xf32> to vector<1x8xf32>
    %215 = vector.shape_cast %214 : vector<1x8xf32> to vector<1x8x1xf32>
    %216 = tpu.reciprocal %215 {approx = true} : vector<1x8x1xf32> -> vector<1x8x1xf32>
    %217 = vector.broadcast %216 : vector<1x8x1xf32> to vector<1x8x8xf32>
    %218 = arith.mulf %213, %217 : vector<1x8x8xf32>
    %219 = arith.truncf %218 : vector<1x8x8xf32> to vector<1x8x8xbf16>
    "tpu.trace_start"() <{level = 10 : i32, message = "bqk,bkd->bqd"}> : () -> ()
    %cst_75 = arith.constant dense<0.000000e+00> : vector<1x8x8xf32>
    %220 = tpu.matmul %219, %207, %cst_75 {dimension_numbers = #tpu.dot_dimension_numbers<[2], [1], [1], [2], [0, 0, 0, 1, 1, 2], [0], [0]>} : vector<1x8x8xbf16>, vector<1x8x8xbf16>, vector<1x8x8xf32> -> vector<1x8x8xf32>
    "tpu.trace_stop"() : () -> ()
    %221 = vector.shape_cast %220 : vector<1x8x8xf32> to vector<8x8xf32>
    %c0_76 = arith.constant 0 : index
    %c16_77 = arith.constant 16 : index
    %222 = vector.load %arg21[%c0_76, %c16_77] : memref<8x32xf32, #tpu.memory_space<vmem>>, vector<8x8xf32>
    tpu.vector_store %arg21[%c0_76, %c16_77], %221 {strides = array<i32>} : memref<8x32xf32, #tpu.memory_space<vmem>>, vector<8x8xf32>,
    %223 = vector.extract_strided_slice %149 {offsets = [0, 24], sizes = [8, 8], strides = [1, 1]} : vector<8x32xbf16> to vector<8x8xbf16>
    %224 = vector.shape_cast %223 : vector<8x8xbf16> to vector<1x8x8xbf16>
    %225 = vector.extract_strided_slice %157 {offsets = [0, 24], sizes = [8, 8], strides = [1, 1]} : vector<8x64xbf16> to vector<8x8xbf16>
    %226 = vector.shape_cast %225 : vector<8x8xbf16> to vector<1x8x8xbf16>
    %227 = vector.extract_strided_slice %157 {offsets = [0, 56], sizes = [8, 8], strides = [1, 1]} : vector<8x64xbf16> to vector<8x8xbf16>
    %228 = vector.shape_cast %227 : vector<8x8xbf16> to vector<1x8x8xbf16>
    "tpu.trace_start"() <{level = 10 : i32, message = "bqd,bkd->bqk"}> : () -> ()
    %cst_78 = arith.constant dense<0.000000e+00> : vector<1x8x8xf32>
    %229 = tpu.matmul %224, %226, %cst_78 {dimension_numbers = #tpu.dot_dimension_numbers<[2], [2], [1], [1], [0, 0, 0, 1, 1, 1], [0], [0]>} : vector<1x8x8xbf16>, vector<1x8x8xbf16>, vector<1x8x8xf32> -> vector<1x8x8xf32>
    "tpu.trace_stop"() : () -> ()
    %cst_79 = arith.constant dense<0xFF800000> : vector<1x8xf32>
    %230 = vector.multi_reduction <maximumf>, %229, %cst_79 [2] : vector<1x8x8xf32> to vector<1x8xf32>
    %231 = vector.shape_cast %230 : vector<1x8xf32> to vector<1x8x1xf32>
    %232 = vector.broadcast %231 : vector<1x8x1xf32> to vector<1x8x8xf32>
    %233 = arith.subf %229, %232 : vector<1x8x8xf32>
    %234 = math.exp %233 : vector<1x8x8xf32>
    %cst_80 = arith.constant dense<0.000000e+00> : vector<1x8xf32>
    %235 = vector.multi_reduction <add>, %234, %cst_80 [2] : vector<1x8x8xf32> to vector<1x8xf32>
    %236 = vector.shape_cast %235 : vector<1x8xf32> to vector<1x8x1xf32>
    %237 = tpu.reciprocal %236 {approx = true} : vector<1x8x1xf32> -> vector<1x8x1xf32>
    %238 = vector.broadcast %237 : vector<1x8x1xf32> to vector<1x8x8xf32>
    %239 = arith.mulf %234, %238 : vector<1x8x8xf32>
    %240 = arith.truncf %239 : vector<1x8x8xf32> to vector<1x8x8xbf16>
    "tpu.trace_start"() <{level = 10 : i32, message = "bqk,bkd->bqd"}> : () -> ()
    %cst_81 = arith.constant dense<0.000000e+00> : vector<1x8x8xf32>
    %241 = tpu.matmul %240, %228, %cst_81 {dimension_numbers = #tpu.dot_dimension_numbers<[2], [1], [1], [2], [0, 0, 0, 1, 1, 2], [0], [0]>} : vector<1x8x8xbf16>, vector<1x8x8xbf16>, vector<1x8x8xf32> -> vector<1x8x8xf32>
    "tpu.trace_stop"() : () -> ()
    %242 = vector.shape_cast %241 : vector<1x8x8xf32> to vector<8x8xf32>
    %c0_82 = arith.constant 0 : index
    %c24_83 = arith.constant 24 : index
    %243 = vector.load %arg21[%c0_82, %c24_83] : memref<8x32xf32, #tpu.memory_space<vmem>>, vector<8x8xf32>
    tpu.vector_store %arg21[%c0_82, %c24_83], %242 {strides = array<i32>} : memref<8x32xf32, #tpu.memory_space<vmem>>, vector<8x8xf32>,
    %c0_84 = arith.constant 0 : index
    %c0_85 = arith.constant 0 : index
    %244 = vector.load %arg21[%c0_84, %c0_85] : memref<8x32xf32, #tpu.memory_space<vmem>>, vector<8x32xf32>
    %245 = arith.truncf %244 : vector<8x32xf32> to vector<8x32xbf16>
    %c0_86 = arith.constant 0 : index
    %c0_87 = arith.constant 0 : index
    %246 = vector.load %arg12[%c0_86, %c0_87] : memref<32x32xbf16, #tpu.memory_space<vmem>>, vector<32x32xbf16>
    %cst_88 = arith.constant dense<0.000000e+00> : vector<8x32xf32>
    %247 = tpu.matmul %245, %246, %cst_88 {dimension_numbers = #tpu.dot_dimension_numbers<[1], [0], [0], [1], [0, 0, 1, 1], [], []>} : vector<8x32xbf16>, vector<32x32xbf16>, vector<8x32xf32> -> vector<8x32xf32>
    %248 = vector.shape_cast %159 : vector<32xf32> to vector<1x32xf32>
    %249 = vector.broadcast %248 : vector<1x32xf32> to vector<8x32xf32>
    %250 = arith.addf %247, %249 : vector<8x32xf32>
    %251 = arith.addf %140, %250 : vector<8x32xf32>
    %c1 = arith.constant 1 : index
    %c0_89 = arith.constant 0 : index
    %252 = vector.load %arg14[%c1, %c0_89] : memref<3x32xf32, #tpu.memory_space<vmem>>, vector<1x32xf32>
    %253 = vector.shape_cast %252 : vector<1x32xf32> to vector<32xf32>
    %c1_90 = arith.constant 1 : index
    %c0_91 = arith.constant 0 : index
    %254 = vector.load %arg15[%c1_90, %c0_91] : memref<3x32xf32, #tpu.memory_space<vmem>>, vector<1x32xf32>
    %255 = vector.shape_cast %254 : vector<1x32xf32> to vector<32xf32>
    %cst_92 = arith.constant dense<0.000000e+00> : vector<8xf32>
    %256 = vector.multi_reduction <add>, %251, %cst_92 [1] : vector<8x32xf32> to vector<8xf32>
    %257 = vector.shape_cast %256 : vector<8xf32> to vector<8x1xf32>
    %cst_93 = arith.constant 3.200000e+01 : f32
    %258 = vector.broadcast %cst_93 : f32 to vector<8x1xf32>
    %259 = arith.divf %257, %258 : vector<8x1xf32>
    %260 = vector.broadcast %259 : vector<8x1xf32> to vector<8x32xf32>
    %261 = arith.subf %251, %260 : vector<8x32xf32>
    %262 = arith.mulf %261, %261 : vector<8x32xf32>
    %cst_94 = arith.constant dense<0.000000e+00> : vector<8xf32>
    %263 = vector.multi_reduction <add>, %262, %cst_94 [1] : vector<8x32xf32> to vector<8xf32>
    %264 = vector.shape_cast %263 : vector<8xf32> to vector<8x1xf32>
    %cst_95 = arith.constant 3.200000e+01 : f32
    %265 = vector.broadcast %cst_95 : f32 to vector<8x1xf32>
    %266 = arith.divf %264, %265 : vector<8x1xf32>
    %cst_96 = arith.constant 9.99999974E-6 : f32
    %267 = vector.broadcast %cst_96 : f32 to vector<8x1xf32>
    %268 = arith.addf %266, %267 : vector<8x1xf32>
    %269 = math.rsqrt %268 : vector<8x1xf32>
    %270 = vector.broadcast %269 : vector<8x1xf32> to vector<8x32xf32>
    %271 = arith.mulf %261, %270 : vector<8x32xf32>
    %272 = vector.shape_cast %253 : vector<32xf32> to vector<1x32xf32>
    %273 = vector.broadcast %272 : vector<1x32xf32> to vector<8x32xf32>
    %274 = arith.mulf %271, %273 : vector<8x32xf32>
    %275 = vector.shape_cast %255 : vector<32xf32> to vector<1x32xf32>
    %276 = vector.broadcast %275 : vector<1x32xf32> to vector<8x32xf32>
    %277 = arith.addf %274, %276 : vector<8x32xf32>
    %278 = arith.truncf %277 : vector<8x32xf32> to vector<8x32xbf16>
    %c0_97 = arith.constant 0 : index
    %c0_98 = arith.constant 0 : index
    %279 = vector.load %arg16[%c0_97, %c0_98] : memref<32x64xbf16, #tpu.memory_space<vmem>>, vector<32x64xbf16>
    %cst_99 = arith.constant dense<0.000000e+00> : vector<8x64xf32>
    %280 = tpu.matmul %278, %279, %cst_99 {dimension_numbers = #tpu.dot_dimension_numbers<[1], [0], [0], [1], [0, 0, 1, 1], [], []>} : vector<8x32xbf16>, vector<32x64xbf16>, vector<8x64xf32> -> vector<8x64xf32>
    %c0_100 = arith.constant 0 : index
    %c0_101 = arith.constant 0 : index
    %281 = vector.load %arg17[%c0_100, %c0_101] : memref<1x64xf32, #tpu.memory_space<vmem>>, vector<1x64xf32>
    %282 = vector.shape_cast %281 : vector<1x64xf32> to vector<64xf32>
    %283 = vector.shape_cast %282 : vector<64xf32> to vector<1x64xf32>
    %284 = vector.broadcast %283 : vector<1x64xf32> to vector<8x64xf32>
    %285 = arith.addf %280, %284 : vector<8x64xf32>
    %cst_102 = arith.constant 0.000000e+00 : f32
    %286 = vector.broadcast %cst_102 : f32 to vector<8x64xf32>
    %287 = arith.maximumf %285, %286 : vector<8x64xf32>
    %288 = arith.truncf %287 : vector<8x64xf32> to vector<8x64xbf16>
    %c0_103 = arith.constant 0 : index
    %c0_104 = arith.constant 0 : index
    %289 = vector.load %arg18[%c0_103, %c0_104] : memref<64x32xbf16, #tpu.memory_space<vmem>>, vector<64x32xbf16>
    %cst_105 = arith.constant dense<0.000000e+00> : vector<8x32xf32>
    %290 = tpu.matmul %288, %289, %cst_105 {dimension_numbers = #tpu.dot_dimension_numbers<[1], [0], [0], [1], [0, 0, 1, 1], [], []>} : vector<8x64xbf16>, vector<64x32xbf16>, vector<8x32xf32> -> vector<8x32xf32>
    %c0_106 = arith.constant 0 : index
    %c0_107 = arith.constant 0 : index
    %291 = vector.load %arg19[%c0_106, %c0_107] : memref<1x32xf32, #tpu.memory_space<vmem>>, vector<1x32xf32>
    %292 = vector.shape_cast %291 : vector<1x32xf32> to vector<32xf32>
    %293 = vector.shape_cast %292 : vector<32xf32> to vector<1x32xf32>
    %294 = vector.broadcast %293 : vector<1x32xf32> to vector<8x32xf32>
    %295 = arith.addf %290, %294 : vector<8x32xf32>
    %296 = arith.addf %277, %295 : vector<8x32xf32>
    %c2 = arith.constant 2 : index
    %c0_108 = arith.constant 0 : index
    %297 = vector.load %arg14[%c2, %c0_108] : memref<3x32xf32, #tpu.memory_space<vmem>>, vector<1x32xf32>
    %298 = vector.shape_cast %297 : vector<1x32xf32> to vector<32xf32>
    %c2_109 = arith.constant 2 : index
    %c0_110 = arith.constant 0 : index
    %299 = vector.load %arg15[%c2_109, %c0_110] : memref<3x32xf32, #tpu.memory_space<vmem>>, vector<1x32xf32>
    %300 = vector.shape_cast %299 : vector<1x32xf32> to vector<32xf32>
    %cst_111 = arith.constant dense<0.000000e+00> : vector<8xf32>
    %301 = vector.multi_reduction <add>, %296, %cst_111 [1] : vector<8x32xf32> to vector<8xf32>
    %302 = vector.shape_cast %301 : vector<8xf32> to vector<8x1xf32>
    %cst_112 = arith.constant 3.200000e+01 : f32
    %303 = vector.broadcast %cst_112 : f32 to vector<8x1xf32>
    %304 = arith.divf %302, %303 : vector<8x1xf32>
    %305 = vector.broadcast %304 : vector<8x1xf32> to vector<8x32xf32>
    %306 = arith.subf %296, %305 : vector<8x32xf32>
    %307 = arith.mulf %306, %306 : vector<8x32xf32>
    %cst_113 = arith.constant dense<0.000000e+00> : vector<8xf32>
    %308 = vector.multi_reduction <add>, %307, %cst_113 [1] : vector<8x32xf32> to vector<8xf32>
    %309 = vector.shape_cast %308 : vector<8xf32> to vector<8x1xf32>
    %cst_114 = arith.constant 3.200000e+01 : f32
    %310 = vector.broadcast %cst_114 : f32 to vector<8x1xf32>
    %311 = arith.divf %309, %310 : vector<8x1xf32>
    %cst_115 = arith.constant 9.99999974E-6 : f32
    %312 = vector.broadcast %cst_115 : f32 to vector<8x1xf32>
    %313 = arith.addf %311, %312 : vector<8x1xf32>
    %314 = math.rsqrt %313 : vector<8x1xf32>
    %315 = vector.broadcast %314 : vector<8x1xf32> to vector<8x32xf32>
    %316 = arith.mulf %306, %315 : vector<8x32xf32>
    %317 = vector.shape_cast %298 : vector<32xf32> to vector<1x32xf32>
    %318 = vector.broadcast %317 : vector<1x32xf32> to vector<8x32xf32>
    %319 = arith.mulf %316, %318 : vector<8x32xf32>
    %320 = vector.shape_cast %300 : vector<32xf32> to vector<1x32xf32>
    %321 = vector.broadcast %320 : vector<1x32xf32> to vector<8x32xf32>
    %322 = arith.addf %319, %321 : vector<8x32xf32>
    %323 = vector.shape_cast %322 : vector<8x32xf32> to vector<1x8x32xf32>
    %c0_116 = arith.constant 0 : index
    %c0_117 = arith.constant 0 : index
    %c0_118 = arith.constant 0 : index
    %324 = vector.load %arg20[%c0_116, %c0_117, %c0_118] : memref<1x8x32xf32, #tpu.memory_space<vmem>>, vector<1x8x32xf32>
    tpu.vector_store %arg20[%c0_116, %c0_117, %c0_118], %323 {strides = array<i32>} : memref<1x8x32xf32, #tpu.memory_space<vmem>>, vector<1x8x32xf32>,
    return
  }
  func.func @transform_0(%arg0: i32) -> (i32, i32, i32) {
    %c0_i32 = arith.constant 0 : i32
    %c0_i32_0 = arith.constant 0 : i32
    %c0_i32_1 = arith.constant 0 : i32
    return %arg0, %c0_i32, %c0_i32_0 : i32, i32, i32
  }
  func.func @transform_1(%arg0: i32) -> (i32, i32, i32) {
    %c0_i32 = arith.constant 0 : i32
    %c0_i32_0 = arith.constant 0 : i32
    %c0_i32_1 = arith.constant 0 : i32
    return %arg0, %c0_i32, %c0_i32_0 : i32, i32, i32
  }
  func.func @transform_2(%arg0: i32) -> (i32, i32) {
    %c0_i32 = arith.constant 0 : i32
    %c0_i32_0 = arith.constant 0 : i32
    %c0_i32_1 = arith.constant 0 : i32
    return %c0_i32, %c0_i32_0 : i32, i32
  }
  func.func @transform_3(%arg0: i32) -> (i32, i32) {
    %c0_i32 = arith.constant 0 : i32
    %c0_i32_0 = arith.constant 0 : i32
    %c0_i32_1 = arith.constant 0 : i32
    return %c0_i32, %c0_i32_0 : i32, i32
  }
  func.func @transform_4(%arg0: i32) -> (i32, i32) {
    %c0_i32 = arith.constant 0 : i32
    %c0_i32_0 = arith.constant 0 : i32
    %c0_i32_1 = arith.constant 0 : i32
    return %c0_i32, %c0_i32_0 : i32, i32
  }
  func.func @transform_5(%arg0: i32) -> (i32, i32) {
    %c0_i32 = arith.constant 0 : i32
    %c0_i32_0 = arith.constant 0 : i32
    %c0_i32_1 = arith.constant 0 : i32
    return %c0_i32, %c0_i32_0 : i32, i32
  }
  func.func @transform_6(%arg0: i32) -> (i32, i32) {
    %c0_i32 = arith.constant 0 : i32
    %c0_i32_0 = arith.constant 0 : i32
    %c0_i32_1 = arith.constant 0 : i32
    return %c0_i32, %c0_i32_0 : i32, i32
  }
  func.func @transform_7(%arg0: i32) -> (i32, i32) {
    %c0_i32 = arith.constant 0 : i32
    %c0_i32_0 = arith.constant 0 : i32
    %c0_i32_1 = arith.constant 0 : i32
    return %c0_i32, %c0_i32_0 : i32, i32
  }
  func.func @transform_8(%arg0: i32) -> (i32, i32) {
    %c0_i32 = arith.constant 0 : i32
    %c0_i32_0 = arith.constant 0 : i32
    %c0_i32_1 = arith.constant 0 : i32
    return %c0_i32, %c0_i32_0 : i32, i32
  }
  func.func @transform_9(%arg0: i32) -> (i32, i32) {
    %c0_i32 = arith.constant 0 : i32
    %c0_i32_0 = arith.constant 0 : i32
    %c0_i32_1 = arith.constant 0 : i32
    return %c0_i32, %c0_i32_0 : i32, i32
  }
  func.func @transform_10(%arg0: i32) -> (i32, i32) {
    %c0_i32 = arith.constant 0 : i32
    %c0_i32_0 = arith.constant 0 : i32
    %c0_i32_1 = arith.constant 0 : i32
    return %c0_i32, %c0_i32_0 : i32, i32
  }
  func.func @transform_11(%arg0: i32) -> (i32, i32) {
    %c0_i32 = arith.constant 0 : i32
    %c0_i32_0 = arith.constant 0 : i32
    %c0_i32_1 = arith.constant 0 : i32
    return %c0_i32, %c0_i32_0 : i32, i32
  }
  func.func @transform_12(%arg0: i32) -> (i32, i32) {
    %c0_i32 = arith.constant 0 : i32
    %c0_i32_0 = arith.constant 0 : i32
    %c0_i32_1 = arith.constant 0 : i32
    return %c0_i32, %c0_i32_0 : i32, i32
  }
  func.func @transform_13(%arg0: i32) -> (i32, i32) {
    %c0_i32 = arith.constant 0 : i32
    %c0_i32_0 = arith.constant 0 : i32
    %c0_i32_1 = arith.constant 0 : i32
    return %c0_i32, %c0_i32_0 : i32, i32
  }
  func.func @transform_14(%arg0: i32) -> (i32, i32) {
    %c0_i32 = arith.constant 0 : i32
    %c0_i32_0 = arith.constant 0 : i32
    %c0_i32_1 = arith.constant 0 : i32
    return %c0_i32, %c0_i32_0 : i32, i32
  }
  func.func @transform_15(%arg0: i32) -> (i32, i32) {
    %c0_i32 = arith.constant 0 : i32
    %c0_i32_0 = arith.constant 0 : i32
    %c0_i32_1 = arith.constant 0 : i32
    return %c0_i32, %c0_i32_0 : i32, i32
  }
  func.func @transform_16(%arg0: i32) -> (i32, i32) {
    %c0_i32 = arith.constant 0 : i32
    %c0_i32_0 = arith.constant 0 : i32
    %c0_i32_1 = arith.constant 0 : i32
    return %c0_i32, %c0_i32_0 : i32, i32
  }
  func.func @transform_17(%arg0: i32) -> (i32, i32) {
    %c0_i32 = arith.constant 0 : i32
    %c0_i32_0 = arith.constant 0 : i32
    %c0_i32_1 = arith.constant 0 : i32
    return %c0_i32, %c0_i32_0 : i32, i32
  }
  func.func @transform_18(%arg0: i32) -> (i32, i32) {
    %c0_i32 = arith.constant 0 : i32
    %c0_i32_0 = arith.constant 0 : i32
    %c0_i32_1 = arith.constant 0 : i32
    return %c0_i32, %c0_i32_0 : i32, i32
  }
  func.func @transform_19(%arg0: i32) -> (i32, i32, i32) {
    %c0_i32 = arith.constant 0 : i32
    %c0_i32_0 = arith.constant 0 : i32
    %c0_i32_1 = arith.constant 0 : i32
    return %arg0, %c0_i32, %c0_i32_0 : i32, i32, i32
  }
}

module attributes {stable_mosaic.version = 11 : i64} {
  func.func @kernel(%arg0: i32, %arg1: memref<1x8x32xbf16, #tpu.memory_space<vmem>>, %arg2: memref<1x8x32xbf16, #tpu.memory_space<vmem>>, %arg3: memref<8x8xf32, #tpu.memory_space<vmem>>, %arg4: memref<32x96xbf16, #tpu.memory_space<vmem>>, %arg5: memref<1x96xf32, #tpu.memory_space<vmem>>, %arg6: memref<32x32xbf16, #tpu.memory_space<vmem>>, %arg7: memref<1x32xf32, #tpu.memory_space<vmem>>, %arg8: memref<32x32xbf16, #tpu.memory_space<vmem>>, %arg9: memref<1x32xf32, #tpu.memory_space<vmem>>, %arg10: memref<32x64xbf16, #tpu.memory_space<vmem>>, %arg11: memref<1x64xf32, #tpu.memory_space<vmem>>, %arg12: memref<32x32xbf16, #tpu.memory_space<vmem>>, %arg13: memref<1x32xf32, #tpu.memory_space<vmem>>, %arg14: memref<3x32xf32, #tpu.memory_space<vmem>>, %arg15: memref<3x32xf32, #tpu.memory_space<vmem>>, %arg16: memref<32x64xbf16, #tpu.memory_space<vmem>>, %arg17: memref<1x64xf32, #tpu.memory_space<vmem>>, %arg18: memref<64x32xbf16, #tpu.memory_space<vmem>>, %arg19: memref<1x32xf32, #tpu.memory_space<vmem>>, %arg20: memref<1x8x32xf32, #tpu.memory_space<vmem>>, %arg21: memref<8x32xf32, #tpu.memory_space<vmem>>) attributes {dimension_semantics = [#tpu.dimension_semantics<parallel>], iteration_bounds = array<i64: 2>, scalar_prefetch = 0 : i64, scratch_operands = 1 : i64, tpu.core_type = #tpu.core_type<tc>, window_params = [{transform_indices = @transform_0, window_bounds = array<i64: 1, 8, 32>}, {transform_indices = @transform_1, window_bounds = array<i64: 1, 8, 32>}, {pipeline_mode = #tpu.pipeline_mode<synchronous>, transform_indices = @transform_2, window_bounds = array<i64: 8, 8>}, {pipeline_mode = #tpu.pipeline_mode<synchronous>, transform_indices = @transform_3, window_bounds = array<i64: 32, 96>}, {pipeline_mode = #tpu.pipeline_mode<synchronous>, transform_indices = @transform_4, window_bounds = array<i64: 1, 96>}, {pipeline_mode = #tpu.pipeline_mode<synchronous>, transform_indices = @transform_5, window_bounds = array<i64: 32, 32>}, {pipeline_mode = #tpu.pipeline_mode<synchronous>, transform_indices = @transform_6, window_bounds = array<i64: 1, 32>}, {pipeline_mode = #tpu.pipeline_mode<synchronous>, transform_indices = @transform_7, window_bounds = array<i64: 32, 32>}, {pipeline_mode = #tpu.pipeline_mode<synchronous>, transform_indices = @transform_8, window_bounds = array<i64: 1, 32>}, {pipeline_mode = #tpu.pipeline_mode<synchronous>, transform_indices = @transform_9, window_bounds = array<i64: 32, 64>}, {pipeline_mode = #tpu.pipeline_mode<synchronous>, transform_indices = @transform_10, window_bounds = array<i64: 1, 64>}, {pipeline_mode = #tpu.pipeline_mode<synchronous>, transform_indices = @transform_11, window_bounds = array<i64: 32, 32>}, {pipeline_mode = #tpu.pipeline_mode<synchronous>, transform_indices = @transform_12, window_bounds = array<i64: 1, 32>}, {pipeline_mode = #tpu.pipeline_mode<synchronous>, transform_indices = @transform_13, window_bounds = array<i64: 3, 32>}, {pipeline_mode = #tpu.pipeline_mode<synchronous>, transform_indices = @transform_14, window_bounds = array<i64: 3, 32>}, {pipeline_mode = #tpu.pipeline_mode<synchronous>, transform_indices = @transform_15, window_bounds = array<i64: 32, 64>}, {pipeline_mode = #tpu.pipeline_mode<synchronous>, transform_indices = @transform_16, window_bounds = array<i64: 1, 64>}, {pipeline_mode = #tpu.pipeline_mode<synchronous>, transform_indices = @transform_17, window_bounds = array<i64: 64, 32>}, {pipeline_mode = #tpu.pipeline_mode<synchronous>, transform_indices = @transform_18, window_bounds = array<i64: 1, 32>}, {transform_indices = @transform_19, window_bounds = array<i64: 1, 8, 32>}]} {
    %c0 = arith.constant 0 : index
    %c0_0 = arith.constant 0 : index
    %c0_1 = arith.constant 0 : index
    %0 = vector.load %arg1[%c0, %c0_0, %c0_1] : memref<1x8x32xbf16, #tpu.memory_space<vmem>>, vector<1x8x32xbf16>
    %1 = vector.shape_cast %0 : vector<1x8x32xbf16> to vector<8x32xbf16>
    %2 = arith.extf %1 : vector<8x32xbf16> to vector<8x32xf32>
    %c0_2 = arith.constant 0 : index
    %c0_3 = arith.constant 0 : index
    %c0_4 = arith.constant 0 : index
    %3 = vector.load %arg2[%c0_2, %c0_3, %c0_4] : memref<1x8x32xbf16, #tpu.memory_space<vmem>>, vector<1x8x32xbf16>
    %4 = vector.shape_cast %3 : vector<1x8x32xbf16> to vector<8x32xbf16>
    %c0_5 = arith.constant 0 : index
    %c0_6 = arith.constant 0 : index
    %5 = vector.load %arg3[%c0_5, %c0_6] : memref<8x8xf32, #tpu.memory_space<vmem>>, vector<8x8xf32>
    %6 = vector.shape_cast %5 : vector<8x8xf32> to vector<1x8x8xf32>
    %c0_7 = arith.constant 0 : index
    %c0_8 = arith.constant 0 : index
    %7 = vector.load %arg4[%c0_7, %c0_8] : memref<32x96xbf16, #tpu.memory_space<vmem>>, vector<32x96xbf16>
    %cst = arith.constant dense<0.000000e+00> : vector<8x96xf32>
    %8 = tpu.matmul %1, %7, %cst {dimension_numbers = #tpu.dot_dimension_numbers<[1], [0], [0], [1], [0, 0, 1, 1], [], []>} : vector<8x32xbf16>, vector<32x96xbf16>, vector<8x96xf32> -> vector<8x96xf32>
    %c0_9 = arith.constant 0 : index
    %c0_10 = arith.constant 0 : index
    %9 = vector.load %arg5[%c0_9, %c0_10] : memref<1x96xf32, #tpu.memory_space<vmem>>, vector<1x96xf32>
    %10 = vector.shape_cast %9 : vector<1x96xf32> to vector<96xf32>
    %11 = vector.shape_cast %10 : vector<96xf32> to vector<1x96xf32>
    %12 = vector.broadcast %11 : vector<1x96xf32> to vector<8x96xf32>
    %13 = arith.addf %8, %12 : vector<8x96xf32>
    %14 = arith.truncf %13 : vector<8x96xf32> to vector<8x96xbf16>
    %15 = vector.extract_strided_slice %14 {offsets = [0, 0], sizes = [8, 32], strides = [1, 1]} : vector<8x96xbf16> to vector<8x32xbf16>
    %16 = vector.extract_strided_slice %14 {offsets = [0, 32], sizes = [8, 64], strides = [1, 1]} : vector<8x96xbf16> to vector<8x64xbf16>
    %c0_11 = arith.constant 0 : index
    %c0_12 = arith.constant 0 : index
    %17 = vector.load %arg7[%c0_11, %c0_12] : memref<1x32xf32, #tpu.memory_space<vmem>>, vector<1x32xf32>
    %18 = vector.shape_cast %17 : vector<1x32xf32> to vector<32xf32>
    %19 = vector.extract_strided_slice %15 {offsets = [0, 0], sizes = [8, 8], strides = [1, 1]} : vector<8x32xbf16> to vector<8x8xbf16>
    %20 = vector.shape_cast %19 : vector<8x8xbf16> to vector<1x8x8xbf16>
    %21 = vector.extract_strided_slice %16 {offsets = [0, 0], sizes = [8, 8], strides = [1, 1]} : vector<8x64xbf16> to vector<8x8xbf16>
    %22 = vector.shape_cast %21 : vector<8x8xbf16> to vector<1x8x8xbf16>
    %23 = vector.extract_strided_slice %16 {offsets = [0, 32], sizes = [8, 8], strides = [1, 1]} : vector<8x64xbf16> to vector<8x8xbf16>
    %24 = vector.shape_cast %23 : vector<8x8xbf16> to vector<1x8x8xbf16>
    "tpu.trace_start"() <{level = 10 : i32, message = "bqd,bkd->bqk"}> : () -> ()
    %cst_13 = arith.constant dense<0.000000e+00> : vector<1x8x8xf32>
    %25 = tpu.matmul %20, %22, %cst_13 {dimension_numbers = #tpu.dot_dimension_numbers<[2], [2], [1], [1], [0, 0, 0, 1, 1, 1], [0], [0]>} : vector<1x8x8xbf16>, vector<1x8x8xbf16>, vector<1x8x8xf32> -> vector<1x8x8xf32>
    "tpu.trace_stop"() : () -> ()
    %26 = arith.addf %25, %6 : vector<1x8x8xf32>
    %cst_14 = arith.constant dense<0xFF800000> : vector<1x8xf32>
    %27 = vector.multi_reduction <maximumf>, %26, %cst_14 [2] : vector<1x8x8xf32> to vector<1x8xf32>
    %28 = vector.shape_cast %27 : vector<1x8xf32> to vector<1x8x1xf32>
    %29 = vector.broadcast %28 : vector<1x8x1xf32> to vector<1x8x8xf32>
    %30 = arith.subf %26, %29 : vector<1x8x8xf32>
    %31 = math.exp %30 : vector<1x8x8xf32>
    %cst_15 = arith.constant dense<0.000000e+00> : vector<1x8xf32>
    %32 = vector.multi_reduction <add>, %31, %cst_15 [2] : vector<1x8x8xf32> to vector<1x8xf32>
    %33 = vector.shape_cast %32 : vector<1x8xf32> to vector<1x8x1xf32>
    %34 = tpu.reciprocal %33 {approx = true} : vector<1x8x1xf32> -> vector<1x8x1xf32>
    %35 = vector.broadcast %34 : vector<1x8x1xf32> to vector<1x8x8xf32>
    %36 = arith.mulf %31, %35 : vector<1x8x8xf32>
    %37 = arith.truncf %36 : vector<1x8x8xf32> to vector<1x8x8xbf16>
    "tpu.trace_start"() <{level = 10 : i32, message = "bqk,bkd->bqd"}> : () -> ()
    %cst_16 = arith.constant dense<0.000000e+00> : vector<1x8x8xf32>
    %38 = tpu.matmul %37, %24, %cst_16 {dimension_numbers = #tpu.dot_dimension_numbers<[2], [1], [1], [2], [0, 0, 0, 1, 1, 2], [0], [0]>} : vector<1x8x8xbf16>, vector<1x8x8xbf16>, vector<1x8x8xf32> -> vector<1x8x8xf32>
    "tpu.trace_stop"() : () -> ()
    %39 = vector.shape_cast %38 : vector<1x8x8xf32> to vector<8x8xf32>
    %c0_17 = arith.constant 0 : index
    %c0_18 = arith.constant 0 : index
    %40 = vector.load %arg21[%c0_17, %c0_18] : memref<8x32xf32, #tpu.memory_space<vmem>>, vector<8x8xf32>
    tpu.vector_store %arg21[%c0_17, %c0_18], %39 {strides = array<i32>} : memref<8x32xf32, #tpu.memory_space<vmem>>, vector<8x8xf32>,
    %41 = vector.extract_strided_slice %15 {offsets = [0, 8], sizes = [8, 8], strides = [1, 1]} : vector<8x32xbf16> to vector<8x8xbf16>
    %42 = vector.shape_cast %41 : vector<8x8xbf16> to vector<1x8x8xbf16>
    %43 = vector.extract_strided_slice %16 {offsets = [0, 8], sizes = [8, 8], strides = [1, 1]} : vector<8x64xbf16> to vector<8x8xbf16>
    %44 = vector.shape_cast %43 : vector<8x8xbf16> to vector<1x8x8xbf16>
    %45 = vector.extract_strided_slice %16 {offsets = [0, 40], sizes = [8, 8], strides = [1, 1]} : vector<8x64xbf16> to vector<8x8xbf16>
    %46 = vector.shape_cast %45 : vector<8x8xbf16> to vector<1x8x8xbf16>
    "tpu.trace_start"() <{level = 10 : i32, message = "bqd,bkd->bqk"}> : () -> ()
    %cst_19 = arith.constant dense<0.000000e+00> : vector<1x8x8xf32>
    %47 = tpu.matmul %42, %44, %cst_19 {dimension_numbers = #tpu.dot_dimension_numbers<[2], [2], [1], [1], [0, 0, 0, 1, 1, 1], [0], [0]>} : vector<1x8x8xbf16>, vector<1x8x8xbf16>, vector<1x8x8xf32> -> vector<1x8x8xf32>
    "tpu.trace_stop"() : () -> ()
    %48 = arith.addf %47, %6 : vector<1x8x8xf32>
    %cst_20 = arith.constant dense<0xFF800000> : vector<1x8xf32>
    %49 = vector.multi_reduction <maximumf>, %48, %cst_20 [2] : vector<1x8x8xf32> to vector<1x8xf32>
    %50 = vector.shape_cast %49 : vector<1x8xf32> to vector<1x8x1xf32>
    %51 = vector.broadcast %50 : vector<1x8x1xf32> to vector<1x8x8xf32>
    %52 = arith.subf %48, %51 : vector<1x8x8xf32>
    %53 = math.exp %52 : vector<1x8x8xf32>
    %cst_21 = arith.constant dense<0.000000e+00> : vector<1x8xf32>
    %54 = vector.multi_reduction <add>, %53, %cst_21 [2] : vector<1x8x8xf32> to vector<1x8xf32>
    %55 = vector.shape_cast %54 : vector<1x8xf32> to vector<1x8x1xf32>
    %56 = tpu.reciprocal %55 {approx = true} : vector<1x8x1xf32> -> vector<1x8x1xf32>
    %57 = vector.broadcast %56 : vector<1x8x1xf32> to vector<1x8x8xf32>
    %58 = arith.mulf %53, %57 : vector<1x8x8xf32>
    %59 = arith.truncf %58 : vector<1x8x8xf32> to vector<1x8x8xbf16>
    "tpu.trace_start"() <{level = 10 : i32, message = "bqk,bkd->bqd"}> : () -> ()
    %cst_22 = arith.constant dense<0.000000e+00> : vector<1x8x8xf32>
    %60 = tpu.matmul %59, %46, %cst_22 {dimension_numbers = #tpu.dot_dimension_numbers<[2], [1], [1], [2], [0, 0, 0, 1, 1, 2], [0], [0]>} : vector<1x8x8xbf16>, vector<1x8x8xbf16>, vector<1x8x8xf32> -> vector<1x8x8xf32>
    "tpu.trace_stop"() : () -> ()
    %61 = vector.shape_cast %60 : vector<1x8x8xf32> to vector<8x8xf32>
    %c0_23 = arith.constant 0 : index
    %c8 = arith.constant 8 : index
    %62 = vector.load %arg21[%c0_23, %c8] : memref<8x32xf32, #tpu.memory_space<vmem>>, vector<8x8xf32>
    tpu.vector_store %arg21[%c0_23, %c8], %61 {strides = array<i32>} : memref<8x32xf32, #tpu.memory_space<vmem>>, vector<8x8xf32>,
    %63 = vector.extract_strided_slice %15 {offsets = [0, 16], sizes = [8, 8], strides = [1, 1]} : vector<8x32xbf16> to vector<8x8xbf16>
    %64 = vector.shape_cast %63 : vector<8x8xbf16> to vector<1x8x8xbf16>
    %65 = vector.extract_strided_slice %16 {offsets = [0, 16], sizes = [8, 8], strides = [1, 1]} : vector<8x64xbf16> to vector<8x8xbf16>
    %66 = vector.shape_cast %65 : vector<8x8xbf16> to vector<1x8x8xbf16>
    %67 = vector.extract_strided_slice %16 {offsets = [0, 48], sizes = [8, 8], strides = [1, 1]} : vector<8x64xbf16> to vector<8x8xbf16>
    %68 = vector.shape_cast %67 : vector<8x8xbf16> to vector<1x8x8xbf16>
    "tpu.trace_start"() <{level = 10 : i32, message = "bqd,bkd->bqk"}> : () -> ()
    %cst_24 = arith.constant dense<0.000000e+00> : vector<1x8x8xf32>
    %69 = tpu.matmul %64, %66, %cst_24 {dimension_numbers = #tpu.dot_dimension_numbers<[2], [2], [1], [1], [0, 0, 0, 1, 1, 1], [0], [0]>} : vector<1x8x8xbf16>, vector<1x8x8xbf16>, vector<1x8x8xf32> -> vector<1x8x8xf32>
    "tpu.trace_stop"() : () -> ()
    %70 = arith.addf %69, %6 : vector<1x8x8xf32>
    %cst_25 = arith.constant dense<0xFF800000> : vector<1x8xf32>
    %71 = vector.multi_reduction <maximumf>, %70, %cst_25 [2] : vector<1x8x8xf32> to vector<1x8xf32>
    %72 = vector.shape_cast %71 : vector<1x8xf32> to vector<1x8x1xf32>
    %73 = vector.broadcast %72 : vector<1x8x1xf32> to vector<1x8x8xf32>
    %74 = arith.subf %70, %73 : vector<1x8x8xf32>
    %75 = math.exp %74 : vector<1x8x8xf32>
    %cst_26 = arith.constant dense<0.000000e+00> : vector<1x8xf32>
    %76 = vector.multi_reduction <add>, %75, %cst_26 [2] : vector<1x8x8xf32> to vector<1x8xf32>
    %77 = vector.shape_cast %76 : vector<1x8xf32> to vector<1x8x1xf32>
    %78 = tpu.reciprocal %77 {approx = true} : vector<1x8x1xf32> -> vector<1x8x1xf32>
    %79 = vector.broadcast %78 : vector<1x8x1xf32> to vector<1x8x8xf32>
    %80 = arith.mulf %75, %79 : vector<1x8x8xf32>
    %81 = arith.truncf %80 : vector<1x8x8xf32> to vector<1x8x8xbf16>
    "tpu.trace_start"() <{level = 10 : i32, message = "bqk,bkd->bqd"}> : () -> ()
    %cst_27 = arith.constant dense<0.000000e+00> : vector<1x8x8xf32>
    %82 = tpu.matmul %81, %68, %cst_27 {dimension_numbers = #tpu.dot_dimension_numbers<[2], [1], [1], [2], [0, 0, 0, 1, 1, 2], [0], [0]>} : vector<1x8x8xbf16>, vector<1x8x8xbf16>, vector<1x8x8xf32> -> vector<1x8x8xf32>
    "tpu.trace_stop"() : () -> ()
    %83 = vector.shape_cast %82 : vector<1x8x8xf32> to vector<8x8xf32>
    %c0_28 = arith.constant 0 : index
    %c16 = arith.constant 16 : index
    %84 = vector.load %arg21[%c0_28, %c16] : memref<8x32xf32, #tpu.memory_space<vmem>>, vector<8x8xf32>
    tpu.vector_store %arg21[%c0_28, %c16], %83 {strides = array<i32>} : memref<8x32xf32, #tpu.memory_space<vmem>>, vector<8x8xf32>,
    %85 = vector.extract_strided_slice %15 {offsets = [0, 24], sizes = [8, 8], strides = [1, 1]} : vector<8x32xbf16> to vector<8x8xbf16>
    %86 = vector.shape_cast %85 : vector<8x8xbf16> to vector<1x8x8xbf16>
    %87 = vector.extract_strided_slice %16 {offsets = [0, 24], sizes = [8, 8], strides = [1, 1]} : vector<8x64xbf16> to vector<8x8xbf16>
    %88 = vector.shape_cast %87 : vector<8x8xbf16> to vector<1x8x8xbf16>
    %89 = vector.extract_strided_slice %16 {offsets = [0, 56], sizes = [8, 8], strides = [1, 1]} : vector<8x64xbf16> to vector<8x8xbf16>
    %90 = vector.shape_cast %89 : vector<8x8xbf16> to vector<1x8x8xbf16>
    "tpu.trace_start"() <{level = 10 : i32, message = "bqd,bkd->bqk"}> : () -> ()
    %cst_29 = arith.constant dense<0.000000e+00> : vector<1x8x8xf32>
    %91 = tpu.matmul %86, %88, %cst_29 {dimension_numbers = #tpu.dot_dimension_numbers<[2], [2], [1], [1], [0, 0, 0, 1, 1, 1], [0], [0]>} : vector<1x8x8xbf16>, vector<1x8x8xbf16>, vector<1x8x8xf32> -> vector<1x8x8xf32>
    "tpu.trace_stop"() : () -> ()
    %92 = arith.addf %91, %6 : vector<1x8x8xf32>
    %cst_30 = arith.constant dense<0xFF800000> : vector<1x8xf32>
    %93 = vector.multi_reduction <maximumf>, %92, %cst_30 [2] : vector<1x8x8xf32> to vector<1x8xf32>
    %94 = vector.shape_cast %93 : vector<1x8xf32> to vector<1x8x1xf32>
    %95 = vector.broadcast %94 : vector<1x8x1xf32> to vector<1x8x8xf32>
    %96 = arith.subf %92, %95 : vector<1x8x8xf32>
    %97 = math.exp %96 : vector<1x8x8xf32>
    %cst_31 = arith.constant dense<0.000000e+00> : vector<1x8xf32>
    %98 = vector.multi_reduction <add>, %97, %cst_31 [2] : vector<1x8x8xf32> to vector<1x8xf32>
    %99 = vector.shape_cast %98 : vector<1x8xf32> to vector<1x8x1xf32>
    %100 = tpu.reciprocal %99 {approx = true} : vector<1x8x1xf32> -> vector<1x8x1xf32>
    %101 = vector.broadcast %100 : vector<1x8x1xf32> to vector<1x8x8xf32>
    %102 = arith.mulf %97, %101 : vector<1x8x8xf32>
    %103 = arith.truncf %102 : vector<1x8x8xf32> to vector<1x8x8xbf16>
    "tpu.trace_start"() <{level = 10 : i32, message = "bqk,bkd->bqd"}> : () -> ()
    %cst_32 = arith.constant dense<0.000000e+00> : vector<1x8x8xf32>
    %104 = tpu.matmul %103, %90, %cst_32 {dimension_numbers = #tpu.dot_dimension_numbers<[2], [1], [1], [2], [0, 0, 0, 1, 1, 2], [0], [0]>} : vector<1x8x8xbf16>, vector<1x8x8xbf16>, vector<1x8x8xf32> -> vector<1x8x8xf32>
    "tpu.trace_stop"() : () -> ()
    %105 = vector.shape_cast %104 : vector<1x8x8xf32> to vector<8x8xf32>
    %c0_33 = arith.constant 0 : index
    %c24 = arith.constant 24 : index
    %106 = vector.load %arg21[%c0_33, %c24] : memref<8x32xf32, #tpu.memory_space<vmem>>, vector<8x8xf32>
    tpu.vector_store %arg21[%c0_33, %c24], %105 {strides = array<i32>} : memref<8x32xf32, #tpu.memory_space<vmem>>, vector<8x8xf32>,
    %c0_34 = arith.constant 0 : index
    %c0_35 = arith.constant 0 : index
    %107 = vector.load %arg21[%c0_34, %c0_35] : memref<8x32xf32, #tpu.memory_space<vmem>>, vector<8x32xf32>
    %108 = arith.truncf %107 : vector<8x32xf32> to vector<8x32xbf16>
    %c0_36 = arith.constant 0 : index
    %c0_37 = arith.constant 0 : index
    %109 = vector.load %arg6[%c0_36, %c0_37] : memref<32x32xbf16, #tpu.memory_space<vmem>>, vector<32x32xbf16>
    %cst_38 = arith.constant dense<0.000000e+00> : vector<8x32xf32>
    %110 = tpu.matmul %108, %109, %cst_38 {dimension_numbers = #tpu.dot_dimension_numbers<[1], [0], [0], [1], [0, 0, 1, 1], [], []>} : vector<8x32xbf16>, vector<32x32xbf16>, vector<8x32xf32> -> vector<8x32xf32>
    %111 = vector.shape_cast %18 : vector<32xf32> to vector<1x32xf32>
    %112 = vector.broadcast %111 : vector<1x32xf32> to vector<8x32xf32>
    %113 = arith.addf %110, %112 : vector<8x32xf32>
    %114 = arith.addf %2, %113 : vector<8x32xf32>
    %c0_39 = arith.constant 0 : index
    %c0_40 = arith.constant 0 : index
    %115 = vector.load %arg14[%c0_39, %c0_40] : memref<3x32xf32, #tpu.memory_space<vmem>>, vector<1x32xf32>
    %116 = vector.shape_cast %115 : vector<1x32xf32> to vector<32xf32>
    %c0_41 = arith.constant 0 : index
    %c0_42 = arith.constant 0 : index
    %117 = vector.load %arg15[%c0_41, %c0_42] : memref<3x32xf32, #tpu.memory_space<vmem>>, vector<1x32xf32>
    %118 = vector.shape_cast %117 : vector<1x32xf32> to vector<32xf32>
    %cst_43 = arith.constant dense<0.000000e+00> : vector<8xf32>
    %119 = vector.multi_reduction <add>, %114, %cst_43 [1] : vector<8x32xf32> to vector<8xf32>
    %120 = vector.shape_cast %119 : vector<8xf32> to vector<8x1xf32>
    %cst_44 = arith.constant 3.200000e+01 : f32
    %121 = vector.broadcast %cst_44 : f32 to vector<8x1xf32>
    %122 = arith.divf %120, %121 : vector<8x1xf32>
    %123 = vector.broadcast %122 : vector<8x1xf32> to vector<8x32xf32>
    %124 = arith.subf %114, %123 : vector<8x32xf32>
    %125 = arith.mulf %124, %124 : vector<8x32xf32>
    %cst_45 = arith.constant dense<0.000000e+00> : vector<8xf32>
    %126 = vector.multi_reduction <add>, %125, %cst_45 [1] : vector<8x32xf32> to vector<8xf32>
    %127 = vector.shape_cast %126 : vector<8xf32> to vector<8x1xf32>
    %cst_46 = arith.constant 3.200000e+01 : f32
    %128 = vector.broadcast %cst_46 : f32 to vector<8x1xf32>
    %129 = arith.divf %127, %128 : vector<8x1xf32>
    %cst_47 = arith.constant 9.99999974E-6 : f32
    %130 = vector.broadcast %cst_47 : f32 to vector<8x1xf32>
    %131 = arith.addf %129, %130 : vector<8x1xf32>
    %132 = math.rsqrt %131 : vector<8x1xf32>
    %133 = vector.broadcast %132 : vector<8x1xf32> to vector<8x32xf32>
    %134 = arith.mulf %124, %133 : vector<8x32xf32>
    %135 = vector.shape_cast %116 : vector<32xf32> to vector<1x32xf32>
    %136 = vector.broadcast %135 : vector<1x32xf32> to vector<8x32xf32>
    %137 = arith.mulf %134, %136 : vector<8x32xf32>
    %138 = vector.shape_cast %118 : vector<32xf32> to vector<1x32xf32>
    %139 = vector.broadcast %138 : vector<1x32xf32> to vector<8x32xf32>
    %140 = arith.addf %137, %139 : vector<8x32xf32>
    %141 = arith.truncf %140 : vector<8x32xf32> to vector<8x32xbf16>
    %c0_48 = arith.constant 0 : index
    %c0_49 = arith.constant 0 : index
    %142 = vector.load %arg8[%c0_48, %c0_49] : memref<32x32xbf16, #tpu.memory_space<vmem>>, vector<32x32xbf16>
    %cst_50 = arith.constant dense<0.000000e+00> : vector<8x32xf32>
    %143 = tpu.matmul %141, %142, %cst_50 {dimension_numbers = #tpu.dot_dimension_numbers<[1], [0], [0], [1], [0, 0, 1, 1], [], []>} : vector<8x32xbf16>, vector<32x32xbf16>, vector<8x32xf32> -> vector<8x32xf32>
    %c0_51 = arith.constant 0 : index
    %c0_52 = arith.constant 0 : index
    %144 = vector.load %arg9[%c0_51, %c0_52] : memref<1x32xf32, #tpu.memory_space<vmem>>, vector<1x32xf32>
    %145 = vector.shape_cast %144 : vector<1x32xf32> to vector<32xf32>
    %146 = vector.shape_cast %145 : vector<32xf32> to vector<1x32xf32>
    %147 = vector.broadcast %146 : vector<1x32xf32> to vector<8x32xf32>
    %148 = arith.addf %143, %147 : vector<8x32xf32>
    %149 = arith.truncf %148 : vector<8x32xf32> to vector<8x32xbf16>
    %c0_53 = arith.constant 0 : index
    %c0_54 = arith.constant 0 : index
    %150 = vector.load %arg10[%c0_53, %c0_54] : memref<32x64xbf16, #tpu.memory_space<vmem>>, vector<32x64xbf16>
    %cst_55 = arith.constant dense<0.000000e+00> : vector<8x64xf32>
    %151 = tpu.matmul %4, %150, %cst_55 {dimension_numbers = #tpu.dot_dimension_numbers<[1], [0], [0], [1], [0, 0, 1, 1], [], []>} : vector<8x32xbf16>, vector<32x64xbf16>, vector<8x64xf32> -> vector<8x64xf32>
    %c0_56 = arith.constant 0 : index
    %c0_57 = arith.constant 0 : index
    %152 = vector.load %arg11[%c0_56, %c0_57] : memref<1x64xf32, #tpu.memory_space<vmem>>, vector<1x64xf32>
    %153 = vector.shape_cast %152 : vector<1x64xf32> to vector<64xf32>
    %154 = vector.shape_cast %153 : vector<64xf32> to vector<1x64xf32>
    %155 = vector.broadcast %154 : vector<1x64xf32> to vector<8x64xf32>
    %156 = arith.addf %151, %155 : vector<8x64xf32>
    %157 = arith.truncf %156 : vector<8x64xf32> to vector<8x64xbf16>
    %c0_58 = arith.constant 0 : index
    %c0_59 = arith.constant 0 : index
    %158 = vector.load %arg13[%c0_58, %c0_59] : memref<1x32xf32, #tpu.memory_space<vmem>>, vector<1x32xf32>
    %159 = vector.shape_cast %158 : vector<1x32xf32> to vector<32xf32>
    %160 = vector.extract_strided_slice %149 {offsets = [0, 0], sizes = [8, 8], strides = [1, 1]} : vector<8x32xbf16> to vector<8x8xbf16>
    %161 = vector.shape_cast %160 : vector<8x8xbf16> to vector<1x8x8xbf16>
    %162 = vector.extract_strided_slice %157 {offsets = [0, 0], sizes = [8, 8], strides = [1, 1]} : vector<8x64xbf16> to vector<8x8xbf16>
    %163 = vector.shape_cast %162 : vector<8x8xbf16> to vector<1x8x8xbf16>
    %164 = vector.extract_strided_slice %157 {offsets = [0, 32], sizes = [8, 8], strides = [1, 1]} : vector<8x64xbf16> to vector<8x8xbf16>
    %165 = vector.shape_cast %164 : vector<8x8xbf16> to vector<1x8x8xbf16>
    "tpu.trace_start"() <{level = 10 : i32, message = "bqd,bkd->bqk"}> : () -> ()
    %cst_60 = arith.constant dense<0.000000e+00> : vector<1x8x8xf32>
    %166 = tpu.matmul %161, %163, %cst_60 {dimension_numbers = #tpu.dot_dimension_numbers<[2], [2], [1], [1], [0, 0, 0, 1, 1, 1], [0], [0]>} : vector<1x8x8xbf16>, vector<1x8x8xbf16>, vector<1x8x8xf32> -> vector<1x8x8xf32>
    "tpu.trace_stop"() : () -> ()
    %cst_61 = arith.constant dense<0xFF800000> : vector<1x8xf32>
    %167 = vector.multi_reduction <maximumf>, %166, %cst_61 [2] : vector<1x8x8xf32> to vector<1x8xf32>
    %168 = vector.shape_cast %167 : vector<1x8xf32> to vector<1x8x1xf32>
    %169 = vector.broadcast %168 : vector<1x8x1xf32> to vector<1x8x8xf32>
    %170 = arith.subf %166, %169 : vector<1x8x8xf32>
    %171 = math.exp %170 : vector<1x8x8xf32>
    %cst_62 = arith.constant dense<0.000000e+00> : vector<1x8xf32>
    %172 = vector.multi_reduction <add>, %171, %cst_62 [2] : vector<1x8x8xf32> to vector<1x8xf32>
    %173 = vector.shape_cast %172 : vector<1x8xf32> to vector<1x8x1xf32>
    %174 = tpu.reciprocal %173 {approx = true} : vector<1x8x1xf32> -> vector<1x8x1xf32>
    %175 = vector.broadcast %174 : vector<1x8x1xf32> to vector<1x8x8xf32>
    %176 = arith.mulf %171, %175 : vector<1x8x8xf32>
    %177 = arith.truncf %176 : vector<1x8x8xf32> to vector<1x8x8xbf16>
    "tpu.trace_start"() <{level = 10 : i32, message = "bqk,bkd->bqd"}> : () -> ()
    %cst_63 = arith.constant dense<0.000000e+00> : vector<1x8x8xf32>
    %178 = tpu.matmul %177, %165, %cst_63 {dimension_numbers = #tpu.dot_dimension_numbers<[2], [1], [1], [2], [0, 0, 0, 1, 1, 2], [0], [0]>} : vector<1x8x8xbf16>, vector<1x8x8xbf16>, vector<1x8x8xf32> -> vector<1x8x8xf32>
    "tpu.trace_stop"() : () -> ()
    %179 = vector.shape_cast %178 : vector<1x8x8xf32> to vector<8x8xf32>
    %c0_64 = arith.constant 0 : index
    %c0_65 = arith.constant 0 : index
    %180 = vector.load %arg21[%c0_64, %c0_65] : memref<8x32xf32, #tpu.memory_space<vmem>>, vector<8x8xf32>
    tpu.vector_store %arg21[%c0_64, %c0_65], %179 {strides = array<i32>} : memref<8x32xf32, #tpu.memory_space<vmem>>, vector<8x8xf32>,
    %181 = vector.extract_strided_slice %149 {offsets = [0, 8], sizes = [8, 8], strides = [1, 1]} : vector<8x32xbf16> to vector<8x8xbf16>
    %182 = vector.shape_cast %181 : vector<8x8xbf16> to vector<1x8x8xbf16>
    %183 = vector.extract_strided_slice %157 {offsets = [0, 8], sizes = [8, 8], strides = [1, 1]} : vector<8x64xbf16> to vector<8x8xbf16>
    %184 = vector.shape_cast %183 : vector<8x8xbf16> to vector<1x8x8xbf16>
    %185 = vector.extract_strided_slice %157 {offsets = [0, 40], sizes = [8, 8], strides = [1, 1]} : vector<8x64xbf16> to vector<8x8xbf16>
    %186 = vector.shape_cast %185 : vector<8x8xbf16> to vector<1x8x8xbf16>
    "tpu.trace_start"() <{level = 10 : i32, message = "bqd,bkd->bqk"}> : () -> ()
    %cst_66 = arith.constant dense<0.000000e+00> : vector<1x8x8xf32>
    %187 = tpu.matmul %182, %184, %cst_66 {dimension_numbers = #tpu.dot_dimension_numbers<[2], [2], [1], [1], [0, 0, 0, 1, 1, 1], [0], [0]>} : vector<1x8x8xbf16>, vector<1x8x8xbf16>, vector<1x8x8xf32> -> vector<1x8x8xf32>
    "tpu.trace_stop"() : () -> ()
    %cst_67 = arith.constant dense<0xFF800000> : vector<1x8xf32>
    %188 = vector.multi_reduction <maximumf>, %187, %cst_67 [2] : vector<1x8x8xf32> to vector<1x8xf32>
    %189 = vector.shape_cast %188 : vector<1x8xf32> to vector<1x8x1xf32>
    %190 = vector.broadcast %189 : vector<1x8x1xf32> to vector<1x8x8xf32>
    %191 = arith.subf %187, %190 : vector<1x8x8xf32>
    %192 = math.exp %191 : vector<1x8x8xf32>
    %cst_68 = arith.constant dense<0.000000e+00> : vector<1x8xf32>
    %193 = vector.multi_reduction <add>, %192, %cst_68 [2] : vector<1x8x8xf32> to vector<1x8xf32>
    %194 = vector.shape_cast %193 : vector<1x8xf32> to vector<1x8x1xf32>
    %195 = tpu.reciprocal %194 {approx = true} : vector<1x8x1xf32> -> vector<1x8x1xf32>
    %196 = vector.broadcast %195 : vector<1x8x1xf32> to vector<1x8x8xf32>
    %197 = arith.mulf %192, %196 : vector<1x8x8xf32>
    %198 = arith.truncf %197 : vector<1x8x8xf32> to vector<1x8x8xbf16>
    "tpu.trace_start"() <{level = 10 : i32, message = "bqk,bkd->bqd"}> : () -> ()
    %cst_69 = arith.constant dense<0.000000e+00> : vector<1x8x8xf32>
    %199 = tpu.matmul %198, %186, %cst_69 {dimension_numbers = #tpu.dot_dimension_numbers<[2], [1], [1], [2], [0, 0, 0, 1, 1, 2], [0], [0]>} : vector<1x8x8xbf16>, vector<1x8x8xbf16>, vector<1x8x8xf32> -> vector<1x8x8xf32>
    "tpu.trace_stop"() : () -> ()
    %200 = vector.shape_cast %199 : vector<1x8x8xf32> to vector<8x8xf32>
    %c0_70 = arith.constant 0 : index
    %c8_71 = arith.constant 8 : index
    %201 = vector.load %arg21[%c0_70, %c8_71] : memref<8x32xf32, #tpu.memory_space<vmem>>, vector<8x8xf32>
    tpu.vector_store %arg21[%c0_70, %c8_71], %200 {strides = array<i32>} : memref<8x32xf32, #tpu.memory_space<vmem>>, vector<8x8xf32>,
    %202 = vector.extract_strided_slice %149 {offsets = [0, 16], sizes = [8, 8], strides = [1, 1]} : vector<8x32xbf16> to vector<8x8xbf16>
    %203 = vector.shape_cast %202 : vector<8x8xbf16> to vector<1x8x8xbf16>
    %204 = vector.extract_strided_slice %157 {offsets = [0, 16], sizes = [8, 8], strides = [1, 1]} : vector<8x64xbf16> to vector<8x8xbf16>
    %205 = vector.shape_cast %204 : vector<8x8xbf16> to vector<1x8x8xbf16>
    %206 = vector.extract_strided_slice %157 {offsets = [0, 48], sizes = [8, 8], strides = [1, 1]} : vector<8x64xbf16> to vector<8x8xbf16>
    %207 = vector.shape_cast %206 : vector<8x8xbf16> to vector<1x8x8xbf16>
    "tpu.trace_start"() <{level = 10 : i32, message = "bqd,bkd->bqk"}> : () -> ()
    %cst_72 = arith.constant dense<0.000000e+00> : vector<1x8x8xf32>
    %208 = tpu.matmul %203, %205, %cst_72 {dimension_numbers = #tpu.dot_dimension_numbers<[2], [2], [1], [1], [0, 0, 0, 1, 1, 1], [0], [0]>} : vector<1x8x8xbf16>, vector<1x8x8xbf16>, vector<1x8x8xf32> -> vector<1x8x8xf32>
    "tpu.trace_stop"() : () -> ()
    %cst_73 = arith.constant dense<0xFF800000> : vector<1x8xf32>
    %209 = vector.multi_reduction <maximumf>, %208, %cst_73 [2] : vector<1x8x8xf32> to vector<1x8xf32>
    %210 = vector.shape_cast %209 : vector<1x8xf32> to vector<1x8x1xf32>
    %211 = vector.broadcast %210 : vector<1x8x1xf32> to vector<1x8x8xf32>
    %212 = arith.subf %208, %211 : vector<1x8x8xf32>
    %213 = math.exp %212 : vector<1x8x8xf32>
    %cst_74 = arith.constant dense<0.000000e+00> : vector<1x8xf32>
    %214 = vector.multi_reduction <add>, %213, %cst_74 [2] : vector<1x8x8xf32> to vector<1x8xf32>
    %215 = vector.shape_cast %214 : vector<1x8xf32> to vector<1x8x1xf32>
    %216 = tpu.reciprocal %215 {approx = true} : vector<1x8x1xf32> -> vector<1x8x1xf32>
    %217 = vector.broadcast %216 : vector<1x8x1xf32> to vector<1x8x8xf32>
    %218 = arith.mulf %213, %217 : vector<1x8x8xf32>
    %219 = arith.truncf %218 : vector<1x8x8xf32> to vector<1x8x8xbf16>
    "tpu.trace_start"() <{level = 10 : i32, message = "bqk,bkd->bqd"}> : () -> ()
    %cst_75 = arith.constant dense<0.000000e+00> : vector<1x8x8xf32>
    %220 = tpu.matmul %219, %207, %cst_75 {dimension_numbers = #tpu.dot_dimension_numbers<[2], [1], [1], [2], [0, 0, 0, 1, 1, 2], [0], [0]>} : vector<1x8x8xbf16>, vector<1x8x8xbf16>, vector<1x8x8xf32> -> vector<1x8x8xf32>
    "tpu.trace_stop"() : () -> ()
    %221 = vector.shape_cast %220 : vector<1x8x8xf32> to vector<8x8xf32>
    %c0_76 = arith.constant 0 : index
    %c16_77 = arith.constant 16 : index
    %222 = vector.load %arg21[%c0_76, %c16_77] : memref<8x32xf32, #tpu.memory_space<vmem>>, vector<8x8xf32>
    tpu.vector_store %arg21[%c0_76, %c16_77], %221 {strides = array<i32>} : memref<8x32xf32, #tpu.memory_space<vmem>>, vector<8x8xf32>,
    %223 = vector.extract_strided_slice %149 {offsets = [0, 24], sizes = [8, 8], strides = [1, 1]} : vector<8x32xbf16> to vector<8x8xbf16>
    %224 = vector.shape_cast %223 : vector<8x8xbf16> to vector<1x8x8xbf16>
    %225 = vector.extract_strided_slice %157 {offsets = [0, 24], sizes = [8, 8], strides = [1, 1]} : vector<8x64xbf16> to vector<8x8xbf16>
    %226 = vector.shape_cast %225 : vector<8x8xbf16> to vector<1x8x8xbf16>
    %227 = vector.extract_strided_slice %157 {offsets = [0, 56], sizes = [8, 8], strides = [1, 1]} : vector<8x64xbf16> to vector<8x8xbf16>
    %228 = vector.shape_cast %227 : vector<8x8xbf16> to vector<1x8x8xbf16>
    "tpu.trace_start"() <{level = 10 : i32, message = "bqd,bkd->bqk"}> : () -> ()
    %cst_78 = arith.constant dense<0.000000e+00> : vector<1x8x8xf32>
    %229 = tpu.matmul %224, %226, %cst_78 {dimension_numbers = #tpu.dot_dimension_numbers<[2], [2], [1], [1], [0, 0, 0, 1, 1, 1], [0], [0]>} : vector<1x8x8xbf16>, vector<1x8x8xbf16>, vector<1x8x8xf32> -> vector<1x8x8xf32>
    "tpu.trace_stop"() : () -> ()
    %cst_79 = arith.constant dense<0xFF800000> : vector<1x8xf32>
    %230 = vector.multi_reduction <maximumf>, %229, %cst_79 [2] : vector<1x8x8xf32> to vector<1x8xf32>
    %231 = vector.shape_cast %230 : vector<1x8xf32> to vector<1x8x1xf32>
    %232 = vector.broadcast %231 : vector<1x8x1xf32> to vector<1x8x8xf32>
    %233 = arith.subf %229, %232 : vector<1x8x8xf32>
    %234 = math.exp %233 : vector<1x8x8xf32>
    %cst_80 = arith.constant dense<0.000000e+00> : vector<1x8xf32>
    %235 = vector.multi_reduction <add>, %234, %cst_80 [2] : vector<1x8x8xf32> to vector<1x8xf32>
    %236 = vector.shape_cast %235 : vector<1x8xf32> to vector<1x8x1xf32>
    %237 = tpu.reciprocal %236 {approx = true} : vector<1x8x1xf32> -> vector<1x8x1xf32>
    %238 = vector.broadcast %237 : vector<1x8x1xf32> to vector<1x8x8xf32>
    %239 = arith.mulf %234, %238 : vector<1x8x8xf32>
    %240 = arith.truncf %239 : vector<1x8x8xf32> to vector<1x8x8xbf16>
    "tpu.trace_start"() <{level = 10 : i32, message = "bqk,bkd->bqd"}> : () -> ()
    %cst_81 = arith.constant dense<0.000000e+00> : vector<1x8x8xf32>
    %241 = tpu.matmul %240, %228, %cst_81 {dimension_numbers = #tpu.dot_dimension_numbers<[2], [1], [1], [2], [0, 0, 0, 1, 1, 2], [0], [0]>} : vector<1x8x8xbf16>, vector<1x8x8xbf16>, vector<1x8x8xf32> -> vector<1x8x8xf32>
    "tpu.trace_stop"() : () -> ()
    %242 = vector.shape_cast %241 : vector<1x8x8xf32> to vector<8x8xf32>
    %c0_82 = arith.constant 0 : index
    %c24_83 = arith.constant 24 : index
    %243 = vector.load %arg21[%c0_82, %c24_83] : memref<8x32xf32, #tpu.memory_space<vmem>>, vector<8x8xf32>
    tpu.vector_store %arg21[%c0_82, %c24_83], %242 {strides = array<i32>} : memref<8x32xf32, #tpu.memory_space<vmem>>, vector<8x8xf32>,
    %c0_84 = arith.constant 0 : index
    %c0_85 = arith.constant 0 : index
    %244 = vector.load %arg21[%c0_84, %c0_85] : memref<8x32xf32, #tpu.memory_space<vmem>>, vector<8x32xf32>
    %245 = arith.truncf %244 : vector<8x32xf32> to vector<8x32xbf16>
    %c0_86 = arith.constant 0 : index
    %c0_87 = arith.constant 0 : index
    %246 = vector.load %arg12[%c0_86, %c0_87] : memref<32x32xbf16, #tpu.memory_space<vmem>>, vector<32x32xbf16>
    %cst_88 = arith.constant dense<0.000000e+00> : vector<8x32xf32>
    %247 = tpu.matmul %245, %246, %cst_88 {dimension_numbers = #tpu.dot_dimension_numbers<[1], [0], [0], [1], [0, 0, 1, 1], [], []>} : vector<8x32xbf16>, vector<32x32xbf16>, vector<8x32xf32> -> vector<8x32xf32>
    %248 = vector.shape_cast %159 : vector<32xf32> to vector<1x32xf32>
    %249 = vector.broadcast %248 : vector<1x32xf32> to vector<8x32xf32>
    %250 = arith.addf %247, %249 : vector<8x32xf32>
    %251 = arith.addf %140, %250 : vector<8x32xf32>
    %c1 = arith.constant 1 : index
    %c0_89 = arith.constant 0 : index
    %252 = vector.load %arg14[%c1, %c0_89] : memref<3x32xf32, #tpu.memory_space<vmem>>, vector<1x32xf32>
    %253 = vector.shape_cast %252 : vector<1x32xf32> to vector<32xf32>
    %c1_90 = arith.constant 1 : index
    %c0_91 = arith.constant 0 : index
    %254 = vector.load %arg15[%c1_90, %c0_91] : memref<3x32xf32, #tpu.memory_space<vmem>>, vector<1x32xf32>
    %255 = vector.shape_cast %254 : vector<1x32xf32> to vector<32xf32>
    %cst_92 = arith.constant dense<0.000000e+00> : vector<8xf32>
    %256 = vector.multi_reduction <add>, %251, %cst_92 [1] : vector<8x32xf32> to vector<8xf32>
    %257 = vector.shape_cast %256 : vector<8xf32> to vector<8x1xf32>
    %cst_93 = arith.constant 3.200000e+01 : f32
    %258 = vector.broadcast %cst_93 : f32 to vector<8x1xf32>
    %259 = arith.divf %257, %258 : vector<8x1xf32>
    %260 = vector.broadcast %259 : vector<8x1xf32> to vector<8x32xf32>
    %261 = arith.subf %251, %260 : vector<8x32xf32>
    %262 = arith.mulf %261, %261 : vector<8x32xf32>
    %cst_94 = arith.constant dense<0.000000e+00> : vector<8xf32>
    %263 = vector.multi_reduction <add>, %262, %cst_94 [1] : vector<8x32xf32> to vector<8xf32>
    %264 = vector.shape_cast %263 : vector<8xf32> to vector<8x1xf32>
    %cst_95 = arith.constant 3.200000e+01 : f32
    %265 = vector.broadcast %cst_95 : f32 to vector<8x1xf32>
    %266 = arith.divf %264, %265 : vector<8x1xf32>
    %cst_96 = arith.constant 9.99999974E-6 : f32
    %267 = vector.broadcast %cst_96 : f32 to vector<8x1xf32>
    %268 = arith.addf %266, %267 : vector<8x1xf32>
    %269 = math.rsqrt %268 : vector<8x1xf32>
    %270 = vector.broadcast %269 : vector<8x1xf32> to vector<8x32xf32>
    %271 = arith.mulf %261, %270 : vector<8x32xf32>
    %272 = vector.shape_cast %253 : vector<32xf32> to vector<1x32xf32>
    %273 = vector.broadcast %272 : vector<1x32xf32> to vector<8x32xf32>
    %274 = arith.mulf %271, %273 : vector<8x32xf32>
    %275 = vector.shape_cast %255 : vector<32xf32> to vector<1x32xf32>
    %276 = vector.broadcast %275 : vector<1x32xf32> to vector<8x32xf32>
    %277 = arith.addf %274, %276 : vector<8x32xf32>
    %278 = arith.truncf %277 : vector<8x32xf32> to vector<8x32xbf16>
    %c0_97 = arith.constant 0 : index
    %c0_98 = arith.constant 0 : index
    %279 = vector.load %arg16[%c0_97, %c0_98] : memref<32x64xbf16, #tpu.memory_space<vmem>>, vector<32x64xbf16>
    %cst_99 = arith.constant dense<0.000000e+00> : vector<8x64xf32>
    %280 = tpu.matmul %278, %279, %cst_99 {dimension_numbers = #tpu.dot_dimension_numbers<[1], [0], [0], [1], [0, 0, 1, 1], [], []>} : vector<8x32xbf16>, vector<32x64xbf16>, vector<8x64xf32> -> vector<8x64xf32>
    %c0_100 = arith.constant 0 : index
    %c0_101 = arith.constant 0 : index
    %281 = vector.load %arg17[%c0_100, %c0_101] : memref<1x64xf32, #tpu.memory_space<vmem>>, vector<1x64xf32>
    %282 = vector.shape_cast %281 : vector<1x64xf32> to vector<64xf32>
    %283 = vector.shape_cast %282 : vector<64xf32> to vector<1x64xf32>
    %284 = vector.broadcast %283 : vector<1x64xf32> to vector<8x64xf32>
    %285 = arith.addf %280, %284 : vector<8x64xf32>
    %cst_102 = arith.constant 0.000000e+00 : f32
    %286 = vector.broadcast %cst_102 : f32 to vector<8x64xf32>
    %287 = arith.maximumf %285, %286 : vector<8x64xf32>
    %288 = arith.truncf %287 : vector<8x64xf32> to vector<8x64xbf16>
    %c0_103 = arith.constant 0 : index
    %c0_104 = arith.constant 0 : index
    %289 = vector.load %arg18[%c0_103, %c0_104] : memref<64x32xbf16, #tpu.memory_space<vmem>>, vector<64x32xbf16>
    %cst_105 = arith.constant dense<0.000000e+00> : vector<8x32xf32>
    %290 = tpu.matmul %288, %289, %cst_105 {dimension_numbers = #tpu.dot_dimension_numbers<[1], [0], [0], [1], [0, 0, 1, 1], [], []>} : vector<8x64xbf16>, vector<64x32xbf16>, vector<8x32xf32> -> vector<8x32xf32>
    %c0_106 = arith.constant 0 : index
    %c0_107 = arith.constant 0 : index
    %291 = vector.load %arg19[%c0_106, %c0_107] : memref<1x32xf32, #tpu.memory_space<vmem>>, vector<1x32xf32>
    %292 = vector.shape_cast %291 : vector<1x32xf32> to vector<32xf32>
    %293 = vector.shape_cast %292 : vector<32xf32> to vector<1x32xf32>
    %294 = vector.broadcast %293 : vector<1x32xf32> to vector<8x32xf32>
    %295 = arith.addf %290, %294 : vector<8x32xf32>
    %296 = arith.addf %277, %295 : vector<8x32xf32>
    %c2 = arith.constant 2 : index
    %c0_108 = arith.constant 0 : index
    %297 = vector.load %arg14[%c2, %c0_108] : memref<3x32xf32, #tpu.memory_space<vmem>>, vector<1x32xf32>
    %298 = vector.shape_cast %297 : vector<1x32xf32> to vector<32xf32>
    %c2_109 = arith.constant 2 : index
    %c0_110 = arith.constant 0 : index
    %299 = vector.load %arg15[%c2_109, %c0_110] : memref<3x32xf32, #tpu.memory_space<vmem>>, vector<1x32xf32>
    %300 = vector.shape_cast %299 : vector<1x32xf32> to vector<32xf32>
    %cst_111 = arith.constant dense<0.000000e+00> : vector<8xf32>
    %301 = vector.multi_reduction <add>, %296, %cst_111 [1] : vector<8x32xf32> to vector<8xf32>
    %302 = vector.shape_cast %301 : vector<8xf32> to vector<8x1xf32>
    %cst_112 = arith.constant 3.200000e+01 : f32
    %303 = vector.broadcast %cst_112 : f32 to vector<8x1xf32>
    %304 = arith.divf %302, %303 : vector<8x1xf32>
    %305 = vector.broadcast %304 : vector<8x1xf32> to vector<8x32xf32>
    %306 = arith.subf %296, %305 : vector<8x32xf32>
    %307 = arith.mulf %306, %306 : vector<8x32xf32>
    %cst_113 = arith.constant dense<0.000000e+00> : vector<8xf32>
    %308 = vector.multi_reduction <add>, %307, %cst_113 [1] : vector<8x32xf32> to vector<8xf32>
    %309 = vector.shape_cast %308 : vector<8xf32> to vector<8x1xf32>
    %cst_114 = arith.constant 3.200000e+01 : f32
    %310 = vector.broadcast %cst_114 : f32 to vector<8x1xf32>
    %311 = arith.divf %309, %310 : vector<8x1xf32>
    %cst_115 = arith.constant 9.99999974E-6 : f32
    %312 = vector.broadcast %cst_115 : f32 to vector<8x1xf32>
    %313 = arith.addf %311, %312 : vector<8x1xf32>
    %314 = math.rsqrt %313 : vector<8x1xf32>
    %315 = vector.broadcast %314 : vector<8x1xf32> to vector<8x32xf32>
    %316 = arith.mulf %306, %315 : vector<8x32xf32>
    %317 = vector.shape_cast %298 : vector<32xf32> to vector<1x32xf32>
    %318 = vector.broadcast %317 : vector<1x32xf32> to vector<8x32xf32>
    %319 = arith.mulf %316, %318 : vector<8x32xf32>
    %320 = vector.shape_cast %300 : vector<32xf32> to vector<1x32xf32>
    %321 = vector.broadcast %320 : vector<1x32xf32> to vector<8x32xf32>
    %322 = arith.addf %319, %321 : vector<8x32xf32>
    %323 = vector.shape_cast %322 : vector<8x32xf32> to vector<1x8x32xf32>
    %c0_116 = arith.constant 0 : index
    %c0_117 = arith.constant 0 : index
    %c0_118 = arith.constant 0 : index
    %324 = vector.load %arg20[%c0_116, %c0_117, %c0_118] : memref<1x8x32xf32, #tpu.memory_space<vmem>>, vector<1x8x32xf32>
    tpu.vector_store %arg20[%c0_116, %c0_117, %c0_118], %323 {strides = array<i32>} : memref<1x8x32xf32, #tpu.memory_space<vmem>>, vector<1x8x32xf32>,
    return
  }
  func.func @transform_0(%arg0: i32) -> (i32, i32, i32) {
    %c0_i32 = arith.constant 0 : i32
    %c0_i32_0 = arith.constant 0 : i32
    %c0_i32_1 = arith.constant 0 : i32
    return %arg0, %c0_i32, %c0_i32_0 : i32, i32, i32
  }
  func.func @transform_1(%arg0: i32) -> (i32, i32, i32) {
    %c0_i32 = arith.constant 0 : i32
    %c0_i32_0 = arith.constant 0 : i32
    %c0_i32_1 = arith.constant 0 : i32
    return %arg0, %c0_i32, %c0_i32_0 : i32, i32, i32
  }
  func.func @transform_2(%arg0: i32) -> (i32, i32) {
    %c0_i32 = arith.constant 0 : i32
    %c0_i32_0 = arith.constant 0 : i32
    %c0_i32_1 = arith.constant 0 : i32
    return %c0_i32, %c0_i32_0 : i32, i32
  }
  func.func @transform_3(%arg0: i32) -> (i32, i32) {
    %c0_i32 = arith.constant 0 : i32
    %c0_i32_0 = arith.constant 0 : i32
    %c0_i32_1 = arith.constant 0 : i32
    return %c0_i32, %c0_i32_0 : i32, i32
  }
  func.func @transform_4(%arg0: i32) -> (i32, i32) {
    %c0_i32 = arith.constant 0 : i32
    %c0_i32_0 = arith.constant 0 : i32
    %c0_i32_1 = arith.constant 0 : i32
    return %c0_i32, %c0_i32_0 : i32, i32
  }
  func.func @transform_5(%arg0: i32) -> (i32, i32) {
    %c0_i32 = arith.constant 0 : i32
    %c0_i32_0 = arith.constant 0 : i32
    %c0_i32_1 = arith.constant 0 : i32
    return %c0_i32, %c0_i32_0 : i32, i32
  }
  func.func @transform_6(%arg0: i32) -> (i32, i32) {
    %c0_i32 = arith.constant 0 : i32
    %c0_i32_0 = arith.constant 0 : i32
    %c0_i32_1 = arith.constant 0 : i32
    return %c0_i32, %c0_i32_0 : i32, i32
  }
  func.func @transform_7(%arg0: i32) -> (i32, i32) {
    %c0_i32 = arith.constant 0 : i32
    %c0_i32_0 = arith.constant 0 : i32
    %c0_i32_1 = arith.constant 0 : i32
    return %c0_i32, %c0_i32_0 : i32, i32
  }
  func.func @transform_8(%arg0: i32) -> (i32, i32) {
    %c0_i32 = arith.constant 0 : i32
    %c0_i32_0 = arith.constant 0 : i32
    %c0_i32_1 = arith.constant 0 : i32
    return %c0_i32, %c0_i32_0 : i32, i32
  }
  func.func @transform_9(%arg0: i32) -> (i32, i32) {
    %c0_i32 = arith.constant 0 : i32
    %c0_i32_0 = arith.constant 0 : i32
    %c0_i32_1 = arith.constant 0 : i32
    return %c0_i32, %c0_i32_0 : i32, i32
  }
  func.func @transform_10(%arg0: i32) -> (i32, i32) {
    %c0_i32 = arith.constant 0 : i32
    %c0_i32_0 = arith.constant 0 : i32
    %c0_i32_1 = arith.constant 0 : i32
    return %c0_i32, %c0_i32_0 : i32, i32
  }
  func.func @transform_11(%arg0: i32) -> (i32, i32) {
    %c0_i32 = arith.constant 0 : i32
    %c0_i32_0 = arith.constant 0 : i32
    %c0_i32_1 = arith.constant 0 : i32
    return %c0_i32, %c0_i32_0 : i32, i32
  }
  func.func @transform_12(%arg0: i32) -> (i32, i32) {
    %c0_i32 = arith.constant 0 : i32
    %c0_i32_0 = arith.constant 0 : i32
    %c0_i32_1 = arith.constant 0 : i32
    return %c0_i32, %c0_i32_0 : i32, i32
  }
  func.func @transform_13(%arg0: i32) -> (i32, i32) {
    %c0_i32 = arith.constant 0 : i32
    %c0_i32_0 = arith.constant 0 : i32
    %c0_i32_1 = arith.constant 0 : i32
    return %c0_i32, %c0_i32_0 : i32, i32
  }
  func.func @transform_14(%arg0: i32) -> (i32, i32) {
    %c0_i32 = arith.constant 0 : i32
    %c0_i32_0 = arith.constant 0 : i32
    %c0_i32_1 = arith.constant 0 : i32
    return %c0_i32, %c0_i32_0 : i32, i32
  }
  func.func @transform_15(%arg0: i32) -> (i32, i32) {
    %c0_i32 = arith.constant 0 : i32
    %c0_i32_0 = arith.constant 0 : i32
    %c0_i32_1 = arith.constant 0 : i32
    return %c0_i32, %c0_i32_0 : i32, i32
  }
  func.func @transform_16(%arg0: i32) -> (i32, i32) {
    %c0_i32 = arith.constant 0 : i32
    %c0_i32_0 = arith.constant 0 : i32
    %c0_i32_1 = arith.constant 0 : i32
    return %c0_i32, %c0_i32_0 : i32, i32
  }
  func.func @transform_17(%arg0: i32) -> (i32, i32) {
    %c0_i32 = arith.constant 0 : i32
    %c0_i32_0 = arith.constant 0 : i32
    %c0_i32_1 = arith.constant 0 : i32
    return %c0_i32, %c0_i32_0 : i32, i32
  }
  func.func @transform_18(%arg0: i32) -> (i32, i32) {
    %c0_i32 = arith.constant 0 : i32
    %c0_i32_0 = arith.constant 0 : i32
    %c0_i32_1 = arith.constant 0 : i32
    return %c0_i32, %c0_i32_0 : i32, i32
  }
  func.func @transform_19(%arg0: i32) -> (i32, i32, i32) {
    %c0_i32 = arith.constant 0 : i32
    %c0_i32_0 = arith.constant 0 : i32
    %c0_i32_1 = arith.constant 0 : i32
    return %arg0, %c0_i32, %c0_i32_0 : i32, i32, i32
  }
}

</mosaic_0001>

<llo_original>
// kernel: tpu_custom_call.1
$region0: #{tpu_custom_call.1}
  #allocation0 [shape = 'u32[]', space=smem, size = 0x4, offset = 0x4, fixed_abs, tag = 'smem constant byte address 0x4 - core index']
  #allocation1 [shape = 'u32[144,128]{1,0:T(1,128)}', space=vmem, size = 0x12000, scoped, tag = 'internal scratch']
  #allocation2 [shape = 'f32[8,32]{1,0:T(8,128)}', space=vmem, size = 0x1000, scoped, tag = 'scratch operand']
  %s0 = inlined_call_operand.hbm [shape: bf16[2,8,32], index: 0, kind: input, shape index: {}]
  %s1 = inlined_call_operand.hbm [shape: bf16[2,8,32], index: 1, kind: input, shape index: {}]
  %s2 = inlined_call_operand.hbm [shape: f32[8,8], index: 2, kind: input, shape index: {}]
  %s3 = inlined_call_operand.vmem [shape: bf16[32,96], index: 3, kind: input, shape index: {}]
  %s4 = inlined_call_operand.vmem [shape: f32[1,96], index: 4, kind: input, shape index: {}]
  %s5 = inlined_call_operand.vmem [shape: bf16[32,32], index: 5, kind: input, shape index: {}]
  %s6 = inlined_call_operand.vmem [shape: f32[1,32], index: 6, kind: input, shape index: {}]
  %s7 = inlined_call_operand.vmem [shape: bf16[32,32], index: 7, kind: input, shape index: {}]
  %s8 = inlined_call_operand.vmem [shape: f32[1,32], index: 8, kind: input, shape index: {}]
  %s9 = inlined_call_operand.hbm [shape: bf16[32,64], index: 9, kind: input, shape index: {}]
  %s10 = inlined_call_operand.vmem [shape: f32[1,64], index: 10, kind: input, shape index: {}]
  %s11 = inlined_call_operand.hbm [shape: bf16[32,32], index: 11, kind: input, shape index: {}]
  %s12 = inlined_call_operand.vmem [shape: f32[1,32], index: 12, kind: input, shape index: {}]
  %s13 = inlined_call_operand.vmem [shape: f32[3,32], index: 13, kind: input, shape index: {}]
  %s14 = inlined_call_operand.vmem [shape: f32[3,32], index: 14, kind: input, shape index: {}]
  %s15 = inlined_call_operand.hbm [shape: bf16[32,64], index: 15, kind: input, shape index: {}]
  %s16 = inlined_call_operand.vmem [shape: f32[1,64], index: 16, kind: input, shape index: {}]
  %s17 = inlined_call_operand.vmem [shape: bf16[64,32], index: 17, kind: input, shape index: {}]
  %s18 = inlined_call_operand.vmem [shape: f32[1,32], index: 18, kind: input, shape index: {}]
  %s19 = inlined_call_operand.hbm [shape: f32[2,8,32], index: 19, kind: output, shape index: {}]
  %s20 = sld [smem:[#allocation0]]
  $region133: #{tpu_custom_call.1} parent=0
    _
  %s22 = ssub.s32 1, %s20
  %s23 = scalar_select 0, %s22, %s20
  $region1: #{tpu_custom_call.1} parent=0
    #allocation3 [shape = 'u8[4096]{0}', space=vmem, size = 0x1000, scoped, tag = 'input window, operand 0']
    #allocation4 [shape = 's32[2]{0}', space=sflag, size = 0x8, scoped, tag = 'scoped memory for tpu_custom_call.1']
    #allocation5 [shape = 's32[2]{0}', space=sflag, size = 0x8, scoped, tag = 'scoped memory for tpu_custom_call.1']
    #allocation6 [shape = 'u8[4096]{0}', space=vmem, size = 0x1000, scoped, tag = 'input window, operand 1']
    #allocation7 [shape = 's32[2]{0}', space=sflag, size = 0x8, scoped, tag = 'scoped memory for tpu_custom_call.1']
    #allocation8 [shape = 'u8[4096]{0}', space=vmem, size = 0x1000, scoped, tag = 'input window, operand 2, single buffered']
    #allocation9 [shape = 'u8[8192]{0}', space=vmem, size = 0x2000, scoped, tag = 'input window, operand 9, single buffered']
    #allocation10 [shape = 's32[1]{0}', space=sflag, size = 0x4, scoped, tag = 'scoped memory for tpu_custom_call.1']
    #allocation11 [shape = 'u8[8192]{0}', space=vmem, size = 0x2000, scoped, tag = 'input window, operand 11, single buffered']
    #allocation12 [shape = 'u8[8192]{0}', space=vmem, size = 0x2000, scoped, tag = 'input window, operand 15, single buffered']
    #allocation13 [shape = 's32[1]{0}', space=sflag, size = 0x4, scoped, tag = 'scoped memory for tpu_custom_call.1']
    #allocation14 [shape = 'u8[8192]{0}', space=vmem, size = 0x2000, scoped, tag = 'output window, operand 0']
    %24 = vsyncpa [#allocation4], 0
    %s25 = scalar_lea.sflag [#allocation4], 1
    %26 = vsyncpa %s25, 0
    %27 = vsyncpa [#allocation7], 0
    %s28 = scalar_lea.sflag [#allocation7], 1
    %29 = vsyncpa %s28, 0
    %30 = vsyncpa [#allocation10], 0
    %31 = vsyncpa [#allocation13], 0
    %32 = vsyncpa [#allocation5], 0
    %s33 = scalar_lea.sflag [#allocation5], 1
    %34 = vsyncpa %s33, 0
    loop: start=0, step=1, limit=4
    $region2: #{tpu_custom_call.1} parent=1 // loop_pre_header
      _
    $region3: #{tpu_custom_call.1} parent=1 // loop_header
      %s36 = sphi 0, %s40
      %p37 = scmp.ge.s32.totalorder %s36, 4
      %s46 = sphi 0, %s48
      %s49 = sphi 0, %s46
      %s50 = sphi 0, %s49
      %s66 = sphi 0, %s50
      %s72 = sphi 0, %s74
      %s75 = sphi 0, %s72
      %s76 = sphi 0, %s75
      %s92 = sphi 0, %s76
      %s96 = sphi 0, %s96
      %s98 = sphi 0, %s96
      %s99 = sphi 0, %s98
      %s113 = sphi 0, %s99
      %s117 = sphi 0, %s117
      %s119 = sphi 0, %s117
      %s120 = sphi 0, %s119
      %s134 = sphi 0, %s120
      %s138 = sphi 0, %s138
      %s140 = sphi 0, %s138
      %s141 = sphi 0, %s140
      %s155 = sphi 0, %s141
      %s159 = sphi 0, %s159
      %s161 = sphi 0, %s159
      %s162 = sphi 0, %s161
      %s176 = sphi 0, %s162
      %s180 = sphi 0, %s180
      %s182 = sphi 0, %s180
      %s183 = sphi 0, %s182
      %s197 = sphi 0, %s183
      %s201 = sphi 0, %s201
      %s203 = sphi 0, %s201
      %s204 = sphi 0, %s203
      %s218 = sphi 0, %s204
      %s222 = sphi 0, %s222
      %s224 = sphi 0, %s222
      %s225 = sphi 0, %s224
      %s239 = sphi 0, %s225
      %s243 = sphi 0, %s243
      %s245 = sphi 0, %s243
      %s246 = sphi 0, %s245
      %s260 = sphi 0, %s246
      %s264 = sphi 0, %s264
      %s266 = sphi 0, %s264
      %s267 = sphi 0, %s266
      %s281 = sphi 0, %s267
      %s285 = sphi 0, %s285
      %s287 = sphi 0, %s285
      %s288 = sphi 0, %s287
      %s302 = sphi 0, %s288
      %s306 = sphi 0, %s306
      %s308 = sphi 0, %s306
      %s309 = sphi 0, %s308
      %s323 = sphi 0, %s309
      %s327 = sphi 0, %s327
      %s329 = sphi 0, %s327
      %s330 = sphi 0, %s329
      %s344 = sphi 0, %s330
      %s348 = sphi 0, %s348
      %s350 = sphi 0, %s348
      %s351 = sphi 0, %s350
      %s365 = sphi 0, %s351
      %s369 = sphi 0, %s369
      %s371 = sphi 0, %s369
      %s372 = sphi 0, %s371
      %s386 = sphi 0, %s372
      %s390 = sphi 0, %s390
      %s392 = sphi 0, %s390
      %s393 = sphi 0, %s392
      %s407 = sphi 0, %s393
      %s411 = sphi 0, %s411
      %s413 = sphi 0, %s411
      %s414 = sphi 0, %s413
      %s428 = sphi 0, %s414
      %s432 = sphi 0, %s432
      %s434 = sphi 0, %s432
      %s435 = sphi 0, %s434
      %s449 = sphi 0, %s435
      %s455 = sphi 0, %s457
      %s458 = sphi 0, %s455
      %s459 = sphi 0, %s458
      %s475 = sphi 0, %s459
    $region4: #{tpu_custom_call.1} parent=1 // loop_header_branch
      %39 = sbr.rel (%p37) target = $region8
    $region5: #{tpu_custom_call.1} parent=1 // loop_body
      %s41 = ssub.s32 %s36, 1
      %s42 = ssub.s32 %s36, 2
      %s43 = sadd.s32 %s36, 1
      %s44 = ssub.s32 %s36, %s43
      %p45 = scmp.eq.s32.totalorder %s44, 0
      %s47 = sadd.s32 %s46, 1
      %s48 = scalar_select %p45, %s46, %s47
      %p51 = pneg %p45
      %p52 = scmp.eq.s32.totalorder %s36, 1
      %p53 = por %p51, %p52
      %p54 = scmp.ne.s32.totalorder %s46, %s49
      %p55 = scmp.eq.s32.totalorder %s36, 0
      %p56 = por %p54, %p55
      %p57 = scmp.ne.s32.totalorder %s46, %s49
      %p58 = scmp.eq.s32.totalorder %s41, 1
      %p59 = por %p57, %p58
      %p60 = scmp.ne.s32.totalorder %s49, %s50
      %p61 = scmp.eq.s32.totalorder %s41, 0
      %p62 = por %p60, %p61
      %p63 = scmp.ne.s32.totalorder %s49, %s50
      %p64 = scmp.eq.s32.totalorder %s42, 1
      %p65 = por %p63, %p64
      %p67 = scmp.ne.s32.totalorder %s50, %s66
      %p68 = scmp.eq.s32.totalorder %s42, 0
      %p69 = por %p67, %p68
      %s70 = ssub.s32 %s36, %s43
      %p71 = scmp.eq.s32.totalorder %s70, 0
      %s73 = sadd.s32 %s72, 1
      %s74 = scalar_select %p71, %s72, %s73
      %p77 = pneg %p71
      %p78 = scmp.eq.s32.totalorder %s36, 1
      %p79 = por %p77, %p78
      %p80 = scmp.ne.s32.totalorder %s72, %s75
      %p81 = scmp.eq.s32.totalorder %s36, 0
      %p82 = por %p80, %p81
      %p83 = scmp.ne.s32.totalorder %s72, %s75
      %p84 = scmp.eq.s32.totalorder %s41, 1
      %p85 = por %p83, %p84
      %p86 = scmp.ne.s32.totalorder %s75, %s76
      %p87 = scmp.eq.s32.totalorder %s41, 0
      %p88 = por %p86, %p87
      %p89 = scmp.ne.s32.totalorder %s75, %s76
      %p90 = scmp.eq.s32.totalorder %s42, 1
      %p91 = por %p89, %p90
      %p93 = scmp.ne.s32.totalorder %s76, %s92
      %p94 = scmp.eq.s32.totalorder %s42, 0
      %p95 = por %p93, %p94
      %s97 = sadd.s32 %s96, 1
      %p100 = scmp.eq.s32.totalorder %s36, 1
      %p101 = scmp.ne.s32.totalorder %s96, %s98
      %p102 = scmp.eq.s32.totalorder %s36, 0
      %p103 = por %p101, %p102
      %p104 = scmp.ne.s32.totalorder %s96, %s98
      %p105 = scmp.eq.s32.totalorder %s41, 1
      %p106 = por %p104, %p105
      %p107 = scmp.ne.s32.totalorder %s98, %s99
      %p108 = scmp.eq.s32.totalorder %s41, 0
      %p109 = por %p107, %p108
      %p110 = scmp.ne.s32.totalorder %s98, %s99
      %p111 = scmp.eq.s32.totalorder %s42, 1
      %p112 = por %p110, %p111
      %p114 = scmp.ne.s32.totalorder %s99, %s113
      %p115 = scmp.eq.s32.totalorder %s42, 0
      %p116 = por %p114, %p115
      %s118 = sadd.s32 %s117, 1
      %p121 = scmp.eq.s32.totalorder %s36, 1
      %p122 = scmp.ne.s32.totalorder %s117, %s119
      %p123 = scmp.eq.s32.totalorder %s36, 0
      %p124 = por %p122, %p123
      %p125 = scmp.ne.s32.totalorder %s117, %s119
      %p126 = scmp.eq.s32.totalorder %s41, 1
      %p127 = por %p125, %p126
      %p128 = scmp.ne.s32.totalorder %s119, %s120
      %p129 = scmp.eq.s32.totalorder %s41, 0
      %p130 = por %p128, %p129
      %p131 = scmp.ne.s32.totalorder %s119, %s120
      %p132 = scmp.eq.s32.totalorder %s42, 1
      %p133 = por %p131, %p132
      %p135 = scmp.ne.s32.totalorder %s120, %s134
      %p136 = scmp.eq.s32.totalorder %s42, 0
      %p137 = por %p135, %p136
      %s139 = sadd.s32 %s138, 1
      %p142 = scmp.eq.s32.totalorder %s36, 1
      %p143 = scmp.ne.s32.totalorder %s138, %s140
      %p144 = scmp.eq.s32.totalorder %s36, 0
      %p145 = por %p143, %p144
      %p146 = scmp.ne.s32.totalorder %s138, %s140
      %p147 = scmp.eq.s32.totalorder %s41, 1
      %p148 = por %p146, %p147
      %p149 = scmp.ne.s32.totalorder %s140, %s141
      %p150 = scmp.eq.s32.totalorder %s41, 0
      %p151 = por %p149, %p150
      %p152 = scmp.ne.s32.totalorder %s140, %s141
      %p153 = scmp.eq.s32.totalorder %s42, 1
      %p154 = por %p152, %p153
      %p156 = scmp.ne.s32.totalorder %s141, %s155
      %p157 = scmp.eq.s32.totalorder %s42, 0
      %p158 = por %p156, %p157
      %s160 = sadd.s32 %s159, 1
      %p163 = scmp.eq.s32.totalorder %s36, 1
      %p164 = scmp.ne.s32.totalorder %s159, %s161
      %p165 = scmp.eq.s32.totalorder %s36, 0
      %p166 = por %p164, %p165
      %p167 = scmp.ne.s32.totalorder %s159, %s161
      %p168 = scmp.eq.s32.totalorder %s41, 1
      %p169 = por %p167, %p168
      %p170 = scmp.ne.s32.totalorder %s161, %s162
      %p171 = scmp.eq.s32.totalorder %s41, 0
      %p172 = por %p170, %p171
      %p173 = scmp.ne.s32.totalorder %s161, %s162
      %p174 = scmp.eq.s32.totalorder %s42, 1
      %p175 = por %p173, %p174
      %p177 = scmp.ne.s32.totalorder %s162, %s176
      %p178 = scmp.eq.s32.totalorder %s42, 0
      %p179 = por %p177, %p178
      %s181 = sadd.s32 %s180, 1
      %p184 = scmp.eq.s32.totalorder %s36, 1
      %p185 = scmp.ne.s32.totalorder %s180, %s182
      %p186 = scmp.eq.s32.totalorder %s36, 0
      %p187 = por %p185, %p186
      %p188 = scmp.ne.s32.totalorder %s180, %s182
      %p189 = scmp.eq.s32.totalorder %s41, 1
      %p190 = por %p188, %p189
      %p191 = scmp.ne.s32.totalorder %s182, %s183
      %p192 = scmp.eq.s32.totalorder %s41, 0
      %p193 = por %p191, %p192
      %p194 = scmp.ne.s32.totalorder %s182, %s183
      %p195 = scmp.eq.s32.totalorder %s42, 1
      %p196 = por %p194, %p195
      %p198 = scmp.ne.s32.totalorder %s183, %s197
      %p199 = scmp.eq.s32.totalorder %s42, 0
      %p200 = por %p198, %p199
      %s202 = sadd.s32 %s201, 1
      %p205 = scmp.eq.s32.totalorder %s36, 1
      %p206 = scmp.ne.s32.totalorder %s201, %s203
      %p207 = scmp.eq.s32.totalorder %s36, 0
      %p208 = por %p206, %p207
      %p209 = scmp.ne.s32.totalorder %s201, %s203
      %p210 = scmp.eq.s32.totalorder %s41, 1
      %p211 = por %p209, %p210
      %p212 = scmp.ne.s32.totalorder %s203, %s204
      %p213 = scmp.eq.s32.totalorder %s41, 0
      %p214 = por %p212, %p213
      %p215 = scmp.ne.s32.totalorder %s203, %s204
      %p216 = scmp.eq.s32.totalorder %s42, 1
      %p217 = por %p215, %p216
      %p219 = scmp.ne.s32.totalorder %s204, %s218
      %p220 = scmp.eq.s32.totalorder %s42, 0
      %p221 = por %p219, %p220
      %s223 = sadd.s32 %s222, 1
      %p226 = scmp.eq.s32.totalorder %s36, 1
      %p227 = scmp.ne.s32.totalorder %s222, %s224
      %p228 = scmp.eq.s32.totalorder %s36, 0
      %p229 = por %p227, %p228
      %p230 = scmp.ne.s32.totalorder %s222, %s224
      %p231 = scmp.eq.s32.totalorder %s41, 1
      %p232 = por %p230, %p231
      %p233 = scmp.ne.s32.totalorder %s224, %s225
      %p234 = scmp.eq.s32.totalorder %s41, 0
      %p235 = por %p233, %p234
      %p236 = scmp.ne.s32.totalorder %s224, %s225
      %p237 = scmp.eq.s32.totalorder %s42, 1
      %p238 = por %p236, %p237
      %p240 = scmp.ne.s32.totalorder %s225, %s239
      %p241 = scmp.eq.s32.totalorder %s42, 0
      %p242 = por %p240, %p241
      %s244 = sadd.s32 %s243, 1
      %p247 = scmp.eq.s32.totalorder %s36, 1
      %p248 = scmp.ne.s32.totalorder %s243, %s245
      %p249 = scmp.eq.s32.totalorder %s36, 0
      %p250 = por %p248, %p249
      %p251 = scmp.ne.s32.totalorder %s243, %s245
      %p252 = scmp.eq.s32.totalorder %s41, 1
      %p253 = por %p251, %p252
      %p254 = scmp.ne.s32.totalorder %s245, %s246
      %p255 = scmp.eq.s32.totalorder %s41, 0
      %p256 = por %p254, %p255
      %p257 = scmp.ne.s32.totalorder %s245, %s246
      %p258 = scmp.eq.s32.totalorder %s42, 1
      %p259 = por %p257, %p258
      %p261 = scmp.ne.s32.totalorder %s246, %s260
      %p262 = scmp.eq.s32.totalorder %s42, 0
      %p263 = por %p261, %p262
      %s265 = sadd.s32 %s264, 1
      %p268 = scmp.eq.s32.totalorder %s36, 1
      %p269 = scmp.ne.s32.totalorder %s264, %s266
      %p270 = scmp.eq.s32.totalorder %s36, 0
      %p271 = por %p269, %p270
      %p272 = scmp.ne.s32.totalorder %s264, %s266
      %p273 = scmp.eq.s32.totalorder %s41, 1
      %p274 = por %p272, %p273
      %p275 = scmp.ne.s32.totalorder %s266, %s267
      %p276 = scmp.eq.s32.totalorder %s41, 0
      %p277 = por %p275, %p276
      %p278 = scmp.ne.s32.totalorder %s266, %s267
      %p279 = scmp.eq.s32.totalorder %s42, 1
      %p280 = por %p278, %p279
      %p282 = scmp.ne.s32.totalorder %s267, %s281
      %p283 = scmp.eq.s32.totalorder %s42, 0
      %p284 = por %p282, %p283
      %s286 = sadd.s32 %s285, 1
      %p289 = scmp.eq.s32.totalorder %s36, 1
      %p290 = scmp.ne.s32.totalorder %s285, %s287
      %p291 = scmp.eq.s32.totalorder %s36, 0
      %p292 = por %p290, %p291
      %p293 = scmp.ne.s32.totalorder %s285, %s287
      %p294 = scmp.eq.s32.totalorder %s41, 1
      %p295 = por %p293, %p294
      %p296 = scmp.ne.s32.totalorder %s287, %s288
      %p297 = scmp.eq.s32.totalorder %s41, 0
      %p298 = por %p296, %p297
      %p299 = scmp.ne.s32.totalorder %s287, %s288
      %p300 = scmp.eq.s32.totalorder %s42, 1
      %p301 = por %p299, %p300
      %p303 = scmp.ne.s32.totalorder %s288, %s302
      %p304 = scmp.eq.s32.totalorder %s42, 0
      %p305 = por %p303, %p304
      %s307 = sadd.s32 %s306, 1
      %p310 = scmp.eq.s32.totalorder %s36, 1
      %p311 = scmp.ne.s32.totalorder %s306, %s308
      %p312 = scmp.eq.s32.totalorder %s36, 0
      %p313 = por %p311, %p312
      %p314 = scmp.ne.s32.totalorder %s306, %s308
      %p315 = scmp.eq.s32.totalorder %s41, 1
      %p316 = por %p314, %p315
      %p317 = scmp.ne.s32.totalorder %s308, %s309
      %p318 = scmp.eq.s32.totalorder %s41, 0
      %p319 = por %p317, %p318
      %p320 = scmp.ne.s32.totalorder %s308, %s309
      %p321 = scmp.eq.s32.totalorder %s42, 1
      %p322 = por %p320, %p321
      %p324 = scmp.ne.s32.totalorder %s309, %s323
      %p325 = scmp.eq.s32.totalorder %s42, 0
      %p326 = por %p324, %p325
      %s328 = sadd.s32 %s327, 1
      %p331 = scmp.eq.s32.totalorder %s36, 1
      %p332 = scmp.ne.s32.totalorder %s327, %s329
      %p333 = scmp.eq.s32.totalorder %s36, 0
      %p334 = por %p332, %p333
      %p335 = scmp.ne.s32.totalorder %s327, %s329
      %p336 = scmp.eq.s32.totalorder %s41, 1
      %p337 = por %p335, %p336
      %p338 = scmp.ne.s32.totalorder %s329, %s330
      %p339 = scmp.eq.s32.totalorder %s41, 0
      %p340 = por %p338, %p339
      %p341 = scmp.ne.s32.totalorder %s329, %s330
      %p342 = scmp.eq.s32.totalorder %s42, 1
      %p343 = por %p341, %p342
      %p345 = scmp.ne.s32.totalorder %s330, %s344
      %p346 = scmp.eq.s32.totalorder %s42, 0
      %p347 = por %p345, %p346
      %s349 = sadd.s32 %s348, 1
      %p352 = scmp.eq.s32.totalorder %s36, 1
      %p353 = scmp.ne.s32.totalorder %s348, %s350
      %p354 = scmp.eq.s32.totalorder %s36, 0
      %p355 = por %p353, %p354
      %p356 = scmp.ne.s32.totalorder %s348, %s350
      %p357 = scmp.eq.s32.totalorder %s41, 1
      %p358 = por %p356, %p357
      %p359 = scmp.ne.s32.totalorder %s350, %s351
      %p360 = scmp.eq.s32.totalorder %s41, 0
      %p361 = por %p359, %p360
      %p362 = scmp.ne.s32.totalorder %s350, %s351
      %p363 = scmp.eq.s32.totalorder %s42, 1
      %p364 = por %p362, %p363
      %p366 = scmp.ne.s32.totalorder %s351, %s365
      %p367 = scmp.eq.s32.totalorder %s42, 0
      %p368 = por %p366, %p367
      %s370 = sadd.s32 %s369, 1
      %p373 = scmp.eq.s32.totalorder %s36, 1
      %p374 = scmp.ne.s32.totalorder %s369, %s371
      %p375 = scmp.eq.s32.totalorder %s36, 0
      %p376 = por %p374, %p375
      %p377 = scmp.ne.s32.totalorder %s369, %s371
      %p378 = scmp.eq.s32.totalorder %s41, 1
      %p379 = por %p377, %p378
      %p380 = scmp.ne.s32.totalorder %s371, %s372
      %p381 = scmp.eq.s32.totalorder %s41, 0
      %p382 = por %p380, %p381
      %p383 = scmp.ne.s32.totalorder %s371, %s372
      %p384 = scmp.eq.s32.totalorder %s42, 1
      %p385 = por %p383, %p384
      %p387 = scmp.ne.s32.totalorder %s372, %s386
      %p388 = scmp.eq.s32.totalorder %s42, 0
      %p389 = por %p387, %p388
      %s391 = sadd.s32 %s390, 1
      %p394 = scmp.eq.s32.totalorder %s36, 1
      %p395 = scmp.ne.s32.totalorder %s390, %s392
      %p396 = scmp.eq.s32.totalorder %s36, 0
      %p397 = por %p395, %p396
      %p398 = scmp.ne.s32.totalorder %s390, %s392
      %p399 = scmp.eq.s32.totalorder %s41, 1
      %p400 = por %p398, %p399
      %p401 = scmp.ne.s32.totalorder %s392, %s393
      %p402 = scmp.eq.s32.totalorder %s41, 0
      %p403 = por %p401, %p402
      %p404 = scmp.ne.s32.totalorder %s392, %s393
      %p405 = scmp.eq.s32.totalorder %s42, 1
      %p406 = por %p404, %p405
      %p408 = scmp.ne.s32.totalorder %s393, %s407
      %p409 = scmp.eq.s32.totalorder %s42, 0
      %p410 = por %p408, %p409
      %s412 = sadd.s32 %s411, 1
      %p415 = scmp.eq.s32.totalorder %s36, 1
      %p416 = scmp.ne.s32.totalorder %s411, %s413
      %p417 = scmp.eq.s32.totalorder %s36, 0
      %p418 = por %p416, %p417
      %p419 = scmp.ne.s32.totalorder %s411, %s413
      %p420 = scmp.eq.s32.totalorder %s41, 1
      %p421 = por %p419, %p420
      %p422 = scmp.ne.s32.totalorder %s413, %s414
      %p423 = scmp.eq.s32.totalorder %s41, 0
      %p424 = por %p422, %p423
      %p425 = scmp.ne.s32.totalorder %s413, %s414
      %p426 = scmp.eq.s32.totalorder %s42, 1
      %p427 = por %p425, %p426
      %p429 = scmp.ne.s32.totalorder %s414, %s428
      %p430 = scmp.eq.s32.totalorder %s42, 0
      %p431 = por %p429, %p430
      %s433 = sadd.s32 %s432, 1
      %p436 = scmp.eq.s32.totalorder %s36, 1
      %p437 = scmp.ne.s32.totalorder %s432, %s434
      %p438 = scmp.eq.s32.totalorder %s36, 0
      %p439 = por %p437, %p438
      %p440 = scmp.ne.s32.totalorder %s432, %s434
      %p441 = scmp.eq.s32.totalorder %s41, 1
      %p442 = por %p440, %p441
      %p443 = scmp.ne.s32.totalorder %s434, %s435
      %p444 = scmp.eq.s32.totalorder %s41, 0
      %p445 = por %p443, %p444
      %p446 = scmp.ne.s32.totalorder %s434, %s435
      %p447 = scmp.eq.s32.totalorder %s42, 1
      %p448 = por %p446, %p447
      %p450 = scmp.ne.s32.totalorder %s435, %s449
      %p451 = scmp.eq.s32.totalorder %s42, 0
      %p452 = por %p450, %p451
      %s453 = ssub.s32 %s36, %s43
      %p454 = scmp.eq.s32.totalorder %s453, 0
      %s456 = sadd.s32 %s455, 1
      %s457 = scalar_select %p454, %s455, %s456
      %p460 = pneg %p454
      %p461 = scmp.eq.s32.totalorder %s36, 1
      %p462 = por %p460, %p461
      %p463 = scmp.ne.s32.totalorder %s455, %s458
      %p464 = scmp.eq.s32.totalorder %s36, 0
      %p465 = por %p463, %p464
      %p466 = scmp.ne.s32.totalorder %s455, %s458
      %p467 = scmp.eq.s32.totalorder %s41, 1
      %p468 = por %p466, %p467
      %p469 = scmp.ne.s32.totalorder %s458, %s459
      %p470 = scmp.eq.s32.totalorder %s41, 0
      %p471 = por %p469, %p470
      %p472 = scmp.ne.s32.totalorder %s458, %s459
      %p473 = scmp.eq.s32.totalorder %s42, 1
      %p474 = por %p472, %p473
      %p476 = scmp.ne.s32.totalorder %s459, %s475
      %p477 = scmp.eq.s32.totalorder %s42, 0
      %p478 = por %p476, %p477
      %p479 = scmp.le.s32.totalorder 1, %s36
      %p480 = scmp.lt.s32.totalorder %s36, 3
      %p481 = pnand %p479, %p480
      %p482 = pneg %p481
      // Predicated region
      $region9: #{tpu_custom_call.1} parent=5 // pred_check
        _
      $region10: #{tpu_custom_call.1} parent=5 // pred_check_branch
        %484 = sbr.rel (%p481) target = $region12
      $region11: #{tpu_custom_call.1} parent=5 // pred_region
        %s485 = ssub.s32 %s36, 1
        // Predicated region
        $region13: #{tpu_custom_call.1} parent=11 // pred_check
          %p486 = pneg %p109
        $region14: #{tpu_custom_call.1} parent=11 // pred_check_branch
          %488 = sbr.rel (%p486) target = $region16
        $region15: #{tpu_custom_call.1} parent=11 // pred_region
          %s490 = ssub.s32 128, 128
          %491 = vsyncadd [#allocation7], %s490
          %s493 = sshll.u32 [#allocation8], 4
          %s494 = int_to_ptr.vmem [resolvable:$true] %s493
          %496 = dma.hbm_to_vmem [thread:$0]  %s2, 128, %s494, [#allocation7]
        $region16: #{tpu_custom_call.1} parent=11 // pred_fallthru
          _
        // Predicated region
        $region17: #{tpu_custom_call.1} parent=11 // pred_check
          %p497 = pneg %p130
        $region18: #{tpu_custom_call.1} parent=11 // pred_check_branch
          %499 = sbr.rel (%p497) target = $region20
        $region19: #{tpu_custom_call.1} parent=11 // pred_region
          _
        $region20: #{tpu_custom_call.1} parent=11 // pred_fallthru
          _
        // Predicated region
        $region21: #{tpu_custom_call.1} parent=11 // pred_check
          %p500 = pneg %p151
        $region22: #{tpu_custom_call.1} parent=11 // pred_check_branch
          %502 = sbr.rel (%p500) target = $region24
        $region23: #{tpu_custom_call.1} parent=11 // pred_region
          _
        $region24: #{tpu_custom_call.1} parent=11 // pred_fallthru
          _
        // Predicated region
        $region25: #{tpu_custom_call.1} parent=11 // pred_check
          %p503 = pneg %p172
        $region26: #{tpu_custom_call.1} parent=11 // pred_check_branch
          %505 = sbr.rel (%p503) target = $region28
        $region27: #{tpu_custom_call.1} parent=11 // pred_region
          _
        $region28: #{tpu_custom_call.1} parent=11 // pred_fallthru
          _
        // Predicated region
        $region29: #{tpu_custom_call.1} parent=11 // pred_check
          %p506 = pneg %p193
        $region30: #{tpu_custom_call.1} parent=11 // pred_check_branch
          %508 = sbr.rel (%p506) target = $region32
        $region31: #{tpu_custom_call.1} parent=11 // pred_region
          _
        $region32: #{tpu_custom_call.1} parent=11 // pred_fallthru
          _
        // Predicated region
        $region33: #{tpu_custom_call.1} parent=11 // pred_check
          %p509 = pneg %p214
        $region34: #{tpu_custom_call.1} parent=11 // pred_check_branch
          %511 = sbr.rel (%p509) target = $region36
        $region35: #{tpu_custom_call.1} parent=11 // pred_region
          _
        $region36: #{tpu_custom_call.1} parent=11 // pred_fallthru
          _
        // Predicated region
        $region37: #{tpu_custom_call.1} parent=11 // pred_check
          %p512 = pneg %p235
        $region38: #{tpu_custom_call.1} parent=11 // pred_check_branch
          %514 = sbr.rel (%p512) target = $region40
        $region39: #{tpu_custom_call.1} parent=11 // pred_region
          _
        $region40: #{tpu_custom_call.1} parent=11 // pred_fallthru
          _
        // Predicated region
        $region41: #{tpu_custom_call.1} parent=11 // pred_check
          %p515 = pneg %p256
        $region42: #{tpu_custom_call.1} parent=11 // pred_check_branch
          %517 = sbr.rel (%p515) target = $region44
        $region43: #{tpu_custom_call.1} parent=11 // pred_region
          %s519 = ssub.s32 256, 256
          %520 = vsyncadd [#allocation10], %s519
          %s521 = sshll.u32 [#allocation9], 4
          %s522 = int_to_ptr.vmem [resolvable:$true] %s521
          %527 = dma.hbm_to_vmem [thread:$0]  %s9, 256, %s522, [#allocation10], 64, 64, 4
        $region44: #{tpu_custom_call.1} parent=11 // pred_fallthru
          _
        // Predicated region
        $region45: #{tpu_custom_call.1} parent=11 // pred_check
          %p528 = pneg %p277
        $region46: #{tpu_custom_call.1} parent=11 // pred_check_branch
          %530 = sbr.rel (%p528) target = $region48
        $region47: #{tpu_custom_call.1} parent=11 // pred_region
          _
        $region48: #{tpu_custom_call.1} parent=11 // pred_fallthru
          _
        // Predicated region
        $region49: #{tpu_custom_call.1} parent=11 // pred_check
          %p531 = pneg %p298
        $region50: #{tpu_custom_call.1} parent=11 // pred_check_branch
          %533 = sbr.rel (%p531) target = $region52
        $region51: #{tpu_custom_call.1} parent=11 // pred_region
          %s535 = ssub.s32 256, 256
          %536 = vsyncadd [#allocation10], %s535
          %s537 = sshll.u32 [#allocation11], 4
          %s538 = int_to_ptr.vmem [resolvable:$true] %s537
          %543 = dma.hbm_to_vmem [thread:$0]  %s11, 256, %s538, [#allocation10], 64, 64, 4
        $region52: #{tpu_custom_call.1} parent=11 // pred_fallthru
          _
        // Predicated region
        $region53: #{tpu_custom_call.1} parent=11 // pred_check
          %p544 = pneg %p319
        $region54: #{tpu_custom_call.1} parent=11 // pred_check_branch
          %546 = sbr.rel (%p544) target = $region56
        $region55: #{tpu_custom_call.1} parent=11 // pred_region
          _
        $region56: #{tpu_custom_call.1} parent=11 // pred_fallthru
          _
        // Predicated region
        $region57: #{tpu_custom_call.1} parent=11 // pred_check
          %p547 = pneg %p340
        $region58: #{tpu_custom_call.1} parent=11 // pred_check_branch
          %549 = sbr.rel (%p547) target = $region60
        $region59: #{tpu_custom_call.1} parent=11 // pred_region
          _
        $region60: #{tpu_custom_call.1} parent=11 // pred_fallthru
          _
        // Predicated region
        $region61: #{tpu_custom_call.1} parent=11 // pred_check
          %p550 = pneg %p361
        $region62: #{tpu_custom_call.1} parent=11 // pred_check_branch
          %552 = sbr.rel (%p550) target = $region64
        $region63: #{tpu_custom_call.1} parent=11 // pred_region
          _
        $region64: #{tpu_custom_call.1} parent=11 // pred_fallthru
          _
        // Predicated region
        $region65: #{tpu_custom_call.1} parent=11 // pred_check
          %p553 = pneg %p382
        $region66: #{tpu_custom_call.1} parent=11 // pred_check_branch
          %555 = sbr.rel (%p553) target = $region68
        $region67: #{tpu_custom_call.1} parent=11 // pred_region
          %s557 = ssub.s32 256, 256
          %558 = vsyncadd [#allocation13], %s557
          %s559 = sshll.u32 [#allocation12], 4
          %s560 = int_to_ptr.vmem [resolvable:$true] %s559
          %565 = dma.hbm_to_vmem [thread:$0]  %s15, 256, %s560, [#allocation13], 64, 64, 4
        $region68: #{tpu_custom_call.1} parent=11 // pred_fallthru
          _
        // Predicated region
        $region69: #{tpu_custom_call.1} parent=11 // pred_check
          %p566 = pneg %p403
        $region70: #{tpu_custom_call.1} parent=11 // pred_check_branch
          %568 = sbr.rel (%p566) target = $region72
        $region71: #{tpu_custom_call.1} parent=11 // pred_region
          _
        $region72: #{tpu_custom_call.1} parent=11 // pred_fallthru
          _
        // Predicated region
        $region73: #{tpu_custom_call.1} parent=11 // pred_check
          %p569 = pneg %p424
        $region74: #{tpu_custom_call.1} parent=11 // pred_check_branch
          %571 = sbr.rel (%p569) target = $region76
        $region75: #{tpu_custom_call.1} parent=11 // pred_region
          _
        $region76: #{tpu_custom_call.1} parent=11 // pred_fallthru
          _
        // Predicated region
        $region77: #{tpu_custom_call.1} parent=11 // pred_check
          %p572 = pneg %p445
        $region78: #{tpu_custom_call.1} parent=11 // pred_check_branch
          %574 = sbr.rel (%p572) target = $region80
        $region79: #{tpu_custom_call.1} parent=11 // pred_region
          _
        $region80: #{tpu_custom_call.1} parent=11 // pred_fallthru
          _
      $region12: #{tpu_custom_call.1} parent=5 // pred_fallthru
        _
      %p575 = scmp.lt.s32.totalorder %s36, 2
      // Predicated region
      $region81: #{tpu_custom_call.1} parent=5 // pred_check
        %p576 = pneg %p575
      $region82: #{tpu_custom_call.1} parent=5 // pred_check_branch
        %578 = sbr.rel (%p576) target = $region84
      $region83: #{tpu_custom_call.1} parent=5 // pred_region
        // Predicated region
        $region85: #{tpu_custom_call.1} parent=83 // pred_check
          %p579 = pneg %p56
        $region86: #{tpu_custom_call.1} parent=83 // pred_check_branch
          %581 = sbr.rel (%p579) target = $region88
        $region87: #{tpu_custom_call.1} parent=83 // pred_region
          %s582 = sand.u32 %s46, 1
          %s583 = scalar_lea.sflag [#allocation4], %s582
          %s584 = sand.u32 %s46, 1
          %s585 = smul.addr %s584, 4
          %s586 = scalar_lea.vmem [#allocation3], %s585
          %s588 = ssub.s32 64, 64
          %589 = vsyncadd %s583, %s588
          %s590 = smul.addr %s36, 64
          %s591 = scalar_lea.hbm %s0, %s590
          %s593 = sshll.u32 %s586, 4
          %s594 = int_to_ptr.vmem [resolvable:$true] %s593
          %596 = dma.hbm_to_vmem [thread:$0]  %s591, 64, %s594, %s583
        $region88: #{tpu_custom_call.1} parent=83 // pred_fallthru
          _
        // Predicated region
        $region89: #{tpu_custom_call.1} parent=83 // pred_check
          %p597 = pneg %p82
        $region90: #{tpu_custom_call.1} parent=83 // pred_check_branch
          %599 = sbr.rel (%p597) target = $region92
        $region91: #{tpu_custom_call.1} parent=83 // pred_region
          %s600 = sand.u32 %s36, 1
          %s601 = scalar_lea.sflag [#allocation7], %s600
          %s602 = sand.u32 %s72, 1
          %s603 = smul.addr %s602, 4
          %s604 = scalar_lea.vmem [#allocation6], %s603
          %s606 = ssub.s32 64, 64
          %607 = vsyncadd %s601, %s606
          %s608 = smul.addr %s36, 64
          %s609 = scalar_lea.hbm %s1, %s608
          %s611 = sshll.u32 %s604, 4
          %s612 = int_to_ptr.vmem [resolvable:$true] %s611
          %614 = dma.hbm_to_vmem [thread:$0]  %s609, 64, %s612, %s601
        $region92: #{tpu_custom_call.1} parent=83 // pred_fallthru
          _
      $region84: #{tpu_custom_call.1} parent=5 // pred_fallthru
        _
      %p615 = scmp.le.s32.totalorder 1, %s36
      %p616 = scmp.lt.s32.totalorder %s36, 3
      %p617 = pnand %p615, %p616
      %p618 = pneg %p617
      // Predicated region
      $region93: #{tpu_custom_call.1} parent=5 // pred_check
        _
      $region94: #{tpu_custom_call.1} parent=5 // pred_check_branch
        %620 = sbr.rel (%p617) target = $region96
      $region95: #{tpu_custom_call.1} parent=5 // pred_region
        %s621 = ssub.s32 %s36, 1
        %s622 = sand.u32 %s49, 1
        %s623 = scalar_lea.sflag [#allocation4], %s622
        %s624 = sand.u32 %s49, 1
        %s625 = smul.addr %s624, 4
        %s626 = scalar_lea.vmem [#allocation3], %s625
        // Predicated region
        $region97: #{tpu_custom_call.1} parent=95 // pred_check
          %p627 = pneg %p62
        $region98: #{tpu_custom_call.1} parent=95 // pred_check_branch
          %629 = sbr.rel (%p627) target = $region100
        $region99: #{tpu_custom_call.1} parent=95 // pred_region
          %630 = dma.done %s623, 64
        $region100: #{tpu_custom_call.1} parent=95 // pred_fallthru
          _
        %s631 = sand.u32 %s41, 1
        %s632 = scalar_lea.sflag [#allocation7], %s631
        %s633 = sand.u32 %s75, 1
        %s634 = smul.addr %s633, 4
        %s635 = scalar_lea.vmem [#allocation6], %s634
        // Predicated region
        $region101: #{tpu_custom_call.1} parent=95 // pred_check
          %p636 = pneg %p88
        $region102: #{tpu_custom_call.1} parent=95 // pred_check_branch
          %638 = sbr.rel (%p636) target = $region104
        $region103: #{tpu_custom_call.1} parent=95 // pred_region
          %639 = dma.done %s632, 64
        $region104: #{tpu_custom_call.1} parent=95 // pred_fallthru
          _
        // Predicated region
        $region105: #{tpu_custom_call.1} parent=95 // pred_check
          %p640 = pneg %p109
        $region106: #{tpu_custom_call.1} parent=95 // pred_check_branch
          %642 = sbr.rel (%p640) target = $region108
        $region107: #{tpu_custom_call.1} parent=95 // pred_region
          %643 = dma.done [#allocation7], 128
        $region108: #{tpu_custom_call.1} parent=95 // pred_fallthru
          _
        // Predicated region
        $region109: #{tpu_custom_call.1} parent=95 // pred_check
          %p644 = pneg %p256
        $region110: #{tpu_custom_call.1} parent=95 // pred_check_branch
          %646 = sbr.rel (%p644) target = $region112
        $region111: #{tpu_custom_call.1} parent=95 // pred_region
          %647 = dma.done [#allocation10], 256
        $region112: #{tpu_custom_call.1} parent=95 // pred_fallthru
          _
        // Predicated region
        $region113: #{tpu_custom_call.1} parent=95 // pred_check
          %p648 = pneg %p298
        $region114: #{tpu_custom_call.1} parent=95 // pred_check_branch
          %650 = sbr.rel (%p648) target = $region116
        $region115: #{tpu_custom_call.1} parent=95 // pred_region
          %651 = dma.done [#allocation10], 256
        $region116: #{tpu_custom_call.1} parent=95 // pred_fallthru
          _
        // Predicated region
        $region117: #{tpu_custom_call.1} parent=95 // pred_check
          %p652 = pneg %p382
        $region118: #{tpu_custom_call.1} parent=95 // pred_check_branch
          %654 = sbr.rel (%p652) target = $region120
        $region119: #{tpu_custom_call.1} parent=95 // pred_region
          %655 = dma.done [#allocation13], 256
        $region120: #{tpu_custom_call.1} parent=95 // pred_fallthru
          _
        %s656 = sand.u32 %s49, 1
        %s657 = scalar_lea.sflag [#allocation4], %s656
        %s658 = sand.u32 %s49, 1
        %s659 = smul.addr %s658, 4
        %s660 = scalar_lea.vmem [#allocation3], %s659
        %p661 = pneg %p62
        %p662 = pneg %p59
        %s663 = sand.u32 %s41, 1
        %s664 = scalar_lea.sflag [#allocation7], %s663
        %s665 = sand.u32 %s75, 1
        %s666 = smul.addr %s665, 4
        %s667 = scalar_lea.vmem [#allocation6], %s666
        %p668 = pneg %p88
        %p669 = pneg %p85
        %p670 = pneg %p109
        %p671 = pneg %p106
        %p672 = pneg %p130
        %p673 = pneg %p127
        %p674 = pneg %p151
        %p675 = pneg %p148
        %p676 = pneg %p172
        %p677 = pneg %p169
        %p678 = pneg %p193
        %p679 = pneg %p190
        %p680 = pneg %p214
        %p681 = pneg %p211
        %p682 = pneg %p235
        %p683 = pneg %p232
        %p684 = pneg %p256
        %p685 = pneg %p253
        %p686 = pneg %p277
        %p687 = pneg %p274
        %p688 = pneg %p298
        %p689 = pneg %p295
        %p690 = pneg %p319
        %p691 = pneg %p316
        %p692 = pneg %p340
        %p693 = pneg %p337
        %p694 = pneg %p361
        %p695 = pneg %p358
        %p696 = pneg %p382
        %p697 = pneg %p379
        %p698 = pneg %p403
        %p699 = pneg %p400
        %p700 = pneg %p424
        %p701 = pneg %p421
        %p702 = pneg %p445
        %p703 = pneg %p442
        %p704 = pneg %p471
        %p705 = pneg %p468
        %s706 = sand.u32 %s458, 1
        %s707 = scalar_lea.sflag [#allocation5], %s706
        %s708 = sand.u32 %s458, 1
        %s709 = smul.addr %s708, 8
        %s710 = scalar_lea.vmem [#allocation14], %s709
        %v712 = vld [vmem:[%s626] sm:$0xf]
        %v713 = vunpack.c.l.bf16 %v712
        %v714 = vld [vmem:[%s635] sm:$0xf]
        %v715 = vld [vmem:[#allocation8] sm:$0xff]
        %v716 = vld [vmem:[%s3] sm:$0xf]
        %v717 = vld [vmem:[%s3 + $0x4] sm:$0xf]
        %v718 = vld [vmem:[%s3 + $0x8] sm:$0xf]
        %v719 = vld [vmem:[%s3 + $0xc] sm:$0xf]
        %v720 = vld [vmem:[%s4] sm:$0x1]
        %v722 = vlaneseq
        %v723 = vshrl.u32 %v722, 7
        %v724 = vsub.s32 0, %v723
        %v725 = vrot.slane %v720, %v724
        %v731 = vunpack.c.l.b16 %v716
        %v732 = vunpack.c.l.b16 %v717
        %v733 = vunpack.c.l.b16 %v718
        %v734 = vunpack.c.l.b16 %v719
        %v735 = vpack.c.b16 %v732, %v731
        %v736 = vpack.c.b16 %v734, %v733
        %vm739 = vcmask 261120
        %v741 = vsel %vm739, %v712, 0
        %743 = vmatprep.subr.bf16.mxu0 0
        %744 = vmatpush1.bf16.msra.mxu0 0
        %745 = vmatprep.subr.bf16.mxu0 0
        %746 = vmatpush1.bf16.msra.mxu0 0
        %747 = vmatprep.subr.bf16.mxu0 0
        %748 = vmatpush1.bf16.msra.mxu0 0
        %749 = vmatprep.subr.bf16.mxu0 0
        %750 = vmatpush1.bf16.msra.mxu0 0
        %751 = vmatprep.subr.bf16.mxu0 0
        %752 = vmatpush1.bf16.msra.mxu0 0
        %753 = vmatprep.subr.bf16.mxu0 0
        %754 = vmatpush1.bf16.msra.mxu0 0
        %755 = vmatprep.subr.bf16.mxu0 0
        %756 = vmatpush1.bf16.msra.mxu0 %v736
        %757 = vmatprep.subr.bf16.mxu0 0
        %758 = vmatpush1.bf16.msra.mxu0 %v735
        %759 = vmatprep.subr.bf16.mxu0 0
        %760 = vmatpush2.bf16.msra.mxu0 0
        %761 = vmatprep.subr.bf16.mxu0 0
        %762 = vmatpush2.bf16.msra.mxu0 0
        %763 = vmatprep.subr.bf16.mxu0 0
        %764 = vmatpush2.bf16.msra.mxu0 0
        %765 = vmatprep.subr.bf16.mxu0 0
        %766 = vmatpush2.bf16.msra.mxu0 0
        %767 = vmatprep.subr.bf16.mxu0 0
        %768 = vmatpush2.bf16.msra.mxu0 0
        %769 = vmatprep.subr.bf16.mxu0 0
        %770 = vmatpush2.bf16.msra.mxu0 0
        %771 = vmatprep.subr.bf16.mxu0 0
        %772 = vmatpush2.bf16.msra.mxu0 0
        %773 = vmatprep.subr.bf16.mxu0 0
        %774 = vmatpush2.bf16.msra.mxu0 0
        %775 = vmatprep.mubr.bf16.mxu0 0
        %776 = vmatmul.mubr.bf16.gmra.mxu0 %v741
        %v777 = vpop.f32.mrf.mxu0
        %v778 = vadd.f32 %v725, %v777
        %v779 = vpop.f32.mrf.mxu0
        %v780 = vpop.f32.mrf.mxu0
        %v781 = vpop.f32.mrf.mxu0
        %782 = vdwg.mxu0
        %v783 = vpack.c.bf16 %v778, %v778
        %v784 = vld [vmem:[%s6] sm:$0x1]
        %786 = vrot.lane.b32.xlu0 %v783, 96
        %v787 = vpop.permute.xlu0 %786
        %vm788 = vcmask 64512
        %v790 = vsel %vm788, %v783, 0
        %v793 = vsel %vm788, %v787, 0
        %795 = vmatprep.subr.bf16.mxu0 0
        %796 = vmatpush1.bf16.xpose.msra.mxu0 0
        %797 = vmatprep.subr.bf16.mxu0 0
        %798 = vmatpush1.bf16.xpose.msra.mxu0 0
        %799 = vmatprep.subr.bf16.mxu0 0
        %800 = vmatpush1.bf16.xpose.msra.mxu0 0
        %801 = vmatprep.subr.bf16.mxu0 0
        %802 = vmatpush1.bf16.xpose.msra.mxu0 0
        %803 = vmatprep.subr.bf16.mxu0 0
        %804 = vmatpush1.bf16.xpose.msra.mxu0 0
        %805 = vmatprep.subr.bf16.mxu0 0
        %806 = vmatpush1.bf16.xpose.msra.mxu0 0
        %807 = vmatprep.subr.bf16.mxu0 0
        %808 = vmatpush1.bf16.xpose.msra.mxu0 0
        %809 = vmatprep.subr.bf16.mxu0 0
        %810 = vmatpush1.bf16.xpose.msra.mxu0 %v793
        %811 = vmatprep.subr.bf16.mxu0 0
        %812 = vmatpush2.bf16.xpose.msra.mxu0 0
        %813 = vmatprep.subr.bf16.mxu0 0
        %814 = vmatpush2.bf16.xpose.msra.mxu0 0
        %815 = vmatprep.subr.bf16.mxu0 0
        %816 = vmatpush2.bf16.xpose.msra.mxu0 0
        %817 = vmatprep.subr.bf16.mxu0 0
        %818 = vmatpush2.bf16.xpose.msra.mxu0 0
        %819 = vmatprep.subr.bf16.mxu0 0
        %820 = vmatpush2.bf16.xpose.msra.mxu0 0
        %821 = vmatprep.subr.bf16.mxu0 0
        %822 = vmatpush2.bf16.xpose.msra.mxu0 0
        %823 = vmatprep.subr.bf16.mxu0 0
        %824 = vmatpush2.bf16.xpose.msra.mxu0 0
        %825 = vmatprep.subr.bf16.mxu0 0
        %826 = vmatpush2.bf16.xpose.msra.mxu0 0
        %827 = vmatprep.mubr.bf16.mxu0 0
        %828 = vmatmul.mubr.bf16.gmra.mxu0 %v790
        %v829 = vpop.f32.mrf.mxu0
        %v830 = vadd.f32 %v715, %v829
        %v831 = vpop.f32.mrf.mxu0
        %v832 = vpop.f32.mrf.mxu0
        %v833 = vpop.f32.mrf.mxu0
        %834 = vdwg.mxu0
        %v835 = vsel %vm788, %v830, -inf
        %836 = vmax.xlane.f32.xlu0 %v835
        %v837 = vpop.xlane.xlu0 %836
        %v838 = vsub.f32 %v830, %v837
        %v839 = vmul.f32 %v838, 1.442695
        %v840 = vpow.pop %v839
        %v841 = vsel %vm788, %v840, 0.0
        %842 = vadd.xlane.f32.xlu0 %v841
        %v843 = vpop.xlane.xlu0 %842
        %v844 = vrcp.pop %v843
        %v845 = vmul.f32 %v840, %v844
        %v846 = vpack.c.bf16 %v845, %v845
        %847 = vrot.lane.b32.xlu0 %v783, 64
        %v848 = vpop.permute.xlu0 %847
        %v850 = vsel %vm788, %v846, 0
        %vm852 = vcmask 1043456
        %v854 = vsel %vm852, %v848, 0
        %856 = vmatprep.subr.bf16.mxu0 0
        %857 = vmatpush1.bf16.msra.mxu0 0
        %858 = vmatprep.subr.bf16.mxu0 0
        %859 = vmatpush1.bf16.msra.mxu0 0
        %860 = vmatprep.subr.bf16.mxu0 0
        %861 = vmatpush1.bf16.msra.mxu0 0
        %862 = vmatprep.subr.bf16.mxu0 0
        %863 = vmatpush1.bf16.msra.mxu0 0
        %864 = vmatprep.subr.bf16.mxu0 0
        %865 = vmatpush1.bf16.msra.mxu0 0
        %866 = vmatprep.subr.bf16.mxu0 0
        %867 = vmatpush1.bf16.msra.mxu0 0
        %868 = vmatprep.subr.bf16.mxu0 0
        %869 = vmatpush1.bf16.msra.mxu0 0
        %870 = vmatprep.subr.bf16.mxu0 0
        %871 = vmatpush1.bf16.msra.mxu0 %v854
        %872 = vmatprep.subr.bf16.mxu0 0
        %873 = vmatpush2.bf16.msra.mxu0 0
        %874 = vmatprep.subr.bf16.mxu0 0
        %875 = vmatpush2.bf16.msra.mxu0 0
        %876 = vmatprep.subr.bf16.mxu0 0
        %877 = vmatpush2.bf16.msra.mxu0 0
        %878 = vmatprep.subr.bf16.mxu0 0
        %879 = vmatpush2.bf16.msra.mxu0 0
        %880 = vmatprep.subr.bf16.mxu0 0
        %881 = vmatpush2.bf16.msra.mxu0 0
        %882 = vmatprep.subr.bf16.mxu0 0
        %883 = vmatpush2.bf16.msra.mxu0 0
        %884 = vmatprep.subr.bf16.mxu0 0
        %885 = vmatpush2.bf16.msra.mxu0 0
        %886 = vmatprep.subr.bf16.mxu0 0
        %887 = vmatpush2.bf16.msra.mxu0 0
        %888 = vmatprep.mubr.bf16.mxu0 0
        %889 = vmatmul.mubr.bf16.gmra.mxu0 %v850
        %v890 = vpop.f32.mrf.mxu0
        %v891 = vadd.f32 0.0, %v890
        %v892 = vpop.f32.mrf.mxu0
        %v893 = vpop.f32.mrf.mxu0
        %v894 = vpop.f32.mrf.mxu0
        %895 = vdwg.mxu0
        %896 = vst.msk [vmem:[#allocation2] sm:$0xff] %vm788, %v891
        %897 = vrot.lane.b32.xlu0 %v783, 120
        %v898 = vpop.permute.xlu0 %897
        %899 = vrot.lane.b32.xlu0 %v783, 88
        %v900 = vpop.permute.xlu0 %899
        %v902 = vsel %vm788, %v898, 0
        %v905 = vsel %vm788, %v900, 0
        %907 = vmatprep.subr.bf16.mxu0 0
        %908 = vmatpush1.bf16.xpose.msra.mxu0 0
        %909 = vmatprep.subr.bf16.mxu0 0
        %910 = vmatpush1.bf16.xpose.msra.mxu0 0
        %911 = vmatprep.subr.bf16.mxu0 0
        %912 = vmatpush1.bf16.xpose.msra.mxu0 0
        %913 = vmatprep.subr.bf16.mxu0 0
        %914 = vmatpush1.bf16.xpose.msra.mxu0 0
        %915 = vmatprep.subr.bf16.mxu0 0
        %916 = vmatpush1.bf16.xpose.msra.mxu0 0
        %917 = vmatprep.subr.bf16.mxu0 0
        %918 = vmatpush1.bf16.xpose.msra.mxu0 0
        %919 = vmatprep.subr.bf16.mxu0 0
        %920 = vmatpush1.bf16.xpose.msra.mxu0 0
        %921 = vmatprep.subr.bf16.mxu0 0
        %922 = vmatpush1.bf16.xpose.msra.mxu0 %v905
        %923 = vmatprep.subr.bf16.mxu0 0
        %924 = vmatpush2.bf16.xpose.msra.mxu0 0
        %925 = vmatprep.subr.bf16.mxu0 0
        %926 = vmatpush2.bf16.xpose.msra.mxu0 0
        %927 = vmatprep.subr.bf16.mxu0 0
        %928 = vmatpush2.bf16.xpose.msra.mxu0 0
        %929 = vmatprep.subr.bf16.mxu0 0
        %930 = vmatpush2.bf16.xpose.msra.mxu0 0
        %931 = vmatprep.subr.bf16.mxu0 0
        %932 = vmatpush2.bf16.xpose.msra.mxu0 0
        %933 = vmatprep.subr.bf16.mxu0 0
        %934 = vmatpush2.bf16.xpose.msra.mxu0 0
        %935 = vmatprep.subr.bf16.mxu0 0
        %936 = vmatpush2.bf16.xpose.msra.mxu0 0
        %937 = vmatprep.subr.bf16.mxu0 0
        %938 = vmatpush2.bf16.xpose.msra.mxu0 0
        %939 = vmatprep.mubr.bf16.mxu0 0
        %940 = vmatmul.mubr.bf16.gmra.mxu0 %v902
        %v941 = vpop.f32.mrf.mxu0
        %v942 = vadd.f32 %v715, %v941
        %v943 = vpop.f32.mrf.mxu0
        %v944 = vpop.f32.mrf.mxu0
        %v945 = vpop.f32.mrf.mxu0
        %946 = vdwg.mxu0
        %v947 = vsel %vm788, %v942, -inf
        %948 = vmax.xlane.f32.xlu0 %v947
        %v949 = vpop.xlane.xlu0 %948
        %v950 = vsub.f32 %v942, %v949
        %v951 = vmul.f32 %v950, 1.442695
        %v952 = vpow.pop %v951
        %v953 = vsel %vm788, %v952, 0.0
        %954 = vadd.xlane.f32.xlu0 %v953
        %v955 = vpop.xlane.xlu0 %954
        %v956 = vrcp.pop %v955
        %v957 = vmul.f32 %v952, %v956
        %v958 = vpack.c.bf16 %v957, %v957
        %959 = vrot.lane.b32.xlu0 %v783, 56
        %v960 = vpop.permute.xlu0 %959
        %v962 = vsel %vm788, %v958, 0
        %v965 = vsel %vm852, %v960, 0
        %967 = vmatprep.subr.bf16.mxu0 0
        %968 = vmatpush1.bf16.msra.mxu0 0
        %969 = vmatprep.subr.bf16.mxu0 0
        %970 = vmatpush1.bf16.msra.mxu0 0
        %971 = vmatprep.subr.bf16.mxu0 0
        %972 = vmatpush1.bf16.msra.mxu0 0
        %973 = vmatprep.subr.bf16.mxu0 0
        %974 = vmatpush1.bf16.msra.mxu0 0
        %975 = vmatprep.subr.bf16.mxu0 0
        %976 = vmatpush1.bf16.msra.mxu0 0
        %977 = vmatprep.subr.bf16.mxu0 0
        %978 = vmatpush1.bf16.msra.mxu0 0
        %979 = vmatprep.subr.bf16.mxu0 0
        %980 = vmatpush1.bf16.msra.mxu0 0
        %981 = vmatprep.subr.bf16.mxu0 0
        %982 = vmatpush1.bf16.msra.mxu0 %v965
        %983 = vmatprep.subr.bf16.mxu0 0
        %984 = vmatpush2.bf16.msra.mxu0 0
        %985 = vmatprep.subr.bf16.mxu0 0
        %986 = vmatpush2.bf16.msra.mxu0 0
        %987 = vmatprep.subr.bf16.mxu0 0
        %988 = vmatpush2.bf16.msra.mxu0 0
        %989 = vmatprep.subr.bf16.mxu0 0
        %990 = vmatpush2.bf16.msra.mxu0 0
        %991 = vmatprep.subr.bf16.mxu0 0
        %992 = vmatpush2.bf16.msra.mxu0 0
        %993 = vmatprep.subr.bf16.mxu0 0
        %994 = vmatpush2.bf16.msra.mxu0 0
        %995 = vmatprep.subr.bf16.mxu0 0
        %996 = vmatpush2.bf16.msra.mxu0 0
        %997 = vmatprep.subr.bf16.mxu0 0
        %998 = vmatpush2.bf16.msra.mxu0 0
        %999 = vmatprep.mubr.bf16.mxu0 0
        %1000 = vmatmul.mubr.bf16.gmra.mxu0 %v962
        %v1001 = vpop.f32.mrf.mxu0
        %v1002 = vadd.f32 0.0, %v1001
        %v1003 = vpop.f32.mrf.mxu0
        %v1004 = vpop.f32.mrf.mxu0
        %v1005 = vpop.f32.mrf.mxu0
        %1006 = vdwg.mxu0
        %1008 = vrot.lane.b32.xlu0 %v1002, 8
        %v1009 = vpop.permute.xlu0 %1008
        %vm1011 = vcmask 130112
        %1012 = vst.msk [vmem:[#allocation2] sm:$0xff] %vm1011, %v1009
        %1013 = vrot.lane.b32.xlu0 %v783, 112
        %v1014 = vpop.permute.xlu0 %1013
        %1015 = vrot.lane.b32.xlu0 %v783, 80
        %v1016 = vpop.permute.xlu0 %1015
        %v1018 = vsel %vm788, %v1014, 0
        %v1021 = vsel %vm788, %v1016, 0
        %1023 = vmatprep.subr.bf16.mxu0 0
        %1024 = vmatpush1.bf16.xpose.msra.mxu0 0
        %1025 = vmatprep.subr.bf16.mxu0 0
        %1026 = vmatpush1.bf16.xpose.msra.mxu0 0
        %1027 = vmatprep.subr.bf16.mxu0 0
        %1028 = vmatpush1.bf16.xpose.msra.mxu0 0
        %1029 = vmatprep.subr.bf16.mxu0 0
        %1030 = vmatpush1.bf16.xpose.msra.mxu0 0
        %1031 = vmatprep.subr.bf16.mxu0 0
        %1032 = vmatpush1.bf16.xpose.msra.mxu0 0
        %1033 = vmatprep.subr.bf16.mxu0 0
        %1034 = vmatpush1.bf16.xpose.msra.mxu0 0
        %1035 = vmatprep.subr.bf16.mxu0 0
        %1036 = vmatpush1.bf16.xpose.msra.mxu0 0
        %1037 = vmatprep.subr.bf16.mxu0 0
        %1038 = vmatpush1.bf16.xpose.msra.mxu0 %v1021
        %1039 = vmatprep.subr.bf16.mxu0 0
        %1040 = vmatpush2.bf16.xpose.msra.mxu0 0
        %1041 = vmatprep.subr.bf16.mxu0 0
        %1042 = vmatpush2.bf16.xpose.msra.mxu0 0
        %1043 = vmatprep.subr.bf16.mxu0 0
        %1044 = vmatpush2.bf16.xpose.msra.mxu0 0
        %1045 = vmatprep.subr.bf16.mxu0 0
        %1046 = vmatpush2.bf16.xpose.msra.mxu0 0
        %1047 = vmatprep.subr.bf16.mxu0 0
        %1048 = vmatpush2.bf16.xpose.msra.mxu0 0
        %1049 = vmatprep.subr.bf16.mxu0 0
        %1050 = vmatpush2.bf16.xpose.msra.mxu0 0
        %1051 = vmatprep.subr.bf16.mxu0 0
        %1052 = vmatpush2.bf16.xpose.msra.mxu0 0
        %1053 = vmatprep.subr.bf16.mxu0 0
        %1054 = vmatpush2.bf16.xpose.msra.mxu0 0
        %1055 = vmatprep.mubr.bf16.mxu0 0
        %1056 = vmatmul.mubr.bf16.gmra.mxu0 %v1018
        %v1057 = vpop.f32.mrf.mxu0
        %v1058 = vadd.f32 %v715, %v1057
        %v1059 = vpop.f32.mrf.mxu0
        %v1060 = vpop.f32.mrf.mxu0
        %v1061 = vpop.f32.mrf.mxu0
        %1062 = vdwg.mxu0
        %v1063 = vsel %vm788, %v1058, -inf
        %1064 = vmax.xlane.f32.xlu0 %v1063
        %v1065 = vpop.xlane.xlu0 %1064
        %v1066 = vsub.f32 %v1058, %v1065
        %v1067 = vmul.f32 %v1066, 1.442695
        %v1068 = vpow.pop %v1067
        %v1069 = vsel %vm788, %v1068, 0.0
        %1070 = vadd.xlane.f32.xlu0 %v1069
        %v1071 = vpop.xlane.xlu0 %1070
        %v1072 = vrcp.pop %v1071
        %v1073 = vmul.f32 %v1068, %v1072
        %v1074 = vpack.c.bf16 %v1073, %v1073
        %1075 = vrot.lane.b32.xlu0 %v783, 48
        %v1076 = vpop.permute.xlu0 %1075
        %v1078 = vsel %vm788, %v1074, 0
        %v1081 = vsel %vm852, %v1076, 0
        %1083 = vmatprep.subr.bf16.mxu0 0
        %1084 = vmatpush1.bf16.msra.mxu0 0
        %1085 = vmatprep.subr.bf16.mxu0 0
        %1086 = vmatpush1.bf16.msra.mxu0 0
        %1087 = vmatprep.subr.bf16.mxu0 0
        %1088 = vmatpush1.bf16.msra.mxu0 0
        %1089 = vmatprep.subr.bf16.mxu0 0
        %1090 = vmatpush1.bf16.msra.mxu0 0
        %1091 = vmatprep.subr.bf16.mxu0 0
        %1092 = vmatpush1.bf16.msra.mxu0 0
        %1093 = vmatprep.subr.bf16.mxu0 0
        %1094 = vmatpush1.bf16.msra.mxu0 0
        %1095 = vmatprep.subr.bf16.mxu0 0
        %1096 = vmatpush1.bf16.msra.mxu0 0
        %1097 = vmatprep.subr.bf16.mxu0 0
        %1098 = vmatpush1.bf16.msra.mxu0 %v1081
        %1099 = vmatprep.subr.bf16.mxu0 0
        %1100 = vmatpush2.bf16.msra.mxu0 0
        %1101 = vmatprep.subr.bf16.mxu0 0
        %1102 = vmatpush2.bf16.msra.mxu0 0
        %1103 = vmatprep.subr.bf16.mxu0 0
        %1104 = vmatpush2.bf16.msra.mxu0 0
        %1105 = vmatprep.subr.bf16.mxu0 0
        %1106 = vmatpush2.bf16.msra.mxu0 0
        %1107 = vmatprep.subr.bf16.mxu0 0
        %1108 = vmatpush2.bf16.msra.mxu0 0
        %1109 = vmatprep.subr.bf16.mxu0 0
        %1110 = vmatpush2.bf16.msra.mxu0 0
        %1111 = vmatprep.subr.bf16.mxu0 0
        %1112 = vmatpush2.bf16.msra.mxu0 0
        %1113 = vmatprep.subr.bf16.mxu0 0
        %1114 = vmatpush2.bf16.msra.mxu0 0
        %1115 = vmatprep.mubr.bf16.mxu0 0
        %1116 = vmatmul.mubr.bf16.gmra.mxu0 %v1078
        %v1117 = vpop.f32.mrf.mxu0
        %v1118 = vadd.f32 0.0, %v1117
        %v1119 = vpop.f32.mrf.mxu0
        %v1120 = vpop.f32.mrf.mxu0
        %v1121 = vpop.f32.mrf.mxu0
        %1122 = vdwg.mxu0
        %1124 = vrot.lane.b32.xlu0 %v1118, 16
        %v1125 = vpop.permute.xlu0 %1124
        %vm1127 = vcmask 195712
        %1128 = vst.msk [vmem:[#allocation2] sm:$0xff] %vm1127, %v1125
        %1129 = vrot.lane.b32.xlu0 %v783, 104
        %v1130 = vpop.permute.xlu0 %1129
        %1131 = vrot.lane.b32.xlu0 %v783, 72
        %v1132 = vpop.permute.xlu0 %1131
        %v1134 = vsel %vm788, %v1130, 0
        %v1137 = vsel %vm788, %v1132, 0
        %1139 = vmatprep.subr.bf16.mxu0 0
        %1140 = vmatpush1.bf16.xpose.msra.mxu0 0
        %1141 = vmatprep.subr.bf16.mxu0 0
        %1142 = vmatpush1.bf16.xpose.msra.mxu0 0
        %1143 = vmatprep.subr.bf16.mxu0 0
        %1144 = vmatpush1.bf16.xpose.msra.mxu0 0
        %1145 = vmatprep.subr.bf16.mxu0 0
        %1146 = vmatpush1.bf16.xpose.msra.mxu0 0
        %1147 = vmatprep.subr.bf16.mxu0 0
        %1148 = vmatpush1.bf16.xpose.msra.mxu0 0
        %1149 = vmatprep.subr.bf16.mxu0 0
        %1150 = vmatpush1.bf16.xpose.msra.mxu0 0
        %1151 = vmatprep.subr.bf16.mxu0 0
        %1152 = vmatpush1.bf16.xpose.msra.mxu0 0
        %1153 = vmatprep.subr.bf16.mxu0 0
        %1154 = vmatpush1.bf16.xpose.msra.mxu0 %v1137
        %1155 = vmatprep.subr.bf16.mxu0 0
        %1156 = vmatpush2.bf16.xpose.msra.mxu0 0
        %1157 = vmatprep.subr.bf16.mxu0 0
        %1158 = vmatpush2.bf16.xpose.msra.mxu0 0
        %1159 = vmatprep.subr.bf16.mxu0 0
        %1160 = vmatpush2.bf16.xpose.msra.mxu0 0
        %1161 = vmatprep.subr.bf16.mxu0 0
        %1162 = vmatpush2.bf16.xpose.msra.mxu0 0
        %1163 = vmatprep.subr.bf16.mxu0 0
        %1164 = vmatpush2.bf16.xpose.msra.mxu0 0
        %1165 = vmatprep.subr.bf16.mxu0 0
        %1166 = vmatpush2.bf16.xpose.msra.mxu0 0
        %1167 = vmatprep.subr.bf16.mxu0 0
        %1168 = vmatpush2.bf16.xpose.msra.mxu0 0
        %1169 = vmatprep.subr.bf16.mxu0 0
        %1170 = vmatpush2.bf16.xpose.msra.mxu0 0
        %1171 = vmatprep.mubr.bf16.mxu0 0
        %1172 = vmatmul.mubr.bf16.gmra.mxu0 %v1134
        %v1173 = vpop.f32.mrf.mxu0
        %v1174 = vadd.f32 %v715, %v1173
        %v1175 = vpop.f32.mrf.mxu0
        %v1176 = vpop.f32.mrf.mxu0
        %v1177 = vpop.f32.mrf.mxu0
        %1178 = vdwg.mxu0
        %v1179 = vsel %vm788, %v1174, -inf
        %1180 = vmax.xlane.f32.xlu0 %v1179
        %v1181 = vpop.xlane.xlu0 %1180
        %v1182 = vsub.f32 %v1174, %v1181
        %v1183 = vmul.f32 %v1182, 1.442695
        %v1184 = vpow.pop %v1183
        %v1185 = vsel %vm788, %v1184, 0.0
        %1186 = vadd.xlane.f32.xlu0 %v1185
        %v1187 = vpop.xlane.xlu0 %1186
        %v1188 = vrcp.pop %v1187
        %v1189 = vmul.f32 %v1184, %v1188
        %v1190 = vpack.c.bf16 %v1189, %v1189
        %1191 = vrot.lane.b32.xlu0 %v783, 40
        %v1192 = vpop.permute.xlu0 %1191
        %v1194 = vsel %vm788, %v1190, 0
        %v1197 = vsel %vm852, %v1192, 0
        %1199 = vmatprep.subr.bf16.mxu0 0
        %1200 = vmatpush1.bf16.msra.mxu0 0
        %1201 = vmatprep.subr.bf16.mxu0 0
        %1202 = vmatpush1.bf16.msra.mxu0 0
        %1203 = vmatprep.subr.bf16.mxu0 0
        %1204 = vmatpush1.bf16.msra.mxu0 0
        %1205 = vmatprep.subr.bf16.mxu0 0
        %1206 = vmatpush1.bf16.msra.mxu0 0
        %1207 = vmatprep.subr.bf16.mxu0 0
        %1208 = vmatpush1.bf16.msra.mxu0 0
        %1209 = vmatprep.subr.bf16.mxu0 0
        %1210 = vmatpush1.bf16.msra.mxu0 0
        %1211 = vmatprep.subr.bf16.mxu0 0
        %1212 = vmatpush1.bf16.msra.mxu0 0
        %1213 = vmatprep.subr.bf16.mxu0 0
        %1214 = vmatpush1.bf16.msra.mxu0 %v1197
        %1215 = vmatprep.subr.bf16.mxu0 0
        %1216 = vmatpush2.bf16.msra.mxu0 0
        %1217 = vmatprep.subr.bf16.mxu0 0
        %1218 = vmatpush2.bf16.msra.mxu0 0
        %1219 = vmatprep.subr.bf16.mxu0 0
        %1220 = vmatpush2.bf16.msra.mxu0 0
        %1221 = vmatprep.subr.bf16.mxu0 0
        %1222 = vmatpush2.bf16.msra.mxu0 0
        %1223 = vmatprep.subr.bf16.mxu0 0
        %1224 = vmatpush2.bf16.msra.mxu0 0
        %1225 = vmatprep.subr.bf16.mxu0 0
        %1226 = vmatpush2.bf16.msra.mxu0 0
        %1227 = vmatprep.subr.bf16.mxu0 0
        %1228 = vmatpush2.bf16.msra.mxu0 0
        %1229 = vmatprep.subr.bf16.mxu0 0
        %1230 = vmatpush2.bf16.msra.mxu0 0
        %1231 = vmatprep.mubr.bf16.mxu0 0
        %1232 = vmatmul.mubr.bf16.gmra.mxu0 %v1194
        %v1233 = vpop.f32.mrf.mxu0
        %v1234 = vadd.f32 0.0, %v1233
        %v1235 = vpop.f32.mrf.mxu0
        %v1236 = vpop.f32.mrf.mxu0
        %v1237 = vpop.f32.mrf.mxu0
        %1238 = vdwg.mxu0
        %1240 = vrot.lane.b32.xlu0 %v1234, 24
        %v1241 = vpop.permute.xlu0 %1240
        %vm1243 = vcmask 261312
        %1244 = vst.msk [vmem:[#allocation2] sm:$0xff] %vm1243, %v1241
        %v1245 = vld [vmem:[#allocation2] sm:$0xff]
        %v1246 = vpack.c.bf16 %v1245, %v1245
        %v1247 = vld [vmem:[%s5] sm:$0xf]
        %v1248 = vld [vmem:[%s5 + $0x4] sm:$0xf]
        %v1249 = vld [vmem:[%s5 + $0x8] sm:$0xf]
        %v1250 = vld [vmem:[%s5 + $0xc] sm:$0xf]
        %v1252 = vlaneseq
        %v1253 = vshrl.u32 %v1252, 7
        %v1254 = vsub.s32 0, %v1253
        %v1255 = vrot.slane %v784, %v1254
        %v1261 = vunpack.c.l.b16 %v1247
        %v1262 = vunpack.c.l.b16 %v1248
        %v1263 = vunpack.c.l.b16 %v1249
        %v1264 = vunpack.c.l.b16 %v1250
        %v1265 = vpack.c.b16 %v1262, %v1261
        %v1266 = vpack.c.b16 %v1264, %v1263
        %v1270 = vsel %vm739, %v1246, 0
        %1272 = vmatprep.subr.bf16.mxu0 0
        %1273 = vmatpush1.bf16.msra.mxu0 0
        %1274 = vmatprep.subr.bf16.mxu0 0
        %1275 = vmatpush1.bf16.msra.mxu0 0
        %1276 = vmatprep.subr.bf16.mxu0 0
        %1277 = vmatpush1.bf16.msra.mxu0 0
        %1278 = vmatprep.subr.bf16.mxu0 0
        %1279 = vmatpush1.bf16.msra.mxu0 0
        %1280 = vmatprep.subr.bf16.mxu0 0
        %1281 = vmatpush1.bf16.msra.mxu0 0
        %1282 = vmatprep.subr.bf16.mxu0 0
        %1283 = vmatpush1.bf16.msra.mxu0 0
        %1284 = vmatprep.subr.bf16.mxu0 0
        %1285 = vmatpush1.bf16.msra.mxu0 %v1266
        %1286 = vmatprep.subr.bf16.mxu0 0
        %1287 = vmatpush1.bf16.msra.mxu0 %v1265
        %1288 = vmatprep.subr.bf16.mxu0 0
        %1289 = vmatpush2.bf16.msra.mxu0 0
        %1290 = vmatprep.subr.bf16.mxu0 0
        %1291 = vmatpush2.bf16.msra.mxu0 0
        %1292 = vmatprep.subr.bf16.mxu0 0
        %1293 = vmatpush2.bf16.msra.mxu0 0
        %1294 = vmatprep.subr.bf16.mxu0 0
        %1295 = vmatpush2.bf16.msra.mxu0 0
        %1296 = vmatprep.subr.bf16.mxu0 0
        %1297 = vmatpush2.bf16.msra.mxu0 0
        %1298 = vmatprep.subr.bf16.mxu0 0
        %1299 = vmatpush2.bf16.msra.mxu0 0
        %1300 = vmatprep.subr.bf16.mxu0 0
        %1301 = vmatpush2.bf16.msra.mxu0 0
        %1302 = vmatprep.subr.bf16.mxu0 0
        %1303 = vmatpush2.bf16.msra.mxu0 0
        %1304 = vmatprep.mubr.bf16.mxu0 0
        %1305 = vmatmul.mubr.bf16.gmra.mxu0 %v1270
        %v1306 = vpop.f32.mrf.mxu0
        %v1307 = vadd.f32 %v1255, %v1306
        %v1308 = vpop.f32.mrf.mxu0
        %v1309 = vpop.f32.mrf.mxu0
        %v1310 = vpop.f32.mrf.mxu0
        %1311 = vdwg.mxu0
        %v1312 = vadd.f32 %v713, %v1307
        %v1313 = vld [vmem:[%s13] sm:$0x1]
        %v1314 = vld [vmem:[%s14] sm:$0x1]
        %v1315 = vsel %vm739, %v1312, 0.0
        %1316 = vadd.xlane.f32.xlu0 %v1315
        %v1317 = vpop.xlane.xlu0 %1316
        %v1318 = vrcp.pop 32.0
        %v1319 = vmul.f32 %v1317, %v1318
        %v1320 = vsub.f32 %v1312, %v1319
        %v1321 = vmul.f32 %v1320, %v1320
        %v1322 = vsel %vm739, %v1321, 0.0
        %1323 = vadd.xlane.f32.xlu0 %v1322
        %v1324 = vpop.xlane.xlu0 %1323
        %v1325 = vmul.f32 %v1324, %v1318
        %v1326 = vadd.f32 %v1325, 1e-05
        %v1327 = vrsqrt.pop %v1326
        %v1328 = vmul.f32 %v1320, %v1327
        %v1329 = vlaneseq
        %v1330 = vshrl.u32 %v1329, 7
        %v1331 = vsub.s32 0, %v1330
        %v1332 = vrot.slane %v1313, %v1331
        %v1333 = vmul.f32 %v1328, %v1332
        %v1334 = vlaneseq
        %v1335 = vshrl.u32 %v1334, 7
        %v1336 = vsub.s32 0, %v1335
        %v1337 = vrot.slane %v1314, %v1336
        %v1338 = vadd.f32 %v1333, %v1337
        %v1339 = vpack.c.bf16 %v1338, %v1338
        %v1340 = vld [vmem:[%s7] sm:$0xf]
        %v1341 = vld [vmem:[%s7 + $0x4] sm:$0xf]
        %v1342 = vld [vmem:[%s7 + $0x8] sm:$0xf]
        %v1343 = vld [vmem:[%s7 + $0xc] sm:$0xf]
        %v1344 = vld [vmem:[%s8] sm:$0x1]
        %v1346 = vlaneseq
        %v1347 = vshrl.u32 %v1346, 7
        %v1348 = vsub.s32 0, %v1347
        %v1349 = vrot.slane %v1344, %v1348
        %v1355 = vunpack.c.l.b16 %v1340
        %v1356 = vunpack.c.l.b16 %v1341
        %v1357 = vunpack.c.l.b16 %v1342
        %v1358 = vunpack.c.l.b16 %v1343
        %v1359 = vpack.c.b16 %v1356, %v1355
        %v1360 = vpack.c.b16 %v1358, %v1357
        %v1364 = vsel %vm739, %v1339, 0
        %1366 = vmatprep.subr.bf16.mxu0 0
        %1367 = vmatpush1.bf16.msra.mxu0 0
        %1368 = vmatprep.subr.bf16.mxu0 0
        %1369 = vmatpush1.bf16.msra.mxu0 0
        %1370 = vmatprep.subr.bf16.mxu0 0
        %1371 = vmatpush1.bf16.msra.mxu0 0
        %1372 = vmatprep.subr.bf16.mxu0 0
        %1373 = vmatpush1.bf16.msra.mxu0 0
        %1374 = vmatprep.subr.bf16.mxu0 0
        %1375 = vmatpush1.bf16.msra.mxu0 0
        %1376 = vmatprep.subr.bf16.mxu0 0
        %1377 = vmatpush1.bf16.msra.mxu0 0
        %1378 = vmatprep.subr.bf16.mxu0 0
        %1379 = vmatpush1.bf16.msra.mxu0 %v1360
        %1380 = vmatprep.subr.bf16.mxu0 0
        %1381 = vmatpush1.bf16.msra.mxu0 %v1359
        %1382 = vmatprep.subr.bf16.mxu0 0
        %1383 = vmatpush2.bf16.msra.mxu0 0
        %1384 = vmatprep.subr.bf16.mxu0 0
        %1385 = vmatpush2.bf16.msra.mxu0 0
        %1386 = vmatprep.subr.bf16.mxu0 0
        %1387 = vmatpush2.bf16.msra.mxu0 0
        %1388 = vmatprep.subr.bf16.mxu0 0
        %1389 = vmatpush2.bf16.msra.mxu0 0
        %1390 = vmatprep.subr.bf16.mxu0 0
        %1391 = vmatpush2.bf16.msra.mxu0 0
        %1392 = vmatprep.subr.bf16.mxu0 0
        %1393 = vmatpush2.bf16.msra.mxu0 0
        %1394 = vmatprep.subr.bf16.mxu0 0
        %1395 = vmatpush2.bf16.msra.mxu0 0
        %1396 = vmatprep.subr.bf16.mxu0 0
        %1397 = vmatpush2.bf16.msra.mxu0 0
        %1398 = vmatprep.mubr.bf16.mxu0 0
        %1399 = vmatmul.mubr.bf16.gmra.mxu0 %v1364
        %v1400 = vpop.f32.mrf.mxu0
        %v1401 = vadd.f32 %v1349, %v1400
        %v1402 = vpop.f32.mrf.mxu0
        %v1403 = vpop.f32.mrf.mxu0
        %v1404 = vpop.f32.mrf.mxu0
        %1405 = vdwg.mxu0
        %v1406 = vpack.c.bf16 %v1401, %v1401
        %v1407 = vld [vmem:[#allocation9] sm:$0xf]
        %v1408 = vld [vmem:[#allocation9 + $0x4] sm:$0xf]
        %v1409 = vld [vmem:[#allocation9 + $0x8] sm:$0xf]
        %v1410 = vld [vmem:[#allocation9 + $0xc] sm:$0xf]
        %v1411 = vld [vmem:[%s10] sm:$0x1]
        %v1413 = vlaneseq
        %v1414 = vshrl.u32 %v1413, 7
        %v1415 = vsub.s32 0, %v1414
        %v1416 = vrot.slane %v1411, %v1415
        %v1422 = vunpack.c.l.b16 %v1407
        %v1423 = vunpack.c.l.b16 %v1408
        %v1424 = vunpack.c.l.b16 %v1409
        %v1425 = vunpack.c.l.b16 %v1410
        %v1426 = vpack.c.b16 %v1423, %v1422
        %v1427 = vpack.c.b16 %v1425, %v1424
        %v1431 = vsel %vm739, %v714, 0
        %1433 = vmatprep.subr.bf16.mxu0 0
        %1434 = vmatpush1.bf16.msra.mxu0 0
        %1435 = vmatprep.subr.bf16.mxu0 0
        %1436 = vmatpush1.bf16.msra.mxu0 0
        %1437 = vmatprep.subr.bf16.mxu0 0
        %1438 = vmatpush1.bf16.msra.mxu0 0
        %1439 = vmatprep.subr.bf16.mxu0 0
        %1440 = vmatpush1.bf16.msra.mxu0 0
        %1441 = vmatprep.subr.bf16.mxu0 0
        %1442 = vmatpush1.bf16.msra.mxu0 0
        %1443 = vmatprep.subr.bf16.mxu0 0
        %1444 = vmatpush1.bf16.msra.mxu0 0
        %1445 = vmatprep.subr.bf16.mxu0 0
        %1446 = vmatpush1.bf16.msra.mxu0 %v1427
        %1447 = vmatprep.subr.bf16.mxu0 0
        %1448 = vmatpush1.bf16.msra.mxu0 %v1426
        %1449 = vmatprep.subr.bf16.mxu0 0
        %1450 = vmatpush2.bf16.msra.mxu0 0
        %1451 = vmatprep.subr.bf16.mxu0 0
        %1452 = vmatpush2.bf16.msra.mxu0 0
        %1453 = vmatprep.subr.bf16.mxu0 0
        %1454 = vmatpush2.bf16.msra.mxu0 0
        %1455 = vmatprep.subr.bf16.mxu0 0
        %1456 = vmatpush2.bf16.msra.mxu0 0
        %1457 = vmatprep.subr.bf16.mxu0 0
        %1458 = vmatpush2.bf16.msra.mxu0 0
        %1459 = vmatprep.subr.bf16.mxu0 0
        %1460 = vmatpush2.bf16.msra.mxu0 0
        %1461 = vmatprep.subr.bf16.mxu0 0
        %1462 = vmatpush2.bf16.msra.mxu0 0
        %1463 = vmatprep.subr.bf16.mxu0 0
        %1464 = vmatpush2.bf16.msra.mxu0 0
        %1465 = vmatprep.mubr.bf16.mxu0 0
        %1466 = vmatmul.mubr.bf16.gmra.mxu0 %v1431
        %v1467 = vpop.f32.mrf.mxu0
        %v1468 = vadd.f32 %v1416, %v1467
        %v1469 = vpop.f32.mrf.mxu0
        %v1470 = vpop.f32.mrf.mxu0
        %v1471 = vpop.f32.mrf.mxu0
        %1472 = vdwg.mxu0
        %v1473 = vpack.c.bf16 %v1468, %v1468
        %v1474 = vld [vmem:[%s12] sm:$0x1]
        %v1476 = vsel %vm788, %v1406, 0
        %v1479 = vsel %vm788, %v1473, 0
        %1481 = vmatprep.subr.bf16.mxu0 0
        %1482 = vmatpush1.bf16.xpose.msra.mxu0 0
        %1483 = vmatprep.subr.bf16.mxu0 0
        %1484 = vmatpush1.bf16.xpose.msra.mxu0 0
        %1485 = vmatprep.subr.bf16.mxu0 0
        %1486 = vmatpush1.bf16.xpose.msra.mxu0 0
        %1487 = vmatprep.subr.bf16.mxu0 0
        %1488 = vmatpush1.bf16.xpose.msra.mxu0 0
        %1489 = vmatprep.subr.bf16.mxu0 0
        %1490 = vmatpush1.bf16.xpose.msra.mxu0 0
        %1491 = vmatprep.subr.bf16.mxu0 0
        %1492 = vmatpush1.bf16.xpose.msra.mxu0 0
        %1493 = vmatprep.subr.bf16.mxu0 0
        %1494 = vmatpush1.bf16.xpose.msra.mxu0 0
        %1495 = vmatprep.subr.bf16.mxu0 0
        %1496 = vmatpush1.bf16.xpose.msra.mxu0 %v1479
        %1497 = vmatprep.subr.bf16.mxu0 0
        %1498 = vmatpush2.bf16.xpose.msra.mxu0 0
        %1499 = vmatprep.subr.bf16.mxu0 0
        %1500 = vmatpush2.bf16.xpose.msra.mxu0 0
        %1501 = vmatprep.subr.bf16.mxu0 0
        %1502 = vmatpush2.bf16.xpose.msra.mxu0 0
        %1503 = vmatprep.subr.bf16.mxu0 0
        %1504 = vmatpush2.bf16.xpose.msra.mxu0 0
        %1505 = vmatprep.subr.bf16.mxu0 0
        %1506 = vmatpush2.bf16.xpose.msra.mxu0 0
        %1507 = vmatprep.subr.bf16.mxu0 0
        %1508 = vmatpush2.bf16.xpose.msra.mxu0 0
        %1509 = vmatprep.subr.bf16.mxu0 0
        %1510 = vmatpush2.bf16.xpose.msra.mxu0 0
        %1511 = vmatprep.subr.bf16.mxu0 0
        %1512 = vmatpush2.bf16.xpose.msra.mxu0 0
        %1513 = vmatprep.mubr.bf16.mxu0 0
        %1514 = vmatmul.mubr.bf16.gmra.mxu0 %v1476
        %v1515 = vpop.f32.mrf.mxu0
        %v1516 = vadd.f32 0.0, %v1515
        %v1517 = vpop.f32.mrf.mxu0
        %v1518 = vpop.f32.mrf.mxu0
        %v1519 = vpop.f32.mrf.mxu0
        %1520 = vdwg.mxu0
        %v1521 = vsel %vm788, %v1516, -inf
        %1522 = vmax.xlane.f32.xlu0 %v1521
        %v1523 = vpop.xlane.xlu0 %1522
        %v1524 = vsub.f32 %v1516, %v1523
        %v1525 = vmul.f32 %v1524, 1.442695
        %v1526 = vpow.pop %v1525
        %v1527 = vsel %vm788, %v1526, 0.0
        %1528 = vadd.xlane.f32.xlu0 %v1527
        %v1529 = vpop.xlane.xlu0 %1528
        %v1530 = vrcp.pop %v1529
        %v1531 = vmul.f32 %v1526, %v1530
        %v1532 = vpack.c.bf16 %v1531, %v1531
        %1534 = vrot.lane.b32.xlu0 %v1473, 96
        %v1535 = vpop.permute.xlu0 %1534
        %v1537 = vsel %vm788, %v1532, 0
        %v1540 = vsel %vm852, %v1535, 0
        %1542 = vmatprep.subr.bf16.mxu0 0
        %1543 = vmatpush1.bf16.msra.mxu0 0
        %1544 = vmatprep.subr.bf16.mxu0 0
        %1545 = vmatpush1.bf16.msra.mxu0 0
        %1546 = vmatprep.subr.bf16.mxu0 0
        %1547 = vmatpush1.bf16.msra.mxu0 0
        %1548 = vmatprep.subr.bf16.mxu0 0
        %1549 = vmatpush1.bf16.msra.mxu0 0
        %1550 = vmatprep.subr.bf16.mxu0 0
        %1551 = vmatpush1.bf16.msra.mxu0 0
        %1552 = vmatprep.subr.bf16.mxu0 0
        %1553 = vmatpush1.bf16.msra.mxu0 0
        %1554 = vmatprep.subr.bf16.mxu0 0
        %1555 = vmatpush1.bf16.msra.mxu0 0
        %1556 = vmatprep.subr.bf16.mxu0 0
        %1557 = vmatpush1.bf16.msra.mxu0 %v1540
        %1558 = vmatprep.subr.bf16.mxu0 0
        %1559 = vmatpush2.bf16.msra.mxu0 0
        %1560 = vmatprep.subr.bf16.mxu0 0
        %1561 = vmatpush2.bf16.msra.mxu0 0
        %1562 = vmatprep.subr.bf16.mxu0 0
        %1563 = vmatpush2.bf16.msra.mxu0 0
        %1564 = vmatprep.subr.bf16.mxu0 0
        %1565 = vmatpush2.bf16.msra.mxu0 0
        %1566 = vmatprep.subr.bf16.mxu0 0
        %1567 = vmatpush2.bf16.msra.mxu0 0
        %1568 = vmatprep.subr.bf16.mxu0 0
        %1569 = vmatpush2.bf16.msra.mxu0 0
        %1570 = vmatprep.subr.bf16.mxu0 0
        %1571 = vmatpush2.bf16.msra.mxu0 0
        %1572 = vmatprep.subr.bf16.mxu0 0
        %1573 = vmatpush2.bf16.msra.mxu0 0
        %1574 = vmatprep.mubr.bf16.mxu0 0
        %1575 = vmatmul.mubr.bf16.gmra.mxu0 %v1537
        %v1576 = vpop.f32.mrf.mxu0
        %v1577 = vadd.f32 0.0, %v1576
        %v1578 = vpop.f32.mrf.mxu0
        %v1579 = vpop.f32.mrf.mxu0
        %v1580 = vpop.f32.mrf.mxu0
        %1581 = vdwg.mxu0
        %1582 = vst.msk [vmem:[#allocation2] sm:$0xff] %vm788, %v1577
        %1584 = vrot.lane.b32.xlu0 %v1406, 120
        %v1585 = vpop.permute.xlu0 %1584
        %1586 = vrot.lane.b32.xlu0 %v1473, 120
        %v1587 = vpop.permute.xlu0 %1586
        %v1589 = vsel %vm788, %v1585, 0
        %v1592 = vsel %vm788, %v1587, 0
        %1594 = vmatprep.subr.bf16.mxu0 0
        %1595 = vmatpush1.bf16.xpose.msra.mxu0 0
        %1596 = vmatprep.subr.bf16.mxu0 0
        %1597 = vmatpush1.bf16.xpose.msra.mxu0 0
        %1598 = vmatprep.subr.bf16.mxu0 0
        %1599 = vmatpush1.bf16.xpose.msra.mxu0 0
        %1600 = vmatprep.subr.bf16.mxu0 0
        %1601 = vmatpush1.bf16.xpose.msra.mxu0 0
        %1602 = vmatprep.subr.bf16.mxu0 0
        %1603 = vmatpush1.bf16.xpose.msra.mxu0 0
        %1604 = vmatprep.subr.bf16.mxu0 0
        %1605 = vmatpush1.bf16.xpose.msra.mxu0 0
        %1606 = vmatprep.subr.bf16.mxu0 0
        %1607 = vmatpush1.bf16.xpose.msra.mxu0 0
        %1608 = vmatprep.subr.bf16.mxu0 0
        %1609 = vmatpush1.bf16.xpose.msra.mxu0 %v1592
        %1610 = vmatprep.subr.bf16.mxu0 0
        %1611 = vmatpush2.bf16.xpose.msra.mxu0 0
        %1612 = vmatprep.subr.bf16.mxu0 0
        %1613 = vmatpush2.bf16.xpose.msra.mxu0 0
        %1614 = vmatprep.subr.bf16.mxu0 0
        %1615 = vmatpush2.bf16.xpose.msra.mxu0 0
        %1616 = vmatprep.subr.bf16.mxu0 0
        %1617 = vmatpush2.bf16.xpose.msra.mxu0 0
        %1618 = vmatprep.subr.bf16.mxu0 0
        %1619 = vmatpush2.bf16.xpose.msra.mxu0 0
        %1620 = vmatprep.subr.bf16.mxu0 0
        %1621 = vmatpush2.bf16.xpose.msra.mxu0 0
        %1622 = vmatprep.subr.bf16.mxu0 0
        %1623 = vmatpush2.bf16.xpose.msra.mxu0 0
        %1624 = vmatprep.subr.bf16.mxu0 0
        %1625 = vmatpush2.bf16.xpose.msra.mxu0 0
        %1626 = vmatprep.mubr.bf16.mxu0 0
        %1627 = vmatmul.mubr.bf16.gmra.mxu0 %v1589
        %v1628 = vpop.f32.mrf.mxu0
        %v1629 = vadd.f32 0.0, %v1628
        %v1630 = vpop.f32.mrf.mxu0
        %v1631 = vpop.f32.mrf.mxu0
        %v1632 = vpop.f32.mrf.mxu0
        %1633 = vdwg.mxu0
        %v1634 = vsel %vm788, %v1629, -inf
        %1635 = vmax.xlane.f32.xlu0 %v1634
        %v1636 = vpop.xlane.xlu0 %1635
        %v1637 = vsub.f32 %v1629, %v1636
        %v1638 = vmul.f32 %v1637, 1.442695
        %v1639 = vpow.pop %v1638
        %v1640 = vsel %vm788, %v1639, 0.0
        %1641 = vadd.xlane.f32.xlu0 %v1640
        %v1642 = vpop.xlane.xlu0 %1641
        %v1643 = vrcp.pop %v1642
        %v1644 = vmul.f32 %v1639, %v1643
        %v1645 = vpack.c.bf16 %v1644, %v1644
        %1646 = vrot.lane.b32.xlu0 %v1473, 88
        %v1647 = vpop.permute.xlu0 %1646
        %v1649 = vsel %vm788, %v1645, 0
        %v1652 = vsel %vm852, %v1647, 0
        %1654 = vmatprep.subr.bf16.mxu0 0
        %1655 = vmatpush1.bf16.msra.mxu0 0
        %1656 = vmatprep.subr.bf16.mxu0 0
        %1657 = vmatpush1.bf16.msra.mxu0 0
        %1658 = vmatprep.subr.bf16.mxu0 0
        %1659 = vmatpush1.bf16.msra.mxu0 0
        %1660 = vmatprep.subr.bf16.mxu0 0
        %1661 = vmatpush1.bf16.msra.mxu0 0
        %1662 = vmatprep.subr.bf16.mxu0 0
        %1663 = vmatpush1.bf16.msra.mxu0 0
        %1664 = vmatprep.subr.bf16.mxu0 0
        %1665 = vmatpush1.bf16.msra.mxu0 0
        %1666 = vmatprep.subr.bf16.mxu0 0
        %1667 = vmatpush1.bf16.msra.mxu0 0
        %1668 = vmatprep.subr.bf16.mxu0 0
        %1669 = vmatpush1.bf16.msra.mxu0 %v1652
        %1670 = vmatprep.subr.bf16.mxu0 0
        %1671 = vmatpush2.bf16.msra.mxu0 0
        %1672 = vmatprep.subr.bf16.mxu0 0
        %1673 = vmatpush2.bf16.msra.mxu0 0
        %1674 = vmatprep.subr.bf16.mxu0 0
        %1675 = vmatpush2.bf16.msra.mxu0 0
        %1676 = vmatprep.subr.bf16.mxu0 0
        %1677 = vmatpush2.bf16.msra.mxu0 0
        %1678 = vmatprep.subr.bf16.mxu0 0
        %1679 = vmatpush2.bf16.msra.mxu0 0
        %1680 = vmatprep.subr.bf16.mxu0 0
        %1681 = vmatpush2.bf16.msra.mxu0 0
        %1682 = vmatprep.subr.bf16.mxu0 0
        %1683 = vmatpush2.bf16.msra.mxu0 0
        %1684 = vmatprep.subr.bf16.mxu0 0
        %1685 = vmatpush2.bf16.msra.mxu0 0
        %1686 = vmatprep.mubr.bf16.mxu0 0
        %1687 = vmatmul.mubr.bf16.gmra.mxu0 %v1649
        %v1688 = vpop.f32.mrf.mxu0
        %v1689 = vadd.f32 0.0, %v1688
        %v1690 = vpop.f32.mrf.mxu0
        %v1691 = vpop.f32.mrf.mxu0
        %v1692 = vpop.f32.mrf.mxu0
        %1693 = vdwg.mxu0
        %1695 = vrot.lane.b32.xlu0 %v1689, 8
        %v1696 = vpop.permute.xlu0 %1695
        %1698 = vst.msk [vmem:[#allocation2] sm:$0xff] %vm1011, %v1696
        %1699 = vrot.lane.b32.xlu0 %v1406, 112
        %v1700 = vpop.permute.xlu0 %1699
        %1701 = vrot.lane.b32.xlu0 %v1473, 112
        %v1702 = vpop.permute.xlu0 %1701
        %v1704 = vsel %vm788, %v1700, 0
        %v1707 = vsel %vm788, %v1702, 0
        %1709 = vmatprep.subr.bf16.mxu0 0
        %1710 = vmatpush1.bf16.xpose.msra.mxu0 0
        %1711 = vmatprep.subr.bf16.mxu0 0
        %1712 = vmatpush1.bf16.xpose.msra.mxu0 0
        %1713 = vmatprep.subr.bf16.mxu0 0
        %1714 = vmatpush1.bf16.xpose.msra.mxu0 0
        %1715 = vmatprep.subr.bf16.mxu0 0
        %1716 = vmatpush1.bf16.xpose.msra.mxu0 0
        %1717 = vmatprep.subr.bf16.mxu0 0
        %1718 = vmatpush1.bf16.xpose.msra.mxu0 0
        %1719 = vmatprep.subr.bf16.mxu0 0
        %1720 = vmatpush1.bf16.xpose.msra.mxu0 0
        %1721 = vmatprep.subr.bf16.mxu0 0
        %1722 = vmatpush1.bf16.xpose.msra.mxu0 0
        %1723 = vmatprep.subr.bf16.mxu0 0
        %1724 = vmatpush1.bf16.xpose.msra.mxu0 %v1707
        %1725 = vmatprep.subr.bf16.mxu0 0
        %1726 = vmatpush2.bf16.xpose.msra.mxu0 0
        %1727 = vmatprep.subr.bf16.mxu0 0
        %1728 = vmatpush2.bf16.xpose.msra.mxu0 0
        %1729 = vmatprep.subr.bf16.mxu0 0
        %1730 = vmatpush2.bf16.xpose.msra.mxu0 0
        %1731 = vmatprep.subr.bf16.mxu0 0
        %1732 = vmatpush2.bf16.xpose.msra.mxu0 0
        %1733 = vmatprep.subr.bf16.mxu0 0
        %1734 = vmatpush2.bf16.xpose.msra.mxu0 0
        %1735 = vmatprep.subr.bf16.mxu0 0
        %1736 = vmatpush2.bf16.xpose.msra.mxu0 0
        %1737 = vmatprep.subr.bf16.mxu0 0
        %1738 = vmatpush2.bf16.xpose.msra.mxu0 0
        %1739 = vmatprep.subr.bf16.mxu0 0
        %1740 = vmatpush2.bf16.xpose.msra.mxu0 0
        %1741 = vmatprep.mubr.bf16.mxu0 0
        %1742 = vmatmul.mubr.bf16.gmra.mxu0 %v1704
        %v1743 = vpop.f32.mrf.mxu0
        %v1744 = vadd.f32 0.0, %v1743
        %v1745 = vpop.f32.mrf.mxu0
        %v1746 = vpop.f32.mrf.mxu0
        %v1747 = vpop.f32.mrf.mxu0
        %1748 = vdwg.mxu0
        %v1749 = vsel %vm788, %v1744, -inf
        %1750 = vmax.xlane.f32.xlu0 %v1749
        %v1751 = vpop.xlane.xlu0 %1750
        %v1752 = vsub.f32 %v1744, %v1751
        %v1753 = vmul.f32 %v1752, 1.442695
        %v1754 = vpow.pop %v1753
        %v1755 = vsel %vm788, %v1754, 0.0
        %1756 = vadd.xlane.f32.xlu0 %v1755
        %v1757 = vpop.xlane.xlu0 %1756
        %v1758 = vrcp.pop %v1757
        %v1759 = vmul.f32 %v1754, %v1758
        %v1760 = vpack.c.bf16 %v1759, %v1759
        %1761 = vrot.lane.b32.xlu0 %v1473, 80
        %v1762 = vpop.permute.xlu0 %1761
        %v1764 = vsel %vm788, %v1760, 0
        %v1767 = vsel %vm852, %v1762, 0
        %1769 = vmatprep.subr.bf16.mxu0 0
        %1770 = vmatpush1.bf16.msra.mxu0 0
        %1771 = vmatprep.subr.bf16.mxu0 0
        %1772 = vmatpush1.bf16.msra.mxu0 0
        %1773 = vmatprep.subr.bf16.mxu0 0
        %1774 = vmatpush1.bf16.msra.mxu0 0
        %1775 = vmatprep.subr.bf16.mxu0 0
        %1776 = vmatpush1.bf16.msra.mxu0 0
        %1777 = vmatprep.subr.bf16.mxu0 0
        %1778 = vmatpush1.bf16.msra.mxu0 0
        %1779 = vmatprep.subr.bf16.mxu0 0
        %1780 = vmatpush1.bf16.msra.mxu0 0
        %1781 = vmatprep.subr.bf16.mxu0 0
        %1782 = vmatpush1.bf16.msra.mxu0 0
        %1783 = vmatprep.subr.bf16.mxu0 0
        %1784 = vmatpush1.bf16.msra.mxu0 %v1767
        %1785 = vmatprep.subr.bf16.mxu0 0
        %1786 = vmatpush2.bf16.msra.mxu0 0
        %1787 = vmatprep.subr.bf16.mxu0 0
        %1788 = vmatpush2.bf16.msra.mxu0 0
        %1789 = vmatprep.subr.bf16.mxu0 0
        %1790 = vmatpush2.bf16.msra.mxu0 0
        %1791 = vmatprep.subr.bf16.mxu0 0
        %1792 = vmatpush2.bf16.msra.mxu0 0
        %1793 = vmatprep.subr.bf16.mxu0 0
        %1794 = vmatpush2.bf16.msra.mxu0 0
        %1795 = vmatprep.subr.bf16.mxu0 0
        %1796 = vmatpush2.bf16.msra.mxu0 0
        %1797 = vmatprep.subr.bf16.mxu0 0
        %1798 = vmatpush2.bf16.msra.mxu0 0
        %1799 = vmatprep.subr.bf16.mxu0 0
        %1800 = vmatpush2.bf16.msra.mxu0 0
        %1801 = vmatprep.mubr.bf16.mxu0 0
        %1802 = vmatmul.mubr.bf16.gmra.mxu0 %v1764
        %v1803 = vpop.f32.mrf.mxu0
        %v1804 = vadd.f32 0.0, %v1803
        %v1805 = vpop.f32.mrf.mxu0
        %v1806 = vpop.f32.mrf.mxu0
        %v1807 = vpop.f32.mrf.mxu0
        %1808 = vdwg.mxu0
        %1810 = vrot.lane.b32.xlu0 %v1804, 16
        %v1811 = vpop.permute.xlu0 %1810
        %1813 = vst.msk [vmem:[#allocation2] sm:$0xff] %vm1127, %v1811
        %1814 = vrot.lane.b32.xlu0 %v1406, 104
        %v1815 = vpop.permute.xlu0 %1814
        %1816 = vrot.lane.b32.xlu0 %v1473, 104
        %v1817 = vpop.permute.xlu0 %1816
        %v1819 = vsel %vm788, %v1815, 0
        %v1822 = vsel %vm788, %v1817, 0
        %1824 = vmatprep.subr.bf16.mxu0 0
        %1825 = vmatpush1.bf16.xpose.msra.mxu0 0
        %1826 = vmatprep.subr.bf16.mxu0 0
        %1827 = vmatpush1.bf16.xpose.msra.mxu0 0
        %1828 = vmatprep.subr.bf16.mxu0 0
        %1829 = vmatpush1.bf16.xpose.msra.mxu0 0
        %1830 = vmatprep.subr.bf16.mxu0 0
        %1831 = vmatpush1.bf16.xpose.msra.mxu0 0
        %1832 = vmatprep.subr.bf16.mxu0 0
        %1833 = vmatpush1.bf16.xpose.msra.mxu0 0
        %1834 = vmatprep.subr.bf16.mxu0 0
        %1835 = vmatpush1.bf16.xpose.msra.mxu0 0
        %1836 = vmatprep.subr.bf16.mxu0 0
        %1837 = vmatpush1.bf16.xpose.msra.mxu0 0
        %1838 = vmatprep.subr.bf16.mxu0 0
        %1839 = vmatpush1.bf16.xpose.msra.mxu0 %v1822
        %1840 = vmatprep.subr.bf16.mxu0 0
        %1841 = vmatpush2.bf16.xpose.msra.mxu0 0
        %1842 = vmatprep.subr.bf16.mxu0 0
        %1843 = vmatpush2.bf16.xpose.msra.mxu0 0
        %1844 = vmatprep.subr.bf16.mxu0 0
        %1845 = vmatpush2.bf16.xpose.msra.mxu0 0
        %1846 = vmatprep.subr.bf16.mxu0 0
        %1847 = vmatpush2.bf16.xpose.msra.mxu0 0
        %1848 = vmatprep.subr.bf16.mxu0 0
        %1849 = vmatpush2.bf16.xpose.msra.mxu0 0
        %1850 = vmatprep.subr.bf16.mxu0 0
        %1851 = vmatpush2.bf16.xpose.msra.mxu0 0
        %1852 = vmatprep.subr.bf16.mxu0 0
        %1853 = vmatpush2.bf16.xpose.msra.mxu0 0
        %1854 = vmatprep.subr.bf16.mxu0 0
        %1855 = vmatpush2.bf16.xpose.msra.mxu0 0
        %1856 = vmatprep.mubr.bf16.mxu0 0
        %1857 = vmatmul.mubr.bf16.gmra.mxu0 %v1819
        %v1858 = vpop.f32.mrf.mxu0
        %v1859 = vadd.f32 0.0, %v1858
        %v1860 = vpop.f32.mrf.mxu0
        %v1861 = vpop.f32.mrf.mxu0
        %v1862 = vpop.f32.mrf.mxu0
        %1863 = vdwg.mxu0
        %v1864 = vsel %vm788, %v1859, -inf
        %1865 = vmax.xlane.f32.xlu0 %v1864
        %v1866 = vpop.xlane.xlu0 %1865
        %v1867 = vsub.f32 %v1859, %v1866
        %v1868 = vmul.f32 %v1867, 1.442695
        %v1869 = vpow.pop %v1868
        %v1870 = vsel %vm788, %v1869, 0.0
        %1871 = vadd.xlane.f32.xlu0 %v1870
        %v1872 = vpop.xlane.xlu0 %1871
        %v1873 = vrcp.pop %v1872
        %v1874 = vmul.f32 %v1869, %v1873
        %v1875 = vpack.c.bf16 %v1874, %v1874
        %1876 = vrot.lane.b32.xlu0 %v1473, 72
        %v1877 = vpop.permute.xlu0 %1876
        %v1879 = vsel %vm788, %v1875, 0
        %v1882 = vsel %vm852, %v1877, 0
        %1884 = vmatprep.subr.bf16.mxu0 0
        %1885 = vmatpush1.bf16.msra.mxu0 0
        %1886 = vmatprep.subr.bf16.mxu0 0
        %1887 = vmatpush1.bf16.msra.mxu0 0
        %1888 = vmatprep.subr.bf16.mxu0 0
        %1889 = vmatpush1.bf16.msra.mxu0 0
        %1890 = vmatprep.subr.bf16.mxu0 0
        %1891 = vmatpush1.bf16.msra.mxu0 0
        %1892 = vmatprep.subr.bf16.mxu0 0
        %1893 = vmatpush1.bf16.msra.mxu0 0
        %1894 = vmatprep.subr.bf16.mxu0 0
        %1895 = vmatpush1.bf16.msra.mxu0 0
        %1896 = vmatprep.subr.bf16.mxu0 0
        %1897 = vmatpush1.bf16.msra.mxu0 0
        %1898 = vmatprep.subr.bf16.mxu0 0
        %1899 = vmatpush1.bf16.msra.mxu0 %v1882
        %1900 = vmatprep.subr.bf16.mxu0 0
        %1901 = vmatpush2.bf16.msra.mxu0 0
        %1902 = vmatprep.subr.bf16.mxu0 0
        %1903 = vmatpush2.bf16.msra.mxu0 0
        %1904 = vmatprep.subr.bf16.mxu0 0
        %1905 = vmatpush2.bf16.msra.mxu0 0
        %1906 = vmatprep.subr.bf16.mxu0 0
        %1907 = vmatpush2.bf16.msra.mxu0 0
        %1908 = vmatprep.subr.bf16.mxu0 0
        %1909 = vmatpush2.bf16.msra.mxu0 0
        %1910 = vmatprep.subr.bf16.mxu0 0
        %1911 = vmatpush2.bf16.msra.mxu0 0
        %1912 = vmatprep.subr.bf16.mxu0 0
        %1913 = vmatpush2.bf16.msra.mxu0 0
        %1914 = vmatprep.subr.bf16.mxu0 0
        %1915 = vmatpush2.bf16.msra.mxu0 0
        %1916 = vmatprep.mubr.bf16.mxu0 0
        %1917 = vmatmul.mubr.bf16.gmra.mxu0 %v1879
        %v1918 = vpop.f32.mrf.mxu0
        %v1919 = vadd.f32 0.0, %v1918
        %v1920 = vpop.f32.mrf.mxu0
        %v1921 = vpop.f32.mrf.mxu0
        %v1922 = vpop.f32.mrf.mxu0
        %1923 = vdwg.mxu0
        %1925 = vrot.lane.b32.xlu0 %v1919, 24
        %v1926 = vpop.permute.xlu0 %1925
        %1928 = vst.msk [vmem:[#allocation2] sm:$0xff] %vm1243, %v1926
        %v1929 = vld [vmem:[#allocation2] sm:$0xff]
        %v1930 = vpack.c.bf16 %v1929, %v1929
        %v1931 = vld [vmem:[#allocation11] sm:$0xf]
        %v1932 = vld [vmem:[#allocation11 + $0x4] sm:$0xf]
        %v1933 = vld [vmem:[#allocation11 + $0x8] sm:$0xf]
        %v1934 = vld [vmem:[#allocation11 + $0xc] sm:$0xf]
        %v1936 = vlaneseq
        %v1937 = vshrl.u32 %v1936, 7
        %v1938 = vsub.s32 0, %v1937
        %v1939 = vrot.slane %v1474, %v1938
        %v1945 = vunpack.c.l.b16 %v1931
        %v1946 = vunpack.c.l.b16 %v1932
        %v1947 = vunpack.c.l.b16 %v1933
        %v1948 = vunpack.c.l.b16 %v1934
        %v1949 = vpack.c.b16 %v1946, %v1945
        %v1950 = vpack.c.b16 %v1948, %v1947
        %v1954 = vsel %vm739, %v1930, 0
        %1956 = vmatprep.subr.bf16.mxu0 0
        %1957 = vmatpush1.bf16.msra.mxu0 0
        %1958 = vmatprep.subr.bf16.mxu0 0
        %1959 = vmatpush1.bf16.msra.mxu0 0
        %1960 = vmatprep.subr.bf16.mxu0 0
        %1961 = vmatpush1.bf16.msra.mxu0 0
        %1962 = vmatprep.subr.bf16.mxu0 0
        %1963 = vmatpush1.bf16.msra.mxu0 0
        %1964 = vmatprep.subr.bf16.mxu0 0
        %1965 = vmatpush1.bf16.msra.mxu0 0
        %1966 = vmatprep.subr.bf16.mxu0 0
        %1967 = vmatpush1.bf16.msra.mxu0 0
        %1968 = vmatprep.subr.bf16.mxu0 0
        %1969 = vmatpush1.bf16.msra.mxu0 %v1950
        %1970 = vmatprep.subr.bf16.mxu0 0
        %1971 = vmatpush1.bf16.msra.mxu0 %v1949
        %1972 = vmatprep.subr.bf16.mxu0 0
        %1973 = vmatpush2.bf16.msra.mxu0 0
        %1974 = vmatprep.subr.bf16.mxu0 0
        %1975 = vmatpush2.bf16.msra.mxu0 0
        %1976 = vmatprep.subr.bf16.mxu0 0
        %1977 = vmatpush2.bf16.msra.mxu0 0
        %1978 = vmatprep.subr.bf16.mxu0 0
        %1979 = vmatpush2.bf16.msra.mxu0 0
        %1980 = vmatprep.subr.bf16.mxu0 0
        %1981 = vmatpush2.bf16.msra.mxu0 0
        %1982 = vmatprep.subr.bf16.mxu0 0
        %1983 = vmatpush2.bf16.msra.mxu0 0
        %1984 = vmatprep.subr.bf16.mxu0 0
        %1985 = vmatpush2.bf16.msra.mxu0 0
        %1986 = vmatprep.subr.bf16.mxu0 0
        %1987 = vmatpush2.bf16.msra.mxu0 0
        %1988 = vmatprep.mubr.bf16.mxu0 0
        %1989 = vmatmul.mubr.bf16.gmra.mxu0 %v1954
        %v1990 = vpop.f32.mrf.mxu0
        %v1991 = vadd.f32 %v1939, %v1990
        %v1992 = vpop.f32.mrf.mxu0
        %v1993 = vpop.f32.mrf.mxu0
        %v1994 = vpop.f32.mrf.mxu0
        %1995 = vdwg.mxu0
        %v1996 = vadd.f32 %v1338, %v1991
        %v1997 = vld [vmem:[%s13 + $0x1] sm:$0x1]
        %v1998 = vld [vmem:[%s14 + $0x1] sm:$0x1]
        %v1999 = vsel %vm739, %v1996, 0.0
        %2000 = vadd.xlane.f32.xlu0 %v1999
        %v2001 = vpop.xlane.xlu0 %2000
        %v2002 = vmul.f32 %v2001, %v1318
        %v2003 = vsub.f32 %v1996, %v2002
        %v2004 = vmul.f32 %v2003, %v2003
        %v2005 = vsel %vm739, %v2004, 0.0
        %2006 = vadd.xlane.f32.xlu0 %v2005
        %v2007 = vpop.xlane.xlu0 %2006
        %v2008 = vmul.f32 %v2007, %v1318
        %v2009 = vadd.f32 %v2008, 1e-05
        %v2010 = vrsqrt.pop %v2009
        %v2011 = vmul.f32 %v2003, %v2010
        %v2012 = vlaneseq
        %v2013 = vshrl.u32 %v2012, 7
        %v2014 = vsub.s32 0, %v2013
        %v2015 = vrot.slane %v1997, %v2014
        %v2016 = vmul.f32 %v2011, %v2015
        %v2017 = vlaneseq
        %v2018 = vshrl.u32 %v2017, 7
        %v2019 = vsub.s32 0, %v2018
        %v2020 = vrot.slane %v1998, %v2019
        %v2021 = vadd.f32 %v2016, %v2020
        %v2022 = vpack.c.bf16 %v2021, %v2021
        %v2023 = vld [vmem:[#allocation12] sm:$0xf]
        %v2024 = vld [vmem:[#allocation12 + $0x4] sm:$0xf]
        %v2025 = vld [vmem:[#allocation12 + $0x8] sm:$0xf]
        %v2026 = vld [vmem:[#allocation12 + $0xc] sm:$0xf]
        %v2027 = vld [vmem:[%s16] sm:$0x1]
        %v2029 = vlaneseq
        %v2030 = vshrl.u32 %v2029, 7
        %v2031 = vsub.s32 0, %v2030
        %v2032 = vrot.slane %v2027, %v2031
        %v2038 = vunpack.c.l.b16 %v2023
        %v2039 = vunpack.c.l.b16 %v2024
        %v2040 = vunpack.c.l.b16 %v2025
        %v2041 = vunpack.c.l.b16 %v2026
        %v2042 = vpack.c.b16 %v2039, %v2038
        %v2043 = vpack.c.b16 %v2041, %v2040
        %v2047 = vsel %vm739, %v2022, 0
        %2049 = vmatprep.subr.bf16.mxu0 0
        %2050 = vmatpush1.bf16.msra.mxu0 0
        %2051 = vmatprep.subr.bf16.mxu0 0
        %2052 = vmatpush1.bf16.msra.mxu0 0
        %2053 = vmatprep.subr.bf16.mxu0 0
        %2054 = vmatpush1.bf16.msra.mxu0 0
        %2055 = vmatprep.subr.bf16.mxu0 0
        %2056 = vmatpush1.bf16.msra.mxu0 0
        %2057 = vmatprep.subr.bf16.mxu0 0
        %2058 = vmatpush1.bf16.msra.mxu0 0
        %2059 = vmatprep.subr.bf16.mxu0 0
        %2060 = vmatpush1.bf16.msra.mxu0 0
        %2061 = vmatprep.subr.bf16.mxu0 0
        %2062 = vmatpush1.bf16.msra.mxu0 %v2043
        %2063 = vmatprep.subr.bf16.mxu0 0
        %2064 = vmatpush1.bf16.msra.mxu0 %v2042
        %2065 = vmatprep.subr.bf16.mxu0 0
        %2066 = vmatpush2.bf16.msra.mxu0 0
        %2067 = vmatprep.subr.bf16.mxu0 0
        %2068 = vmatpush2.bf16.msra.mxu0 0
        %2069 = vmatprep.subr.bf16.mxu0 0
        %2070 = vmatpush2.bf16.msra.mxu0 0
        %2071 = vmatprep.subr.bf16.mxu0 0
        %2072 = vmatpush2.bf16.msra.mxu0 0
        %2073 = vmatprep.subr.bf16.mxu0 0
        %2074 = vmatpush2.bf16.msra.mxu0 0
        %2075 = vmatprep.subr.bf16.mxu0 0
        %2076 = vmatpush2.bf16.msra.mxu0 0
        %2077 = vmatprep.subr.bf16.mxu0 0
        %2078 = vmatpush2.bf16.msra.mxu0 0
        %2079 = vmatprep.subr.bf16.mxu0 0
        %2080 = vmatpush2.bf16.msra.mxu0 0
        %2081 = vmatprep.mubr.bf16.mxu0 0
        %2082 = vmatmul.mubr.bf16.gmra.mxu0 %v2047
        %v2083 = vpop.f32.mrf.mxu0
        %v2084 = vadd.f32 %v2032, %v2083
        %v2085 = vpop.f32.mrf.mxu0
        %v2086 = vpop.f32.mrf.mxu0
        %v2087 = vpop.f32.mrf.mxu0
        %2088 = vdwg.mxu0
        %v2089 = vmax.f32 %v2084, 0.0
        %v2090 = vpack.c.bf16 %v2089, %v2089
        %v2091 = vld [vmem:[%s17] sm:$0xf]
        %v2092 = vld [vmem:[%s17 + $0x4] sm:$0xf]
        %v2093 = vld [vmem:[%s17 + $0x8] sm:$0xf]
        %v2094 = vld [vmem:[%s17 + $0xc] sm:$0xf]
        %v2095 = vld [vmem:[%s17 + $0x10] sm:$0xf]
        %v2096 = vld [vmem:[%s17 + $0x14] sm:$0xf]
        %v2097 = vld [vmem:[%s17 + $0x18] sm:$0xf]
        %v2098 = vld [vmem:[%s17 + $0x1c] sm:$0xf]
        %v2099 = vld [vmem:[%s18] sm:$0x1]
        %v2101 = vlaneseq
        %v2102 = vshrl.u32 %v2101, 7
        %v2103 = vsub.s32 0, %v2102
        %v2104 = vrot.slane %v2099, %v2103
        %v2114 = vunpack.c.l.b16 %v2091
        %v2115 = vunpack.c.l.b16 %v2092
        %v2116 = vunpack.c.l.b16 %v2093
        %v2117 = vunpack.c.l.b16 %v2094
        %v2118 = vunpack.c.l.b16 %v2095
        %v2119 = vunpack.c.l.b16 %v2096
        %v2120 = vunpack.c.l.b16 %v2097
        %v2121 = vunpack.c.l.b16 %v2098
        %v2122 = vpack.c.b16 %v2115, %v2114
        %v2123 = vpack.c.b16 %v2117, %v2116
        %v2124 = vpack.c.b16 %v2119, %v2118
        %v2125 = vpack.c.b16 %v2121, %v2120
        %vm2130 = vcmask 523264
        %v2132 = vsel %vm2130, %v2090, 0
        %2134 = vmatprep.subr.bf16.mxu0 0
        %2135 = vmatpush1.bf16.msra.mxu0 0
        %2136 = vmatprep.subr.bf16.mxu0 0
        %2137 = vmatpush1.bf16.msra.mxu0 0
        %2138 = vmatprep.subr.bf16.mxu0 0
        %2139 = vmatpush1.bf16.msra.mxu0 0
        %2140 = vmatprep.subr.bf16.mxu0 0
        %2141 = vmatpush1.bf16.msra.mxu0 0
        %2142 = vmatprep.subr.bf16.mxu0 0
        %2143 = vmatpush1.bf16.msra.mxu0 %v2125
        %2144 = vmatprep.subr.bf16.mxu0 0
        %2145 = vmatpush1.bf16.msra.mxu0 %v2124
        %2146 = vmatprep.subr.bf16.mxu0 0
        %2147 = vmatpush1.bf16.msra.mxu0 %v2123
        %2148 = vmatprep.subr.bf16.mxu0 0
        %2149 = vmatpush1.bf16.msra.mxu0 %v2122
        %2150 = vmatprep.subr.bf16.mxu0 0
        %2151 = vmatpush2.bf16.msra.mxu0 0
        %2152 = vmatprep.subr.bf16.mxu0 0
        %2153 = vmatpush2.bf16.msra.mxu0 0
        %2154 = vmatprep.subr.bf16.mxu0 0
        %2155 = vmatpush2.bf16.msra.mxu0 0
        %2156 = vmatprep.subr.bf16.mxu0 0
        %2157 = vmatpush2.bf16.msra.mxu0 0
        %2158 = vmatprep.subr.bf16.mxu0 0
        %2159 = vmatpush2.bf16.msra.mxu0 0
        %2160 = vmatprep.subr.bf16.mxu0 0
        %2161 = vmatpush2.bf16.msra.mxu0 0
        %2162 = vmatprep.subr.bf16.mxu0 0
        %2163 = vmatpush2.bf16.msra.mxu0 0
        %2164 = vmatprep.subr.bf16.mxu0 0
        %2165 = vmatpush2.bf16.msra.mxu0 0
        %2166 = vmatprep.mubr.bf16.mxu0 0
        %2167 = vmatmul.mubr.bf16.gmra.mxu0 %v2132
        %v2168 = vpop.f32.mrf.mxu0
        %v2169 = vadd.f32 %v2104, %v2168
        %v2170 = vpop.f32.mrf.mxu0
        %v2171 = vpop.f32.mrf.mxu0
        %v2172 = vpop.f32.mrf.mxu0
        %2173 = vdwg.mxu0
        %v2174 = vadd.f32 %v2021, %v2169
        %v2175 = vld [vmem:[%s13 + $0x2] sm:$0x1]
        %v2176 = vld [vmem:[%s14 + $0x2] sm:$0x1]
        %v2177 = vsel %vm739, %v2174, 0.0
        %2178 = vadd.xlane.f32.xlu0 %v2177
        %v2179 = vpop.xlane.xlu0 %2178
        %v2180 = vmul.f32 %v2179, %v1318
        %v2181 = vsub.f32 %v2174, %v2180
        %v2182 = vmul.f32 %v2181, %v2181
        %v2183 = vsel %vm739, %v2182, 0.0
        %2184 = vadd.xlane.f32.xlu0 %v2183
        %v2185 = vpop.xlane.xlu0 %2184
        %v2186 = vmul.f32 %v2185, %v1318
        %v2187 = vadd.f32 %v2186, 1e-05
        %v2188 = vrsqrt.pop %v2187
        %v2189 = vmul.f32 %v2181, %v2188
        %v2190 = vlaneseq
        %v2191 = vshrl.u32 %v2190, 7
        %v2192 = vsub.s32 0, %v2191
        %v2193 = vrot.slane %v2175, %v2192
        %v2194 = vmul.f32 %v2189, %v2193
        %v2195 = vlaneseq
        %v2196 = vshrl.u32 %v2195, 7
        %v2197 = vsub.s32 0, %v2196
        %v2198 = vrot.slane %v2176, %v2197
        %v2199 = vadd.f32 %v2194, %v2198
        %2200 = vst.msk [vmem:[%s710] sm:$0xff] %vm739, %v2199
        %s2201 = sand.u32 %s458, 1
        %s2202 = scalar_lea.sflag [#allocation5], %s2201
        %s2203 = sand.u32 %s458, 1
        %s2204 = smul.addr %s2203, 8
        %s2205 = scalar_lea.vmem [#allocation14], %s2204
        // Predicated region
        $region121: #{tpu_custom_call.1} parent=95 // pred_check
          %p2206 = pneg %p468
        $region122: #{tpu_custom_call.1} parent=95 // pred_check_branch
          %2208 = sbr.rel (%p2206) target = $region124
        $region123: #{tpu_custom_call.1} parent=95 // pred_region
          %s2210 = ssub.s32 128, 128
          %2211 = vsyncadd %s2202, %s2210
          %s2212 = smul.addr %s41, 128
          %s2213 = scalar_lea.hbm %s19, %s2212
          %s2215 = sshll.u32 %s2205, 4
          %s2216 = int_to_ptr.vmem [resolvable:$true] %s2215
          %2218 = dma.vmem_to_hbm [thread:$0]  %s2216, 128, %s2213, %s2202
        $region124: #{tpu_custom_call.1} parent=95 // pred_fallthru
          _
      $region96: #{tpu_custom_call.1} parent=5 // pred_fallthru
        _
      %p2219 = scmp.le.s32.totalorder 2, %s36
      // Predicated region
      $region125: #{tpu_custom_call.1} parent=5 // pred_check
        %p2220 = pneg %p2219
      $region126: #{tpu_custom_call.1} parent=5 // pred_check_branch
        %2222 = sbr.rel (%p2220) target = $region128
      $region127: #{tpu_custom_call.1} parent=5 // pred_region
        %s2223 = ssub.s32 %s36, 2
        // Predicated region
        $region129: #{tpu_custom_call.1} parent=127 // pred_check
          %p2224 = pneg %p474
        $region130: #{tpu_custom_call.1} parent=127 // pred_check_branch
          %2226 = sbr.rel (%p2224) target = $region132
        $region131: #{tpu_custom_call.1} parent=127 // pred_region
          %s2227 = sand.u32 %s459, 1
          %s2228 = scalar_lea.sflag [#allocation5], %s2227
          %s2229 = sand.u32 %s459, 1
          %s2230 = smul.addr %s2229, 8
          %s2231 = scalar_lea.vmem [#allocation14], %s2230
          %2232 = dma.done %s2228, 128
        $region132: #{tpu_custom_call.1} parent=127 // pred_fallthru
          _
      $region128: #{tpu_custom_call.1} parent=5 // pred_fallthru
        _
    $region6: #{tpu_custom_call.1} parent=1 // loop_footer
      %s40 = sadd.s32 1, %s36
    $region7: #{tpu_custom_call.1} parent=1 // loop_footer_branch
      %35 = sbr.rel target = $region3
    $region8: #{tpu_custom_call.1} parent=1 // loop_exit
      _
    %2233 = vsyncpa [#allocation4], 1
    %s2234 = scalar_lea.sflag [#allocation4], 1
    %2235 = vsyncpa %s2234, 1
    %2236 = vsyncpa [#allocation7], 1
    %s2237 = scalar_lea.sflag [#allocation7], 1
    %2238 = vsyncpa %s2237, 1
    %2239 = vsyncpa [#allocation10], 1
    %2240 = vsyncpa [#allocation13], 1
    %2241 = vsyncpa [#allocation5], 1
    %s2242 = scalar_lea.sflag [#allocation5], 1
    %2243 = vsyncpa %s2242, 1

// kernel: tpu_custom_call.1
$region0: #{tpu_custom_call.1}
  #allocation0 [shape = 'u32[]', space=smem, size = 0x4, offset = 0x4, fixed_abs, tag = 'smem constant byte address 0x4 - core index']
  #allocation1 [shape = 'u32[144,128]{1,0:T(1,128)}', space=vmem, size = 0x12000, scoped, tag = 'internal scratch']
  #allocation2 [shape = 'f32[8,32]{1,0:T(8,128)}', space=vmem, size = 0x1000, scoped, tag = 'scratch operand']
  %s0 = inlined_call_operand.hbm [shape: bf16[2,8,32], index: 0, kind: input, shape index: {}]
  %s1 = inlined_call_operand.hbm [shape: bf16[2,8,32], index: 1, kind: input, shape index: {}]
  %s2 = inlined_call_operand.hbm [shape: f32[8,8], index: 2, kind: input, shape index: {}]
  %s3 = inlined_call_operand.vmem [shape: bf16[32,96], index: 3, kind: input, shape index: {}]
  %s4 = inlined_call_operand.vmem [shape: f32[1,96], index: 4, kind: input, shape index: {}]
  %s5 = inlined_call_operand.vmem [shape: bf16[32,32], index: 5, kind: input, shape index: {}]
  %s6 = inlined_call_operand.vmem [shape: f32[1,32], index: 6, kind: input, shape index: {}]
  %s7 = inlined_call_operand.vmem [shape: bf16[32,32], index: 7, kind: input, shape index: {}]
  %s8 = inlined_call_operand.vmem [shape: f32[1,32], index: 8, kind: input, shape index: {}]
  %s9 = inlined_call_operand.hbm [shape: bf16[32,64], index: 9, kind: input, shape index: {}]
  %s10 = inlined_call_operand.vmem [shape: f32[1,64], index: 10, kind: input, shape index: {}]
  %s11 = inlined_call_operand.hbm [shape: bf16[32,32], index: 11, kind: input, shape index: {}]
  %s12 = inlined_call_operand.vmem [shape: f32[1,32], index: 12, kind: input, shape index: {}]
  %s13 = inlined_call_operand.vmem [shape: f32[3,32], index: 13, kind: input, shape index: {}]
  %s14 = inlined_call_operand.vmem [shape: f32[3,32], index: 14, kind: input, shape index: {}]
  %s15 = inlined_call_operand.hbm [shape: bf16[32,64], index: 15, kind: input, shape index: {}]
  %s16 = inlined_call_operand.vmem [shape: f32[1,64], index: 16, kind: input, shape index: {}]
  %s17 = inlined_call_operand.vmem [shape: bf16[64,32], index: 17, kind: input, shape index: {}]
  %s18 = inlined_call_operand.vmem [shape: f32[1,32], index: 18, kind: input, shape index: {}]
  %s19 = inlined_call_operand.hbm [shape: f32[2,8,32], index: 19, kind: output, shape index: {}]
  %s20 = sld [smem:[#allocation0]]
  $region133: #{tpu_custom_call.1} parent=0
    _
  %s22 = ssub.s32 1, %s20
  %s23 = scalar_select 0, %s22, %s20
  $region1: #{tpu_custom_call.1} parent=0
    #allocation3 [shape = 'u8[4096]{0}', space=vmem, size = 0x1000, scoped, tag = 'input window, operand 0']
    #allocation4 [shape = 's32[2]{0}', space=sflag, size = 0x8, scoped, tag = 'scoped memory for tpu_custom_call.1']
    #allocation5 [shape = 's32[2]{0}', space=sflag, size = 0x8, scoped, tag = 'scoped memory for tpu_custom_call.1']
    #allocation6 [shape = 'u8[4096]{0}', space=vmem, size = 0x1000, scoped, tag = 'input window, operand 1']
    #allocation7 [shape = 's32[2]{0}', space=sflag, size = 0x8, scoped, tag = 'scoped memory for tpu_custom_call.1']
    #allocation8 [shape = 'u8[4096]{0}', space=vmem, size = 0x1000, scoped, tag = 'input window, operand 2, single buffered']
    #allocation9 [shape = 'u8[8192]{0}', space=vmem, size = 0x2000, scoped, tag = 'input window, operand 9, single buffered']
    #allocation10 [shape = 's32[1]{0}', space=sflag, size = 0x4, scoped, tag = 'scoped memory for tpu_custom_call.1']
    #allocation11 [shape = 'u8[8192]{0}', space=vmem, size = 0x2000, scoped, tag = 'input window, operand 11, single buffered']
    #allocation12 [shape = 'u8[8192]{0}', space=vmem, size = 0x2000, scoped, tag = 'input window, operand 15, single buffered']
    #allocation13 [shape = 's32[1]{0}', space=sflag, size = 0x4, scoped, tag = 'scoped memory for tpu_custom_call.1']
    #allocation14 [shape = 'u8[8192]{0}', space=vmem, size = 0x2000, scoped, tag = 'output window, operand 0']
    %24 = vsyncpa [#allocation4], 0
    %s25 = scalar_lea.sflag [#allocation4], 1
    %26 = vsyncpa %s25, 0
    %27 = vsyncpa [#allocation7], 0
    %s28 = scalar_lea.sflag [#allocation7], 1
    %29 = vsyncpa %s28, 0
    %30 = vsyncpa [#allocation10], 0
    %31 = vsyncpa [#allocation13], 0
    %32 = vsyncpa [#allocation5], 0
    %s33 = scalar_lea.sflag [#allocation5], 1
    %34 = vsyncpa %s33, 0
    loop: start=0, step=1, limit=4
    $region2: #{tpu_custom_call.1} parent=1 // loop_pre_header
      _
    $region3: #{tpu_custom_call.1} parent=1 // loop_header
      %s36 = sphi 0, %s40
      %p37 = scmp.ge.s32.totalorder %s36, 4
      %s46 = sphi 0, %s48
      %s49 = sphi 0, %s46
      %s50 = sphi 0, %s49
      %s66 = sphi 0, %s50
      %s72 = sphi 0, %s74
      %s75 = sphi 0, %s72
      %s76 = sphi 0, %s75
      %s92 = sphi 0, %s76
      %s96 = sphi 0, %s96
      %s98 = sphi 0, %s96
      %s99 = sphi 0, %s98
      %s113 = sphi 0, %s99
      %s117 = sphi 0, %s117
      %s119 = sphi 0, %s117
      %s120 = sphi 0, %s119
      %s134 = sphi 0, %s120
      %s138 = sphi 0, %s138
      %s140 = sphi 0, %s138
      %s141 = sphi 0, %s140
      %s155 = sphi 0, %s141
      %s159 = sphi 0, %s159
      %s161 = sphi 0, %s159
      %s162 = sphi 0, %s161
      %s176 = sphi 0, %s162
      %s180 = sphi 0, %s180
      %s182 = sphi 0, %s180
      %s183 = sphi 0, %s182
      %s197 = sphi 0, %s183
      %s201 = sphi 0, %s201
      %s203 = sphi 0, %s201
      %s204 = sphi 0, %s203
      %s218 = sphi 0, %s204
      %s222 = sphi 0, %s222
      %s224 = sphi 0, %s222
      %s225 = sphi 0, %s224
      %s239 = sphi 0, %s225
      %s243 = sphi 0, %s243
      %s245 = sphi 0, %s243
      %s246 = sphi 0, %s245
      %s260 = sphi 0, %s246
      %s264 = sphi 0, %s264
      %s266 = sphi 0, %s264
      %s267 = sphi 0, %s266
      %s281 = sphi 0, %s267
      %s285 = sphi 0, %s285
      %s287 = sphi 0, %s285
      %s288 = sphi 0, %s287
      %s302 = sphi 0, %s288
      %s306 = sphi 0, %s306
      %s308 = sphi 0, %s306
      %s309 = sphi 0, %s308
      %s323 = sphi 0, %s309
      %s327 = sphi 0, %s327
      %s329 = sphi 0, %s327
      %s330 = sphi 0, %s329
      %s344 = sphi 0, %s330
      %s348 = sphi 0, %s348
      %s350 = sphi 0, %s348
      %s351 = sphi 0, %s350
      %s365 = sphi 0, %s351
      %s369 = sphi 0, %s369
      %s371 = sphi 0, %s369
      %s372 = sphi 0, %s371
      %s386 = sphi 0, %s372
      %s390 = sphi 0, %s390
      %s392 = sphi 0, %s390
      %s393 = sphi 0, %s392
      %s407 = sphi 0, %s393
      %s411 = sphi 0, %s411
      %s413 = sphi 0, %s411
      %s414 = sphi 0, %s413
      %s428 = sphi 0, %s414
      %s432 = sphi 0, %s432
      %s434 = sphi 0, %s432
      %s435 = sphi 0, %s434
      %s449 = sphi 0, %s435
      %s455 = sphi 0, %s457
      %s458 = sphi 0, %s455
      %s459 = sphi 0, %s458
      %s475 = sphi 0, %s459
    $region4: #{tpu_custom_call.1} parent=1 // loop_header_branch
      %39 = sbr.rel (%p37) target = $region8
    $region5: #{tpu_custom_call.1} parent=1 // loop_body
      %s41 = ssub.s32 %s36, 1
      %s42 = ssub.s32 %s36, 2
      %s43 = sadd.s32 %s36, 1
      %s44 = ssub.s32 %s36, %s43
      %p45 = scmp.eq.s32.totalorder %s44, 0
      %s47 = sadd.s32 %s46, 1
      %s48 = scalar_select %p45, %s46, %s47
      %p51 = pneg %p45
      %p52 = scmp.eq.s32.totalorder %s36, 1
      %p53 = por %p51, %p52
      %p54 = scmp.ne.s32.totalorder %s46, %s49
      %p55 = scmp.eq.s32.totalorder %s36, 0
      %p56 = por %p54, %p55
      %p57 = scmp.ne.s32.totalorder %s46, %s49
      %p58 = scmp.eq.s32.totalorder %s41, 1
      %p59 = por %p57, %p58
      %p60 = scmp.ne.s32.totalorder %s49, %s50
      %p61 = scmp.eq.s32.totalorder %s41, 0
      %p62 = por %p60, %p61
      %p63 = scmp.ne.s32.totalorder %s49, %s50
      %p64 = scmp.eq.s32.totalorder %s42, 1
      %p65 = por %p63, %p64
      %p67 = scmp.ne.s32.totalorder %s50, %s66
      %p68 = scmp.eq.s32.totalorder %s42, 0
      %p69 = por %p67, %p68
      %s70 = ssub.s32 %s36, %s43
      %p71 = scmp.eq.s32.totalorder %s70, 0
      %s73 = sadd.s32 %s72, 1
      %s74 = scalar_select %p71, %s72, %s73
      %p77 = pneg %p71
      %p78 = scmp.eq.s32.totalorder %s36, 1
      %p79 = por %p77, %p78
      %p80 = scmp.ne.s32.totalorder %s72, %s75
      %p81 = scmp.eq.s32.totalorder %s36, 0
      %p82 = por %p80, %p81
      %p83 = scmp.ne.s32.totalorder %s72, %s75
      %p84 = scmp.eq.s32.totalorder %s41, 1
      %p85 = por %p83, %p84
      %p86 = scmp.ne.s32.totalorder %s75, %s76
      %p87 = scmp.eq.s32.totalorder %s41, 0
      %p88 = por %p86, %p87
      %p89 = scmp.ne.s32.totalorder %s75, %s76
      %p90 = scmp.eq.s32.totalorder %s42, 1
      %p91 = por %p89, %p90
      %p93 = scmp.ne.s32.totalorder %s76, %s92
      %p94 = scmp.eq.s32.totalorder %s42, 0
      %p95 = por %p93, %p94
      %s97 = sadd.s32 %s96, 1
      %p100 = scmp.eq.s32.totalorder %s36, 1
      %p101 = scmp.ne.s32.totalorder %s96, %s98
      %p102 = scmp.eq.s32.totalorder %s36, 0
      %p103 = por %p101, %p102
      %p104 = scmp.ne.s32.totalorder %s96, %s98
      %p105 = scmp.eq.s32.totalorder %s41, 1
      %p106 = por %p104, %p105
      %p107 = scmp.ne.s32.totalorder %s98, %s99
      %p108 = scmp.eq.s32.totalorder %s41, 0
      %p109 = por %p107, %p108
      %p110 = scmp.ne.s32.totalorder %s98, %s99
      %p111 = scmp.eq.s32.totalorder %s42, 1
      %p112 = por %p110, %p111
      %p114 = scmp.ne.s32.totalorder %s99, %s113
      %p115 = scmp.eq.s32.totalorder %s42, 0
      %p116 = por %p114, %p115
      %s118 = sadd.s32 %s117, 1
      %p121 = scmp.eq.s32.totalorder %s36, 1
      %p122 = scmp.ne.s32.totalorder %s117, %s119
      %p123 = scmp.eq.s32.totalorder %s36, 0
      %p124 = por %p122, %p123
      %p125 = scmp.ne.s32.totalorder %s117, %s119
      %p126 = scmp.eq.s32.totalorder %s41, 1
      %p127 = por %p125, %p126
      %p128 = scmp.ne.s32.totalorder %s119, %s120
      %p129 = scmp.eq.s32.totalorder %s41, 0
      %p130 = por %p128, %p129
      %p131 = scmp.ne.s32.totalorder %s119, %s120
      %p132 = scmp.eq.s32.totalorder %s42, 1
      %p133 = por %p131, %p132
      %p135 = scmp.ne.s32.totalorder %s120, %s134
      %p136 = scmp.eq.s32.totalorder %s42, 0
      %p137 = por %p135, %p136
      %s139 = sadd.s32 %s138, 1
      %p142 = scmp.eq.s32.totalorder %s36, 1
      %p143 = scmp.ne.s32.totalorder %s138, %s140
      %p144 = scmp.eq.s32.totalorder %s36, 0
      %p145 = por %p143, %p144
      %p146 = scmp.ne.s32.totalorder %s138, %s140
      %p147 = scmp.eq.s32.totalorder %s41, 1
      %p148 = por %p146, %p147
      %p149 = scmp.ne.s32.totalorder %s140, %s141
      %p150 = scmp.eq.s32.totalorder %s41, 0
      %p151 = por %p149, %p150
      %p152 = scmp.ne.s32.totalorder %s140, %s141
      %p153 = scmp.eq.s32.totalorder %s42, 1
      %p154 = por %p152, %p153
      %p156 = scmp.ne.s32.totalorder %s141, %s155
      %p157 = scmp.eq.s32.totalorder %s42, 0
      %p158 = por %p156, %p157
      %s160 = sadd.s32 %s159, 1
      %p163 = scmp.eq.s32.totalorder %s36, 1
      %p164 = scmp.ne.s32.totalorder %s159, %s161
      %p165 = scmp.eq.s32.totalorder %s36, 0
      %p166 = por %p164, %p165
      %p167 = scmp.ne.s32.totalorder %s159, %s161
      %p168 = scmp.eq.s32.totalorder %s41, 1
      %p169 = por %p167, %p168
      %p170 = scmp.ne.s32.totalorder %s161, %s162
      %p171 = scmp.eq.s32.totalorder %s41, 0
      %p172 = por %p170, %p171
      %p173 = scmp.ne.s32.totalorder %s161, %s162
      %p174 = scmp.eq.s32.totalorder %s42, 1
      %p175 = por %p173, %p174
      %p177 = scmp.ne.s32.totalorder %s162, %s176
      %p178 = scmp.eq.s32.totalorder %s42, 0
      %p179 = por %p177, %p178
      %s181 = sadd.s32 %s180, 1
      %p184 = scmp.eq.s32.totalorder %s36, 1
      %p185 = scmp.ne.s32.totalorder %s180, %s182
      %p186 = scmp.eq.s32.totalorder %s36, 0
      %p187 = por %p185, %p186
      %p188 = scmp.ne.s32.totalorder %s180, %s182
      %p189 = scmp.eq.s32.totalorder %s41, 1
      %p190 = por %p188, %p189
      %p191 = scmp.ne.s32.totalorder %s182, %s183
      %p192 = scmp.eq.s32.totalorder %s41, 0
      %p193 = por %p191, %p192
      %p194 = scmp.ne.s32.totalorder %s182, %s183
      %p195 = scmp.eq.s32.totalorder %s42, 1
      %p196 = por %p194, %p195
      %p198 = scmp.ne.s32.totalorder %s183, %s197
      %p199 = scmp.eq.s32.totalorder %s42, 0
      %p200 = por %p198, %p199
      %s202 = sadd.s32 %s201, 1
      %p205 = scmp.eq.s32.totalorder %s36, 1
      %p206 = scmp.ne.s32.totalorder %s201, %s203
      %p207 = scmp.eq.s32.totalorder %s36, 0
      %p208 = por %p206, %p207
      %p209 = scmp.ne.s32.totalorder %s201, %s203
      %p210 = scmp.eq.s32.totalorder %s41, 1
      %p211 = por %p209, %p210
      %p212 = scmp.ne.s32.totalorder %s203, %s204
      %p213 = scmp.eq.s32.totalorder %s41, 0
      %p214 = por %p212, %p213
      %p215 = scmp.ne.s32.totalorder %s203, %s204
      %p216 = scmp.eq.s32.totalorder %s42, 1
      %p217 = por %p215, %p216
      %p219 = scmp.ne.s32.totalorder %s204, %s218
      %p220 = scmp.eq.s32.totalorder %s42, 0
      %p221 = por %p219, %p220
      %s223 = sadd.s32 %s222, 1
      %p226 = scmp.eq.s32.totalorder %s36, 1
      %p227 = scmp.ne.s32.totalorder %s222, %s224
      %p228 = scmp.eq.s32.totalorder %s36, 0
      %p229 = por %p227, %p228
      %p230 = scmp.ne.s32.totalorder %s222, %s224
      %p231 = scmp.eq.s32.totalorder %s41, 1
      %p232 = por %p230, %p231
      %p233 = scmp.ne.s32.totalorder %s224, %s225
      %p234 = scmp.eq.s32.totalorder %s41, 0
      %p235 = por %p233, %p234
      %p236 = scmp.ne.s32.totalorder %s224, %s225
      %p237 = scmp.eq.s32.totalorder %s42, 1
      %p238 = por %p236, %p237
      %p240 = scmp.ne.s32.totalorder %s225, %s239
      %p241 = scmp.eq.s32.totalorder %s42, 0
      %p242 = por %p240, %p241
      %s244 = sadd.s32 %s243, 1
      %p247 = scmp.eq.s32.totalorder %s36, 1
      %p248 = scmp.ne.s32.totalorder %s243, %s245
      %p249 = scmp.eq.s32.totalorder %s36, 0
      %p250 = por %p248, %p249
      %p251 = scmp.ne.s32.totalorder %s243, %s245
      %p252 = scmp.eq.s32.totalorder %s41, 1
      %p253 = por %p251, %p252
      %p254 = scmp.ne.s32.totalorder %s245, %s246
      %p255 = scmp.eq.s32.totalorder %s41, 0
      %p256 = por %p254, %p255
      %p257 = scmp.ne.s32.totalorder %s245, %s246
      %p258 = scmp.eq.s32.totalorder %s42, 1
      %p259 = por %p257, %p258
      %p261 = scmp.ne.s32.totalorder %s246, %s260
      %p262 = scmp.eq.s32.totalorder %s42, 0
      %p263 = por %p261, %p262
      %s265 = sadd.s32 %s264, 1
      %p268 = scmp.eq.s32.totalorder %s36, 1
      %p269 = scmp.ne.s32.totalorder %s264, %s266
      %p270 = scmp.eq.s32.totalorder %s36, 0
      %p271 = por %p269, %p270
      %p272 = scmp.ne.s32.totalorder %s264, %s266
      %p273 = scmp.eq.s32.totalorder %s41, 1
      %p274 = por %p272, %p273
      %p275 = scmp.ne.s32.totalorder %s266, %s267
      %p276 = scmp.eq.s32.totalorder %s41, 0
      %p277 = por %p275, %p276
      %p278 = scmp.ne.s32.totalorder %s266, %s267
      %p279 = scmp.eq.s32.totalorder %s42, 1
      %p280 = por %p278, %p279
      %p282 = scmp.ne.s32.totalorder %s267, %s281
      %p283 = scmp.eq.s32.totalorder %s42, 0
      %p284 = por %p282, %p283
      %s286 = sadd.s32 %s285, 1
      %p289 = scmp.eq.s32.totalorder %s36, 1
      %p290 = scmp.ne.s32.totalorder %s285, %s287
      %p291 = scmp.eq.s32.totalorder %s36, 0
      %p292 = por %p290, %p291
      %p293 = scmp.ne.s32.totalorder %s285, %s287
      %p294 = scmp.eq.s32.totalorder %s41, 1
      %p295 = por %p293, %p294
      %p296 = scmp.ne.s32.totalorder %s287, %s288
      %p297 = scmp.eq.s32.totalorder %s41, 0
      %p298 = por %p296, %p297
      %p299 = scmp.ne.s32.totalorder %s287, %s288
      %p300 = scmp.eq.s32.totalorder %s42, 1
      %p301 = por %p299, %p300
      %p303 = scmp.ne.s32.totalorder %s288, %s302
      %p304 = scmp.eq.s32.totalorder %s42, 0
      %p305 = por %p303, %p304
      %s307 = sadd.s32 %s306, 1
      %p310 = scmp.eq.s32.totalorder %s36, 1
      %p311 = scmp.ne.s32.totalorder %s306, %s308
      %p312 = scmp.eq.s32.totalorder %s36, 0
      %p313 = por %p311, %p312
      %p314 = scmp.ne.s32.totalorder %s306, %s308
      %p315 = scmp.eq.s32.totalorder %s41, 1
      %p316 = por %p314, %p315
      %p317 = scmp.ne.s32.totalorder %s308, %s309
      %p318 = scmp.eq.s32.totalorder %s41, 0
      %p319 = por %p317, %p318
      %p320 = scmp.ne.s32.totalorder %s308, %s309
      %p321 = scmp.eq.s32.totalorder %s42, 1
      %p322 = por %p320, %p321
      %p324 = scmp.ne.s32.totalorder %s309, %s323
      %p325 = scmp.eq.s32.totalorder %s42, 0
      %p326 = por %p324, %p325
      %s328 = sadd.s32 %s327, 1
      %p331 = scmp.eq.s32.totalorder %s36, 1
      %p332 = scmp.ne.s32.totalorder %s327, %s329
      %p333 = scmp.eq.s32.totalorder %s36, 0
      %p334 = por %p332, %p333
      %p335 = scmp.ne.s32.totalorder %s327, %s329
      %p336 = scmp.eq.s32.totalorder %s41, 1
      %p337 = por %p335, %p336
      %p338 = scmp.ne.s32.totalorder %s329, %s330
      %p339 = scmp.eq.s32.totalorder %s41, 0
      %p340 = por %p338, %p339
      %p341 = scmp.ne.s32.totalorder %s329, %s330
      %p342 = scmp.eq.s32.totalorder %s42, 1
      %p343 = por %p341, %p342
      %p345 = scmp.ne.s32.totalorder %s330, %s344
      %p346 = scmp.eq.s32.totalorder %s42, 0
      %p347 = por %p345, %p346
      %s349 = sadd.s32 %s348, 1
      %p352 = scmp.eq.s32.totalorder %s36, 1
      %p353 = scmp.ne.s32.totalorder %s348, %s350
      %p354 = scmp.eq.s32.totalorder %s36, 0
      %p355 = por %p353, %p354
      %p356 = scmp.ne.s32.totalorder %s348, %s350
      %p357 = scmp.eq.s32.totalorder %s41, 1
      %p358 = por %p356, %p357
      %p359 = scmp.ne.s32.totalorder %s350, %s351
      %p360 = scmp.eq.s32.totalorder %s41, 0
      %p361 = por %p359, %p360
      %p362 = scmp.ne.s32.totalorder %s350, %s351
      %p363 = scmp.eq.s32.totalorder %s42, 1
      %p364 = por %p362, %p363
      %p366 = scmp.ne.s32.totalorder %s351, %s365
      %p367 = scmp.eq.s32.totalorder %s42, 0
      %p368 = por %p366, %p367
      %s370 = sadd.s32 %s369, 1
      %p373 = scmp.eq.s32.totalorder %s36, 1
      %p374 = scmp.ne.s32.totalorder %s369, %s371
      %p375 = scmp.eq.s32.totalorder %s36, 0
      %p376 = por %p374, %p375
      %p377 = scmp.ne.s32.totalorder %s369, %s371
      %p378 = scmp.eq.s32.totalorder %s41, 1
      %p379 = por %p377, %p378
      %p380 = scmp.ne.s32.totalorder %s371, %s372
      %p381 = scmp.eq.s32.totalorder %s41, 0
      %p382 = por %p380, %p381
      %p383 = scmp.ne.s32.totalorder %s371, %s372
      %p384 = scmp.eq.s32.totalorder %s42, 1
      %p385 = por %p383, %p384
      %p387 = scmp.ne.s32.totalorder %s372, %s386
      %p388 = scmp.eq.s32.totalorder %s42, 0
      %p389 = por %p387, %p388
      %s391 = sadd.s32 %s390, 1
      %p394 = scmp.eq.s32.totalorder %s36, 1
      %p395 = scmp.ne.s32.totalorder %s390, %s392
      %p396 = scmp.eq.s32.totalorder %s36, 0
      %p397 = por %p395, %p396
      %p398 = scmp.ne.s32.totalorder %s390, %s392
      %p399 = scmp.eq.s32.totalorder %s41, 1
      %p400 = por %p398, %p399
      %p401 = scmp.ne.s32.totalorder %s392, %s393
      %p402 = scmp.eq.s32.totalorder %s41, 0
      %p403 = por %p401, %p402
      %p404 = scmp.ne.s32.totalorder %s392, %s393
      %p405 = scmp.eq.s32.totalorder %s42, 1
      %p406 = por %p404, %p405
      %p408 = scmp.ne.s32.totalorder %s393, %s407
      %p409 = scmp.eq.s32.totalorder %s42, 0
      %p410 = por %p408, %p409
      %s412 = sadd.s32 %s411, 1
      %p415 = scmp.eq.s32.totalorder %s36, 1
      %p416 = scmp.ne.s32.totalorder %s411, %s413
      %p417 = scmp.eq.s32.totalorder %s36, 0
      %p418 = por %p416, %p417
      %p419 = scmp.ne.s32.totalorder %s411, %s413
      %p420 = scmp.eq.s32.totalorder %s41, 1
      %p421 = por %p419, %p420
      %p422 = scmp.ne.s32.totalorder %s413, %s414
      %p423 = scmp.eq.s32.totalorder %s41, 0
      %p424 = por %p422, %p423
      %p425 = scmp.ne.s32.totalorder %s413, %s414
      %p426 = scmp.eq.s32.totalorder %s42, 1
      %p427 = por %p425, %p426
      %p429 = scmp.ne.s32.totalorder %s414, %s428
      %p430 = scmp.eq.s32.totalorder %s42, 0
      %p431 = por %p429, %p430
      %s433 = sadd.s32 %s432, 1
      %p436 = scmp.eq.s32.totalorder %s36, 1
      %p437 = scmp.ne.s32.totalorder %s432, %s434
      %p438 = scmp.eq.s32.totalorder %s36, 0
      %p439 = por %p437, %p438
      %p440 = scmp.ne.s32.totalorder %s432, %s434
      %p441 = scmp.eq.s32.totalorder %s41, 1
      %p442 = por %p440, %p441
      %p443 = scmp.ne.s32.totalorder %s434, %s435
      %p444 = scmp.eq.s32.totalorder %s41, 0
      %p445 = por %p443, %p444
      %p446 = scmp.ne.s32.totalorder %s434, %s435
      %p447 = scmp.eq.s32.totalorder %s42, 1
      %p448 = por %p446, %p447
      %p450 = scmp.ne.s32.totalorder %s435, %s449
      %p451 = scmp.eq.s32.totalorder %s42, 0
      %p452 = por %p450, %p451
      %s453 = ssub.s32 %s36, %s43
      %p454 = scmp.eq.s32.totalorder %s453, 0
      %s456 = sadd.s32 %s455, 1
      %s457 = scalar_select %p454, %s455, %s456
      %p460 = pneg %p454
      %p461 = scmp.eq.s32.totalorder %s36, 1
      %p462 = por %p460, %p461
      %p463 = scmp.ne.s32.totalorder %s455, %s458
      %p464 = scmp.eq.s32.totalorder %s36, 0
      %p465 = por %p463, %p464
      %p466 = scmp.ne.s32.totalorder %s455, %s458
      %p467 = scmp.eq.s32.totalorder %s41, 1
      %p468 = por %p466, %p467
      %p469 = scmp.ne.s32.totalorder %s458, %s459
      %p470 = scmp.eq.s32.totalorder %s41, 0
      %p471 = por %p469, %p470
      %p472 = scmp.ne.s32.totalorder %s458, %s459
      %p473 = scmp.eq.s32.totalorder %s42, 1
      %p474 = por %p472, %p473
      %p476 = scmp.ne.s32.totalorder %s459, %s475
      %p477 = scmp.eq.s32.totalorder %s42, 0
      %p478 = por %p476, %p477
      %p479 = scmp.le.s32.totalorder 1, %s36
      %p480 = scmp.lt.s32.totalorder %s36, 3
      %p481 = pnand %p479, %p480
      %p482 = pneg %p481
      // Predicated region
      $region9: #{tpu_custom_call.1} parent=5 // pred_check
        _
      $region10: #{tpu_custom_call.1} parent=5 // pred_check_branch
        %484 = sbr.rel (%p481) target = $region12
      $region11: #{tpu_custom_call.1} parent=5 // pred_region
        %s485 = ssub.s32 %s36, 1
        // Predicated region
        $region13: #{tpu_custom_call.1} parent=11 // pred_check
          %p486 = pneg %p109
        $region14: #{tpu_custom_call.1} parent=11 // pred_check_branch
          %488 = sbr.rel (%p486) target = $region16
        $region15: #{tpu_custom_call.1} parent=11 // pred_region
          %s490 = ssub.s32 128, 128
          %491 = vsyncadd [#allocation7], %s490
          %s493 = sshll.u32 [#allocation8], 4
          %s494 = int_to_ptr.vmem [resolvable:$true] %s493
          %496 = dma.hbm_to_vmem [thread:$0]  %s2, 128, %s494, [#allocation7]
        $region16: #{tpu_custom_call.1} parent=11 // pred_fallthru
          _
        // Predicated region
        $region17: #{tpu_custom_call.1} parent=11 // pred_check
          %p497 = pneg %p130
        $region18: #{tpu_custom_call.1} parent=11 // pred_check_branch
          %499 = sbr.rel (%p497) target = $region20
        $region19: #{tpu_custom_call.1} parent=11 // pred_region
          _
        $region20: #{tpu_custom_call.1} parent=11 // pred_fallthru
          _
        // Predicated region
        $region21: #{tpu_custom_call.1} parent=11 // pred_check
          %p500 = pneg %p151
        $region22: #{tpu_custom_call.1} parent=11 // pred_check_branch
          %502 = sbr.rel (%p500) target = $region24
        $region23: #{tpu_custom_call.1} parent=11 // pred_region
          _
        $region24: #{tpu_custom_call.1} parent=11 // pred_fallthru
          _
        // Predicated region
        $region25: #{tpu_custom_call.1} parent=11 // pred_check
          %p503 = pneg %p172
        $region26: #{tpu_custom_call.1} parent=11 // pred_check_branch
          %505 = sbr.rel (%p503) target = $region28
        $region27: #{tpu_custom_call.1} parent=11 // pred_region
          _
        $region28: #{tpu_custom_call.1} parent=11 // pred_fallthru
          _
        // Predicated region
        $region29: #{tpu_custom_call.1} parent=11 // pred_check
          %p506 = pneg %p193
        $region30: #{tpu_custom_call.1} parent=11 // pred_check_branch
          %508 = sbr.rel (%p506) target = $region32
        $region31: #{tpu_custom_call.1} parent=11 // pred_region
          _
        $region32: #{tpu_custom_call.1} parent=11 // pred_fallthru
          _
        // Predicated region
        $region33: #{tpu_custom_call.1} parent=11 // pred_check
          %p509 = pneg %p214
        $region34: #{tpu_custom_call.1} parent=11 // pred_check_branch
          %511 = sbr.rel (%p509) target = $region36
        $region35: #{tpu_custom_call.1} parent=11 // pred_region
          _
        $region36: #{tpu_custom_call.1} parent=11 // pred_fallthru
          _
        // Predicated region
        $region37: #{tpu_custom_call.1} parent=11 // pred_check
          %p512 = pneg %p235
        $region38: #{tpu_custom_call.1} parent=11 // pred_check_branch
          %514 = sbr.rel (%p512) target = $region40
        $region39: #{tpu_custom_call.1} parent=11 // pred_region
          _
        $region40: #{tpu_custom_call.1} parent=11 // pred_fallthru
          _
        // Predicated region
        $region41: #{tpu_custom_call.1} parent=11 // pred_check
          %p515 = pneg %p256
        $region42: #{tpu_custom_call.1} parent=11 // pred_check_branch
          %517 = sbr.rel (%p515) target = $region44
        $region43: #{tpu_custom_call.1} parent=11 // pred_region
          %s519 = ssub.s32 256, 256
          %520 = vsyncadd [#allocation10], %s519
          %s521 = sshll.u32 [#allocation9], 4
          %s522 = int_to_ptr.vmem [resolvable:$true] %s521
          %527 = dma.hbm_to_vmem [thread:$0]  %s9, 256, %s522, [#allocation10], 64, 64, 4
        $region44: #{tpu_custom_call.1} parent=11 // pred_fallthru
          _
        // Predicated region
        $region45: #{tpu_custom_call.1} parent=11 // pred_check
          %p528 = pneg %p277
        $region46: #{tpu_custom_call.1} parent=11 // pred_check_branch
          %530 = sbr.rel (%p528) target = $region48
        $region47: #{tpu_custom_call.1} parent=11 // pred_region
          _
        $region48: #{tpu_custom_call.1} parent=11 // pred_fallthru
          _
        // Predicated region
        $region49: #{tpu_custom_call.1} parent=11 // pred_check
          %p531 = pneg %p298
        $region50: #{tpu_custom_call.1} parent=11 // pred_check_branch
          %533 = sbr.rel (%p531) target = $region52
        $region51: #{tpu_custom_call.1} parent=11 // pred_region
          %s535 = ssub.s32 256, 256
          %536 = vsyncadd [#allocation10], %s535
          %s537 = sshll.u32 [#allocation11], 4
          %s538 = int_to_ptr.vmem [resolvable:$true] %s537
          %543 = dma.hbm_to_vmem [thread:$0]  %s11, 256, %s538, [#allocation10], 64, 64, 4
        $region52: #{tpu_custom_call.1} parent=11 // pred_fallthru
          _
        // Predicated region
        $region53: #{tpu_custom_call.1} parent=11 // pred_check
          %p544 = pneg %p319
        $region54: #{tpu_custom_call.1} parent=11 // pred_check_branch
          %546 = sbr.rel (%p544) target = $region56
        $region55: #{tpu_custom_call.1} parent=11 // pred_region
          _
        $region56: #{tpu_custom_call.1} parent=11 // pred_fallthru
          _
        // Predicated region
        $region57: #{tpu_custom_call.1} parent=11 // pred_check
          %p547 = pneg %p340
        $region58: #{tpu_custom_call.1} parent=11 // pred_check_branch
          %549 = sbr.rel (%p547) target = $region60
        $region59: #{tpu_custom_call.1} parent=11 // pred_region
          _
        $region60: #{tpu_custom_call.1} parent=11 // pred_fallthru
          _
        // Predicated region
        $region61: #{tpu_custom_call.1} parent=11 // pred_check
          %p550 = pneg %p361
        $region62: #{tpu_custom_call.1} parent=11 // pred_check_branch
          %552 = sbr.rel (%p550) target = $region64
        $region63: #{tpu_custom_call.1} parent=11 // pred_region
          _
        $region64: #{tpu_custom_call.1} parent=11 // pred_fallthru
          _
        // Predicated region
        $region65: #{tpu_custom_call.1} parent=11 // pred_check
          %p553 = pneg %p382
        $region66: #{tpu_custom_call.1} parent=11 // pred_check_branch
          %555 = sbr.rel (%p553) target = $region68
        $region67: #{tpu_custom_call.1} parent=11 // pred_region
          %s557 = ssub.s32 256, 256
          %558 = vsyncadd [#allocation13], %s557
          %s559 = sshll.u32 [#allocation12], 4
          %s560 = int_to_ptr.vmem [resolvable:$true] %s559
          %565 = dma.hbm_to_vmem [thread:$0]  %s15, 256, %s560, [#allocation13], 64, 64, 4
        $region68: #{tpu_custom_call.1} parent=11 // pred_fallthru
          _
        // Predicated region
        $region69: #{tpu_custom_call.1} parent=11 // pred_check
          %p566 = pneg %p403
        $region70: #{tpu_custom_call.1} parent=11 // pred_check_branch
          %568 = sbr.rel (%p566) target = $region72
        $region71: #{tpu_custom_call.1} parent=11 // pred_region
          _
        $region72: #{tpu_custom_call.1} parent=11 // pred_fallthru
          _
        // Predicated region
        $region73: #{tpu_custom_call.1} parent=11 // pred_check
          %p569 = pneg %p424
        $region74: #{tpu_custom_call.1} parent=11 // pred_check_branch
          %571 = sbr.rel (%p569) target = $region76
        $region75: #{tpu_custom_call.1} parent=11 // pred_region
          _
        $region76: #{tpu_custom_call.1} parent=11 // pred_fallthru
          _
        // Predicated region
        $region77: #{tpu_custom_call.1} parent=11 // pred_check
          %p572 = pneg %p445
        $region78: #{tpu_custom_call.1} parent=11 // pred_check_branch
          %574 = sbr.rel (%p572) target = $region80
        $region79: #{tpu_custom_call.1} parent=11 // pred_region
          _
        $region80: #{tpu_custom_call.1} parent=11 // pred_fallthru
          _
      $region12: #{tpu_custom_call.1} parent=5 // pred_fallthru
        _
      %p575 = scmp.lt.s32.totalorder %s36, 2
      // Predicated region
      $region81: #{tpu_custom_call.1} parent=5 // pred_check
        %p576 = pneg %p575
      $region82: #{tpu_custom_call.1} parent=5 // pred_check_branch
        %578 = sbr.rel (%p576) target = $region84
      $region83: #{tpu_custom_call.1} parent=5 // pred_region
        // Predicated region
        $region85: #{tpu_custom_call.1} parent=83 // pred_check
          %p579 = pneg %p56
        $region86: #{tpu_custom_call.1} parent=83 // pred_check_branch
          %581 = sbr.rel (%p579) target = $region88
        $region87: #{tpu_custom_call.1} parent=83 // pred_region
          %s582 = sand.u32 %s46, 1
          %s583 = scalar_lea.sflag [#allocation4], %s582
          %s584 = sand.u32 %s46, 1
          %s585 = smul.addr %s584, 4
          %s586 = scalar_lea.vmem [#allocation3], %s585
          %s588 = ssub.s32 64, 64
          %589 = vsyncadd %s583, %s588
          %s590 = smul.addr %s36, 64
          %s591 = scalar_lea.hbm %s0, %s590
          %s593 = sshll.u32 %s586, 4
          %s594 = int_to_ptr.vmem [resolvable:$true] %s593
          %596 = dma.hbm_to_vmem [thread:$0]  %s591, 64, %s594, %s583
        $region88: #{tpu_custom_call.1} parent=83 // pred_fallthru
          _
        // Predicated region
        $region89: #{tpu_custom_call.1} parent=83 // pred_check
          %p597 = pneg %p82
        $region90: #{tpu_custom_call.1} parent=83 // pred_check_branch
          %599 = sbr.rel (%p597) target = $region92
        $region91: #{tpu_custom_call.1} parent=83 // pred_region
          %s600 = sand.u32 %s36, 1
          %s601 = scalar_lea.sflag [#allocation7], %s600
          %s602 = sand.u32 %s72, 1
          %s603 = smul.addr %s602, 4
          %s604 = scalar_lea.vmem [#allocation6], %s603
          %s606 = ssub.s32 64, 64
          %607 = vsyncadd %s601, %s606
          %s608 = smul.addr %s36, 64
          %s609 = scalar_lea.hbm %s1, %s608
          %s611 = sshll.u32 %s604, 4
          %s612 = int_to_ptr.vmem [resolvable:$true] %s611
          %614 = dma.hbm_to_vmem [thread:$0]  %s609, 64, %s612, %s601
        $region92: #{tpu_custom_call.1} parent=83 // pred_fallthru
          _
      $region84: #{tpu_custom_call.1} parent=5 // pred_fallthru
        _
      %p615 = scmp.le.s32.totalorder 1, %s36
      %p616 = scmp.lt.s32.totalorder %s36, 3
      %p617 = pnand %p615, %p616
      %p618 = pneg %p617
      // Predicated region
      $region93: #{tpu_custom_call.1} parent=5 // pred_check
        _
      $region94: #{tpu_custom_call.1} parent=5 // pred_check_branch
        %620 = sbr.rel (%p617) target = $region96
      $region95: #{tpu_custom_call.1} parent=5 // pred_region
        %s621 = ssub.s32 %s36, 1
        %s622 = sand.u32 %s49, 1
        %s623 = scalar_lea.sflag [#allocation4], %s622
        %s624 = sand.u32 %s49, 1
        %s625 = smul.addr %s624, 4
        %s626 = scalar_lea.vmem [#allocation3], %s625
        // Predicated region
        $region97: #{tpu_custom_call.1} parent=95 // pred_check
          %p627 = pneg %p62
        $region98: #{tpu_custom_call.1} parent=95 // pred_check_branch
          %629 = sbr.rel (%p627) target = $region100
        $region99: #{tpu_custom_call.1} parent=95 // pred_region
          %630 = dma.done %s623, 64
        $region100: #{tpu_custom_call.1} parent=95 // pred_fallthru
          _
        %s631 = sand.u32 %s41, 1
        %s632 = scalar_lea.sflag [#allocation7], %s631
        %s633 = sand.u32 %s75, 1
        %s634 = smul.addr %s633, 4
        %s635 = scalar_lea.vmem [#allocation6], %s634
        // Predicated region
        $region101: #{tpu_custom_call.1} parent=95 // pred_check
          %p636 = pneg %p88
        $region102: #{tpu_custom_call.1} parent=95 // pred_check_branch
          %638 = sbr.rel (%p636) target = $region104
        $region103: #{tpu_custom_call.1} parent=95 // pred_region
          %639 = dma.done %s632, 64
        $region104: #{tpu_custom_call.1} parent=95 // pred_fallthru
          _
        // Predicated region
        $region105: #{tpu_custom_call.1} parent=95 // pred_check
          %p640 = pneg %p109
        $region106: #{tpu_custom_call.1} parent=95 // pred_check_branch
          %642 = sbr.rel (%p640) target = $region108
        $region107: #{tpu_custom_call.1} parent=95 // pred_region
          %643 = dma.done [#allocation7], 128
        $region108: #{tpu_custom_call.1} parent=95 // pred_fallthru
          _
        // Predicated region
        $region109: #{tpu_custom_call.1} parent=95 // pred_check
          %p644 = pneg %p256
        $region110: #{tpu_custom_call.1} parent=95 // pred_check_branch
          %646 = sbr.rel (%p644) target = $region112
        $region111: #{tpu_custom_call.1} parent=95 // pred_region
          %647 = dma.done [#allocation10], 256
        $region112: #{tpu_custom_call.1} parent=95 // pred_fallthru
          _
        // Predicated region
        $region113: #{tpu_custom_call.1} parent=95 // pred_check
          %p648 = pneg %p298
        $region114: #{tpu_custom_call.1} parent=95 // pred_check_branch
          %650 = sbr.rel (%p648) target = $region116
        $region115: #{tpu_custom_call.1} parent=95 // pred_region
          %651 = dma.done [#allocation10], 256
        $region116: #{tpu_custom_call.1} parent=95 // pred_fallthru
          _
        // Predicated region
        $region117: #{tpu_custom_call.1} parent=95 // pred_check
          %p652 = pneg %p382
        $region118: #{tpu_custom_call.1} parent=95 // pred_check_branch
          %654 = sbr.rel (%p652) target = $region120
        $region119: #{tpu_custom_call.1} parent=95 // pred_region
          %655 = dma.done [#allocation13], 256
        $region120: #{tpu_custom_call.1} parent=95 // pred_fallthru
          _
        %s656 = sand.u32 %s49, 1
        %s657 = scalar_lea.sflag [#allocation4], %s656
        %s658 = sand.u32 %s49, 1
        %s659 = smul.addr %s658, 4
        %s660 = scalar_lea.vmem [#allocation3], %s659
        %p661 = pneg %p62
        %p662 = pneg %p59
        %s663 = sand.u32 %s41, 1
        %s664 = scalar_lea.sflag [#allocation7], %s663
        %s665 = sand.u32 %s75, 1
        %s666 = smul.addr %s665, 4
        %s667 = scalar_lea.vmem [#allocation6], %s666
        %p668 = pneg %p88
        %p669 = pneg %p85
        %p670 = pneg %p109
        %p671 = pneg %p106
        %p672 = pneg %p130
        %p673 = pneg %p127
        %p674 = pneg %p151
        %p675 = pneg %p148
        %p676 = pneg %p172
        %p677 = pneg %p169
        %p678 = pneg %p193
        %p679 = pneg %p190
        %p680 = pneg %p214
        %p681 = pneg %p211
        %p682 = pneg %p235
        %p683 = pneg %p232
        %p684 = pneg %p256
        %p685 = pneg %p253
        %p686 = pneg %p277
        %p687 = pneg %p274
        %p688 = pneg %p298
        %p689 = pneg %p295
        %p690 = pneg %p319
        %p691 = pneg %p316
        %p692 = pneg %p340
        %p693 = pneg %p337
        %p694 = pneg %p361
        %p695 = pneg %p358
        %p696 = pneg %p382
        %p697 = pneg %p379
        %p698 = pneg %p403
        %p699 = pneg %p400
        %p700 = pneg %p424
        %p701 = pneg %p421
        %p702 = pneg %p445
        %p703 = pneg %p442
        %p704 = pneg %p471
        %p705 = pneg %p468
        %s706 = sand.u32 %s458, 1
        %s707 = scalar_lea.sflag [#allocation5], %s706
        %s708 = sand.u32 %s458, 1
        %s709 = smul.addr %s708, 8
        %s710 = scalar_lea.vmem [#allocation14], %s709
        %v712 = vld [vmem:[%s626] sm:$0xf]
        %v713 = vunpack.c.l.bf16 %v712
        %v714 = vld [vmem:[%s635] sm:$0xf]
        %v715 = vld [vmem:[#allocation8] sm:$0xff]
        %v716 = vld [vmem:[%s3] sm:$0xf]
        %v717 = vld [vmem:[%s3 + $0x4] sm:$0xf]
        %v718 = vld [vmem:[%s3 + $0x8] sm:$0xf]
        %v719 = vld [vmem:[%s3 + $0xc] sm:$0xf]
        %v720 = vld [vmem:[%s4] sm:$0x1]
        %v722 = vlaneseq
        %v723 = vshrl.u32 %v722, 7
        %v724 = vsub.s32 0, %v723
        %v725 = vrot.slane %v720, %v724
        %v731 = vunpack.c.l.b16 %v716
        %v732 = vunpack.c.l.b16 %v717
        %v733 = vunpack.c.l.b16 %v718
        %v734 = vunpack.c.l.b16 %v719
        %v735 = vpack.c.b16 %v732, %v731
        %v736 = vpack.c.b16 %v734, %v733
        %vm739 = vcmask 261120
        %v741 = vsel %vm739, %v712, 0
        %743 = vmatprep.subr.bf16.mxu0 0
        %744 = vmatpush1.bf16.msra.mxu0 0
        %745 = vmatprep.subr.bf16.mxu0 0
        %746 = vmatpush1.bf16.msra.mxu0 0
        %747 = vmatprep.subr.bf16.mxu0 0
        %748 = vmatpush1.bf16.msra.mxu0 0
        %749 = vmatprep.subr.bf16.mxu0 0
        %750 = vmatpush1.bf16.msra.mxu0 0
        %751 = vmatprep.subr.bf16.mxu0 0
        %752 = vmatpush1.bf16.msra.mxu0 0
        %753 = vmatprep.subr.bf16.mxu0 0
        %754 = vmatpush1.bf16.msra.mxu0 0
        %755 = vmatprep.subr.bf16.mxu0 0
        %756 = vmatpush1.bf16.msra.mxu0 %v736
        %757 = vmatprep.subr.bf16.mxu0 0
        %758 = vmatpush1.bf16.msra.mxu0 %v735
        %759 = vmatprep.subr.bf16.mxu0 0
        %760 = vmatpush2.bf16.msra.mxu0 0
        %761 = vmatprep.subr.bf16.mxu0 0
        %762 = vmatpush2.bf16.msra.mxu0 0
        %763 = vmatprep.subr.bf16.mxu0 0
        %764 = vmatpush2.bf16.msra.mxu0 0
        %765 = vmatprep.subr.bf16.mxu0 0
        %766 = vmatpush2.bf16.msra.mxu0 0
        %767 = vmatprep.subr.bf16.mxu0 0
        %768 = vmatpush2.bf16.msra.mxu0 0
        %769 = vmatprep.subr.bf16.mxu0 0
        %770 = vmatpush2.bf16.msra.mxu0 0
        %771 = vmatprep.subr.bf16.mxu0 0
        %772 = vmatpush2.bf16.msra.mxu0 0
        %773 = vmatprep.subr.bf16.mxu0 0
        %774 = vmatpush2.bf16.msra.mxu0 0
        %775 = vmatprep.mubr.bf16.mxu0 0
        %776 = vmatmul.mubr.bf16.gmra.mxu0 %v741
        %v777 = vpop.f32.mrf.mxu0
        %v778 = vadd.f32 %v725, %v777
        %v779 = vpop.f32.mrf.mxu0
        %v780 = vpop.f32.mrf.mxu0
        %v781 = vpop.f32.mrf.mxu0
        %782 = vdwg.mxu0
        %v783 = vpack.c.bf16 %v778, %v778
        %v784 = vld [vmem:[%s6] sm:$0x1]
        %786 = vrot.lane.b32.xlu0 %v783, 96
        %v787 = vpop.permute.xlu0 %786
        %vm788 = vcmask 64512
        %v790 = vsel %vm788, %v783, 0
        %v793 = vsel %vm788, %v787, 0
        %795 = vmatprep.subr.bf16.mxu0 0
        %796 = vmatpush1.bf16.xpose.msra.mxu0 0
        %797 = vmatprep.subr.bf16.mxu0 0
        %798 = vmatpush1.bf16.xpose.msra.mxu0 0
        %799 = vmatprep.subr.bf16.mxu0 0
        %800 = vmatpush1.bf16.xpose.msra.mxu0 0
        %801 = vmatprep.subr.bf16.mxu0 0
        %802 = vmatpush1.bf16.xpose.msra.mxu0 0
        %803 = vmatprep.subr.bf16.mxu0 0
        %804 = vmatpush1.bf16.xpose.msra.mxu0 0
        %805 = vmatprep.subr.bf16.mxu0 0
        %806 = vmatpush1.bf16.xpose.msra.mxu0 0
        %807 = vmatprep.subr.bf16.mxu0 0
        %808 = vmatpush1.bf16.xpose.msra.mxu0 0
        %809 = vmatprep.subr.bf16.mxu0 0
        %810 = vmatpush1.bf16.xpose.msra.mxu0 %v793
        %811 = vmatprep.subr.bf16.mxu0 0
        %812 = vmatpush2.bf16.xpose.msra.mxu0 0
        %813 = vmatprep.subr.bf16.mxu0 0
        %814 = vmatpush2.bf16.xpose.msra.mxu0 0
        %815 = vmatprep.subr.bf16.mxu0 0
        %816 = vmatpush2.bf16.xpose.msra.mxu0 0
        %817 = vmatprep.subr.bf16.mxu0 0
        %818 = vmatpush2.bf16.xpose.msra.mxu0 0
        %819 = vmatprep.subr.bf16.mxu0 0
        %820 = vmatpush2.bf16.xpose.msra.mxu0 0
        %821 = vmatprep.subr.bf16.mxu0 0
        %822 = vmatpush2.bf16.xpose.msra.mxu0 0
        %823 = vmatprep.subr.bf16.mxu0 0
        %824 = vmatpush2.bf16.xpose.msra.mxu0 0
        %825 = vmatprep.subr.bf16.mxu0 0
        %826 = vmatpush2.bf16.xpose.msra.mxu0 0
        %827 = vmatprep.mubr.bf16.mxu0 0
        %828 = vmatmul.mubr.bf16.gmra.mxu0 %v790
        %v829 = vpop.f32.mrf.mxu0
        %v830 = vadd.f32 %v715, %v829
        %v831 = vpop.f32.mrf.mxu0
        %v832 = vpop.f32.mrf.mxu0
        %v833 = vpop.f32.mrf.mxu0
        %834 = vdwg.mxu0
        %v835 = vsel %vm788, %v830, -inf
        %836 = vmax.xlane.f32.xlu0 %v835
        %v837 = vpop.xlane.xlu0 %836
        %v838 = vsub.f32 %v830, %v837
        %v839 = vmul.f32 %v838, 1.442695
        %v840 = vpow.pop %v839
        %v841 = vsel %vm788, %v840, 0.0
        %842 = vadd.xlane.f32.xlu0 %v841
        %v843 = vpop.xlane.xlu0 %842
        %v844 = vrcp.pop %v843
        %v845 = vmul.f32 %v840, %v844
        %v846 = vpack.c.bf16 %v845, %v845
        %847 = vrot.lane.b32.xlu0 %v783, 64
        %v848 = vpop.permute.xlu0 %847
        %v850 = vsel %vm788, %v846, 0
        %vm852 = vcmask 1043456
        %v854 = vsel %vm852, %v848, 0
        %856 = vmatprep.subr.bf16.mxu0 0
        %857 = vmatpush1.bf16.msra.mxu0 0
        %858 = vmatprep.subr.bf16.mxu0 0
        %859 = vmatpush1.bf16.msra.mxu0 0
        %860 = vmatprep.subr.bf16.mxu0 0
        %861 = vmatpush1.bf16.msra.mxu0 0
        %862 = vmatprep.subr.bf16.mxu0 0
        %863 = vmatpush1.bf16.msra.mxu0 0
        %864 = vmatprep.subr.bf16.mxu0 0
        %865 = vmatpush1.bf16.msra.mxu0 0
        %866 = vmatprep.subr.bf16.mxu0 0
        %867 = vmatpush1.bf16.msra.mxu0 0
        %868 = vmatprep.subr.bf16.mxu0 0
        %869 = vmatpush1.bf16.msra.mxu0 0
        %870 = vmatprep.subr.bf16.mxu0 0
        %871 = vmatpush1.bf16.msra.mxu0 %v854
        %872 = vmatprep.subr.bf16.mxu0 0
        %873 = vmatpush2.bf16.msra.mxu0 0
        %874 = vmatprep.subr.bf16.mxu0 0
        %875 = vmatpush2.bf16.msra.mxu0 0
        %876 = vmatprep.subr.bf16.mxu0 0
        %877 = vmatpush2.bf16.msra.mxu0 0
        %878 = vmatprep.subr.bf16.mxu0 0
        %879 = vmatpush2.bf16.msra.mxu0 0
        %880 = vmatprep.subr.bf16.mxu0 0
        %881 = vmatpush2.bf16.msra.mxu0 0
        %882 = vmatprep.subr.bf16.mxu0 0
        %883 = vmatpush2.bf16.msra.mxu0 0
        %884 = vmatprep.subr.bf16.mxu0 0
        %885 = vmatpush2.bf16.msra.mxu0 0
        %886 = vmatprep.subr.bf16.mxu0 0
        %887 = vmatpush2.bf16.msra.mxu0 0
        %888 = vmatprep.mubr.bf16.mxu0 0
        %889 = vmatmul.mubr.bf16.gmra.mxu0 %v850
        %v890 = vpop.f32.mrf.mxu0
        %v891 = vadd.f32 0.0, %v890
        %v892 = vpop.f32.mrf.mxu0
        %v893 = vpop.f32.mrf.mxu0
        %v894 = vpop.f32.mrf.mxu0
        %895 = vdwg.mxu0
        %896 = vst.msk [vmem:[#allocation2] sm:$0xff] %vm788, %v891
        %897 = vrot.lane.b32.xlu0 %v783, 120
        %v898 = vpop.permute.xlu0 %897
        %899 = vrot.lane.b32.xlu0 %v783, 88
        %v900 = vpop.permute.xlu0 %899
        %v902 = vsel %vm788, %v898, 0
        %v905 = vsel %vm788, %v900, 0
        %907 = vmatprep.subr.bf16.mxu0 0
        %908 = vmatpush1.bf16.xpose.msra.mxu0 0
        %909 = vmatprep.subr.bf16.mxu0 0
        %910 = vmatpush1.bf16.xpose.msra.mxu0 0
        %911 = vmatprep.subr.bf16.mxu0 0
        %912 = vmatpush1.bf16.xpose.msra.mxu0 0
        %913 = vmatprep.subr.bf16.mxu0 0
        %914 = vmatpush1.bf16.xpose.msra.mxu0 0
        %915 = vmatprep.subr.bf16.mxu0 0
        %916 = vmatpush1.bf16.xpose.msra.mxu0 0
        %917 = vmatprep.subr.bf16.mxu0 0
        %918 = vmatpush1.bf16.xpose.msra.mxu0 0
        %919 = vmatprep.subr.bf16.mxu0 0
        %920 = vmatpush1.bf16.xpose.msra.mxu0 0
        %921 = vmatprep.subr.bf16.mxu0 0
        %922 = vmatpush1.bf16.xpose.msra.mxu0 %v905
        %923 = vmatprep.subr.bf16.mxu0 0
        %924 = vmatpush2.bf16.xpose.msra.mxu0 0
        %925 = vmatprep.subr.bf16.mxu0 0
        %926 = vmatpush2.bf16.xpose.msra.mxu0 0
        %927 = vmatprep.subr.bf16.mxu0 0
        %928 = vmatpush2.bf16.xpose.msra.mxu0 0
        %929 = vmatprep.subr.bf16.mxu0 0
        %930 = vmatpush2.bf16.xpose.msra.mxu0 0
        %931 = vmatprep.subr.bf16.mxu0 0
        %932 = vmatpush2.bf16.xpose.msra.mxu0 0
        %933 = vmatprep.subr.bf16.mxu0 0
        %934 = vmatpush2.bf16.xpose.msra.mxu0 0
        %935 = vmatprep.subr.bf16.mxu0 0
        %936 = vmatpush2.bf16.xpose.msra.mxu0 0
        %937 = vmatprep.subr.bf16.mxu0 0
        %938 = vmatpush2.bf16.xpose.msra.mxu0 0
        %939 = vmatprep.mubr.bf16.mxu0 0
        %940 = vmatmul.mubr.bf16.gmra.mxu0 %v902
        %v941 = vpop.f32.mrf.mxu0
        %v942 = vadd.f32 %v715, %v941
        %v943 = vpop.f32.mrf.mxu0
        %v944 = vpop.f32.mrf.mxu0
        %v945 = vpop.f32.mrf.mxu0
        %946 = vdwg.mxu0
        %v947 = vsel %vm788, %v942, -inf
        %948 = vmax.xlane.f32.xlu0 %v947
        %v949 = vpop.xlane.xlu0 %948
        %v950 = vsub.f32 %v942, %v949
        %v951 = vmul.f32 %v950, 1.442695
        %v952 = vpow.pop %v951
        %v953 = vsel %vm788, %v952, 0.0
        %954 = vadd.xlane.f32.xlu0 %v953
        %v955 = vpop.xlane.xlu0 %954
        %v956 = vrcp.pop %v955
        %v957 = vmul.f32 %v952, %v956
        %v958 = vpack.c.bf16 %v957, %v957
        %959 = vrot.lane.b32.xlu0 %v783, 56
        %v960 = vpop.permute.xlu0 %959
        %v962 = vsel %vm788, %v958, 0
        %v965 = vsel %vm852, %v960, 0
        %967 = vmatprep.subr.bf16.mxu0 0
        %968 = vmatpush1.bf16.msra.mxu0 0
        %969 = vmatprep.subr.bf16.mxu0 0
        %970 = vmatpush1.bf16.msra.mxu0 0
        %971 = vmatprep.subr.bf16.mxu0 0
        %972 = vmatpush1.bf16.msra.mxu0 0
        %973 = vmatprep.subr.bf16.mxu0 0
        %974 = vmatpush1.bf16.msra.mxu0 0
        %975 = vmatprep.subr.bf16.mxu0 0
        %976 = vmatpush1.bf16.msra.mxu0 0
        %977 = vmatprep.subr.bf16.mxu0 0
        %978 = vmatpush1.bf16.msra.mxu0 0
        %979 = vmatprep.subr.bf16.mxu0 0
        %980 = vmatpush1.bf16.msra.mxu0 0
        %981 = vmatprep.subr.bf16.mxu0 0
        %982 = vmatpush1.bf16.msra.mxu0 %v965
        %983 = vmatprep.subr.bf16.mxu0 0
        %984 = vmatpush2.bf16.msra.mxu0 0
        %985 = vmatprep.subr.bf16.mxu0 0
        %986 = vmatpush2.bf16.msra.mxu0 0
        %987 = vmatprep.subr.bf16.mxu0 0
        %988 = vmatpush2.bf16.msra.mxu0 0
        %989 = vmatprep.subr.bf16.mxu0 0
        %990 = vmatpush2.bf16.msra.mxu0 0
        %991 = vmatprep.subr.bf16.mxu0 0
        %992 = vmatpush2.bf16.msra.mxu0 0
        %993 = vmatprep.subr.bf16.mxu0 0
        %994 = vmatpush2.bf16.msra.mxu0 0
        %995 = vmatprep.subr.bf16.mxu0 0
        %996 = vmatpush2.bf16.msra.mxu0 0
        %997 = vmatprep.subr.bf16.mxu0 0
        %998 = vmatpush2.bf16.msra.mxu0 0
        %999 = vmatprep.mubr.bf16.mxu0 0
        %1000 = vmatmul.mubr.bf16.gmra.mxu0 %v962
        %v1001 = vpop.f32.mrf.mxu0
        %v1002 = vadd.f32 0.0, %v1001
        %v1003 = vpop.f32.mrf.mxu0
        %v1004 = vpop.f32.mrf.mxu0
        %v1005 = vpop.f32.mrf.mxu0
        %1006 = vdwg.mxu0
        %1008 = vrot.lane.b32.xlu0 %v1002, 8
        %v1009 = vpop.permute.xlu0 %1008
        %vm1011 = vcmask 130112
        %1012 = vst.msk [vmem:[#allocation2] sm:$0xff] %vm1011, %v1009
        %1013 = vrot.lane.b32.xlu0 %v783, 112
        %v1014 = vpop.permute.xlu0 %1013
        %1015 = vrot.lane.b32.xlu0 %v783, 80
        %v1016 = vpop.permute.xlu0 %1015
        %v1018 = vsel %vm788, %v1014, 0
        %v1021 = vsel %vm788, %v1016, 0
        %1023 = vmatprep.subr.bf16.mxu0 0
        %1024 = vmatpush1.bf16.xpose.msra.mxu0 0
        %1025 = vmatprep.subr.bf16.mxu0 0
        %1026 = vmatpush1.bf16.xpose.msra.mxu0 0
        %1027 = vmatprep.subr.bf16.mxu0 0
        %1028 = vmatpush1.bf16.xpose.msra.mxu0 0
        %1029 = vmatprep.subr.bf16.mxu0 0
        %1030 = vmatpush1.bf16.xpose.msra.mxu0 0
        %1031 = vmatprep.subr.bf16.mxu0 0
        %1032 = vmatpush1.bf16.xpose.msra.mxu0 0
        %1033 = vmatprep.subr.bf16.mxu0 0
        %1034 = vmatpush1.bf16.xpose.msra.mxu0 0
        %1035 = vmatprep.subr.bf16.mxu0 0
        %1036 = vmatpush1.bf16.xpose.msra.mxu0 0
        %1037 = vmatprep.subr.bf16.mxu0 0
        %1038 = vmatpush1.bf16.xpose.msra.mxu0 %v1021
        %1039 = vmatprep.subr.bf16.mxu0 0
        %1040 = vmatpush2.bf16.xpose.msra.mxu0 0
        %1041 = vmatprep.subr.bf16.mxu0 0
        %1042 = vmatpush2.bf16.xpose.msra.mxu0 0
        %1043 = vmatprep.subr.bf16.mxu0 0
        %1044 = vmatpush2.bf16.xpose.msra.mxu0 0
        %1045 = vmatprep.subr.bf16.mxu0 0
        %1046 = vmatpush2.bf16.xpose.msra.mxu0 0
        %1047 = vmatprep.subr.bf16.mxu0 0
        %1048 = vmatpush2.bf16.xpose.msra.mxu0 0
        %1049 = vmatprep.subr.bf16.mxu0 0
        %1050 = vmatpush2.bf16.xpose.msra.mxu0 0
        %1051 = vmatprep.subr.bf16.mxu0 0
        %1052 = vmatpush2.bf16.xpose.msra.mxu0 0
        %1053 = vmatprep.subr.bf16.mxu0 0
        %1054 = vmatpush2.bf16.xpose.msra.mxu0 0
        %1055 = vmatprep.mubr.bf16.mxu0 0
        %1056 = vmatmul.mubr.bf16.gmra.mxu0 %v1018
        %v1057 = vpop.f32.mrf.mxu0
        %v1058 = vadd.f32 %v715, %v1057
        %v1059 = vpop.f32.mrf.mxu0
        %v1060 = vpop.f32.mrf.mxu0
        %v1061 = vpop.f32.mrf.mxu0
        %1062 = vdwg.mxu0
        %v1063 = vsel %vm788, %v1058, -inf
        %1064 = vmax.xlane.f32.xlu0 %v1063
        %v1065 = vpop.xlane.xlu0 %1064
        %v1066 = vsub.f32 %v1058, %v1065
        %v1067 = vmul.f32 %v1066, 1.442695
        %v1068 = vpow.pop %v1067
        %v1069 = vsel %vm788, %v1068, 0.0
        %1070 = vadd.xlane.f32.xlu0 %v1069
        %v1071 = vpop.xlane.xlu0 %1070
        %v1072 = vrcp.pop %v1071
        %v1073 = vmul.f32 %v1068, %v1072
        %v1074 = vpack.c.bf16 %v1073, %v1073
        %1075 = vrot.lane.b32.xlu0 %v783, 48
        %v1076 = vpop.permute.xlu0 %1075
        %v1078 = vsel %vm788, %v1074, 0
        %v1081 = vsel %vm852, %v1076, 0
        %1083 = vmatprep.subr.bf16.mxu0 0
        %1084 = vmatpush1.bf16.msra.mxu0 0
        %1085 = vmatprep.subr.bf16.mxu0 0
        %1086 = vmatpush1.bf16.msra.mxu0 0
        %1087 = vmatprep.subr.bf16.mxu0 0
        %1088 = vmatpush1.bf16.msra.mxu0 0
        %1089 = vmatprep.subr.bf16.mxu0 0
        %1090 = vmatpush1.bf16.msra.mxu0 0
        %1091 = vmatprep.subr.bf16.mxu0 0
        %1092 = vmatpush1.bf16.msra.mxu0 0
        %1093 = vmatprep.subr.bf16.mxu0 0
        %1094 = vmatpush1.bf16.msra.mxu0 0
        %1095 = vmatprep.subr.bf16.mxu0 0
        %1096 = vmatpush1.bf16.msra.mxu0 0
        %1097 = vmatprep.subr.bf16.mxu0 0
        %1098 = vmatpush1.bf16.msra.mxu0 %v1081
        %1099 = vmatprep.subr.bf16.mxu0 0
        %1100 = vmatpush2.bf16.msra.mxu0 0
        %1101 = vmatprep.subr.bf16.mxu0 0
        %1102 = vmatpush2.bf16.msra.mxu0 0
        %1103 = vmatprep.subr.bf16.mxu0 0
        %1104 = vmatpush2.bf16.msra.mxu0 0
        %1105 = vmatprep.subr.bf16.mxu0 0
        %1106 = vmatpush2.bf16.msra.mxu0 0
        %1107 = vmatprep.subr.bf16.mxu0 0
        %1108 = vmatpush2.bf16.msra.mxu0 0
        %1109 = vmatprep.subr.bf16.mxu0 0
        %1110 = vmatpush2.bf16.msra.mxu0 0
        %1111 = vmatprep.subr.bf16.mxu0 0
        %1112 = vmatpush2.bf16.msra.mxu0 0
        %1113 = vmatprep.subr.bf16.mxu0 0
        %1114 = vmatpush2.bf16.msra.mxu0 0
        %1115 = vmatprep.mubr.bf16.mxu0 0
        %1116 = vmatmul.mubr.bf16.gmra.mxu0 %v1078
        %v1117 = vpop.f32.mrf.mxu0
        %v1118 = vadd.f32 0.0, %v1117
        %v1119 = vpop.f32.mrf.mxu0
        %v1120 = vpop.f32.mrf.mxu0
        %v1121 = vpop.f32.mrf.mxu0
        %1122 = vdwg.mxu0
        %1124 = vrot.lane.b32.xlu0 %v1118, 16
        %v1125 = vpop.permute.xlu0 %1124
        %vm1127 = vcmask 195712
        %1128 = vst.msk [vmem:[#allocation2] sm:$0xff] %vm1127, %v1125
        %1129 = vrot.lane.b32.xlu0 %v783, 104
        %v1130 = vpop.permute.xlu0 %1129
        %1131 = vrot.lane.b32.xlu0 %v783, 72
        %v1132 = vpop.permute.xlu0 %1131
        %v1134 = vsel %vm788, %v1130, 0
        %v1137 = vsel %vm788, %v1132, 0
        %1139 = vmatprep.subr.bf16.mxu0 0
        %1140 = vmatpush1.bf16.xpose.msra.mxu0 0
        %1141 = vmatprep.subr.bf16.mxu0 0
        %1142 = vmatpush1.bf16.xpose.msra.mxu0 0
        %1143 = vmatprep.subr.bf16.mxu0 0
        %1144 = vmatpush1.bf16.xpose.msra.mxu0 0
        %1145 = vmatprep.subr.bf16.mxu0 0
        %1146 = vmatpush1.bf16.xpose.msra.mxu0 0
        %1147 = vmatprep.subr.bf16.mxu0 0
        %1148 = vmatpush1.bf16.xpose.msra.mxu0 0
        %1149 = vmatprep.subr.bf16.mxu0 0
        %1150 = vmatpush1.bf16.xpose.msra.mxu0 0
        %1151 = vmatprep.subr.bf16.mxu0 0
        %1152 = vmatpush1.bf16.xpose.msra.mxu0 0
        %1153 = vmatprep.subr.bf16.mxu0 0
        %1154 = vmatpush1.bf16.xpose.msra.mxu0 %v1137
        %1155 = vmatprep.subr.bf16.mxu0 0
        %1156 = vmatpush2.bf16.xpose.msra.mxu0 0
        %1157 = vmatprep.subr.bf16.mxu0 0
        %1158 = vmatpush2.bf16.xpose.msra.mxu0 0
        %1159 = vmatprep.subr.bf16.mxu0 0
        %1160 = vmatpush2.bf16.xpose.msra.mxu0 0
        %1161 = vmatprep.subr.bf16.mxu0 0
        %1162 = vmatpush2.bf16.xpose.msra.mxu0 0
        %1163 = vmatprep.subr.bf16.mxu0 0
        %1164 = vmatpush2.bf16.xpose.msra.mxu0 0
        %1165 = vmatprep.subr.bf16.mxu0 0
        %1166 = vmatpush2.bf16.xpose.msra.mxu0 0
        %1167 = vmatprep.subr.bf16.mxu0 0
        %1168 = vmatpush2.bf16.xpose.msra.mxu0 0
        %1169 = vmatprep.subr.bf16.mxu0 0
        %1170 = vmatpush2.bf16.xpose.msra.mxu0 0
        %1171 = vmatprep.mubr.bf16.mxu0 0
        %1172 = vmatmul.mubr.bf16.gmra.mxu0 %v1134
        %v1173 = vpop.f32.mrf.mxu0
        %v1174 = vadd.f32 %v715, %v1173
        %v1175 = vpop.f32.mrf.mxu0
        %v1176 = vpop.f32.mrf.mxu0
        %v1177 = vpop.f32.mrf.mxu0
        %1178 = vdwg.mxu0
        %v1179 = vsel %vm788, %v1174, -inf
        %1180 = vmax.xlane.f32.xlu0 %v1179
        %v1181 = vpop.xlane.xlu0 %1180
        %v1182 = vsub.f32 %v1174, %v1181
        %v1183 = vmul.f32 %v1182, 1.442695
        %v1184 = vpow.pop %v1183
        %v1185 = vsel %vm788, %v1184, 0.0
        %1186 = vadd.xlane.f32.xlu0 %v1185
        %v1187 = vpop.xlane.xlu0 %1186
        %v1188 = vrcp.pop %v1187
        %v1189 = vmul.f32 %v1184, %v1188
        %v1190 = vpack.c.bf16 %v1189, %v1189
        %1191 = vrot.lane.b32.xlu0 %v783, 40
        %v1192 = vpop.permute.xlu0 %1191
        %v1194 = vsel %vm788, %v1190, 0
        %v1197 = vsel %vm852, %v1192, 0
        %1199 = vmatprep.subr.bf16.mxu0 0
        %1200 = vmatpush1.bf16.msra.mxu0 0
        %1201 = vmatprep.subr.bf16.mxu0 0
        %1202 = vmatpush1.bf16.msra.mxu0 0
        %1203 = vmatprep.subr.bf16.mxu0 0
        %1204 = vmatpush1.bf16.msra.mxu0 0
        %1205 = vmatprep.subr.bf16.mxu0 0
        %1206 = vmatpush1.bf16.msra.mxu0 0
        %1207 = vmatprep.subr.bf16.mxu0 0
        %1208 = vmatpush1.bf16.msra.mxu0 0
        %1209 = vmatprep.subr.bf16.mxu0 0
        %1210 = vmatpush1.bf16.msra.mxu0 0
        %1211 = vmatprep.subr.bf16.mxu0 0
        %1212 = vmatpush1.bf16.msra.mxu0 0
        %1213 = vmatprep.subr.bf16.mxu0 0
        %1214 = vmatpush1.bf16.msra.mxu0 %v1197
        %1215 = vmatprep.subr.bf16.mxu0 0
        %1216 = vmatpush2.bf16.msra.mxu0 0
        %1217 = vmatprep.subr.bf16.mxu0 0
        %1218 = vmatpush2.bf16.msra.mxu0 0
        %1219 = vmatprep.subr.bf16.mxu0 0
        %1220 = vmatpush2.bf16.msra.mxu0 0
        %1221 = vmatprep.subr.bf16.mxu0 0
        %1222 = vmatpush2.bf16.msra.mxu0 0
        %1223 = vmatprep.subr.bf16.mxu0 0
        %1224 = vmatpush2.bf16.msra.mxu0 0
        %1225 = vmatprep.subr.bf16.mxu0 0
        %1226 = vmatpush2.bf16.msra.mxu0 0
        %1227 = vmatprep.subr.bf16.mxu0 0
        %1228 = vmatpush2.bf16.msra.mxu0 0
        %1229 = vmatprep.subr.bf16.mxu0 0
        %1230 = vmatpush2.bf16.msra.mxu0 0
        %1231 = vmatprep.mubr.bf16.mxu0 0
        %1232 = vmatmul.mubr.bf16.gmra.mxu0 %v1194
        %v1233 = vpop.f32.mrf.mxu0
        %v1234 = vadd.f32 0.0, %v1233
        %v1235 = vpop.f32.mrf.mxu0
        %v1236 = vpop.f32.mrf.mxu0
        %v1237 = vpop.f32.mrf.mxu0
        %1238 = vdwg.mxu0
        %1240 = vrot.lane.b32.xlu0 %v1234, 24
        %v1241 = vpop.permute.xlu0 %1240
        %vm1243 = vcmask 261312
        %1244 = vst.msk [vmem:[#allocation2] sm:$0xff] %vm1243, %v1241
        %v1245 = vld [vmem:[#allocation2] sm:$0xff]
        %v1246 = vpack.c.bf16 %v1245, %v1245
        %v1247 = vld [vmem:[%s5] sm:$0xf]
        %v1248 = vld [vmem:[%s5 + $0x4] sm:$0xf]
        %v1249 = vld [vmem:[%s5 + $0x8] sm:$0xf]
        %v1250 = vld [vmem:[%s5 + $0xc] sm:$0xf]
        %v1252 = vlaneseq
        %v1253 = vshrl.u32 %v1252, 7
        %v1254 = vsub.s32 0, %v1253
        %v1255 = vrot.slane %v784, %v1254
        %v1261 = vunpack.c.l.b16 %v1247
        %v1262 = vunpack.c.l.b16 %v1248
        %v1263 = vunpack.c.l.b16 %v1249
        %v1264 = vunpack.c.l.b16 %v1250
        %v1265 = vpack.c.b16 %v1262, %v1261
        %v1266 = vpack.c.b16 %v1264, %v1263
        %v1270 = vsel %vm739, %v1246, 0
        %1272 = vmatprep.subr.bf16.mxu0 0
        %1273 = vmatpush1.bf16.msra.mxu0 0
        %1274 = vmatprep.subr.bf16.mxu0 0
        %1275 = vmatpush1.bf16.msra.mxu0 0
        %1276 = vmatprep.subr.bf16.mxu0 0
        %1277 = vmatpush1.bf16.msra.mxu0 0
        %1278 = vmatprep.subr.bf16.mxu0 0
        %1279 = vmatpush1.bf16.msra.mxu0 0
        %1280 = vmatprep.subr.bf16.mxu0 0
        %1281 = vmatpush1.bf16.msra.mxu0 0
        %1282 = vmatprep.subr.bf16.mxu0 0
        %1283 = vmatpush1.bf16.msra.mxu0 0
        %1284 = vmatprep.subr.bf16.mxu0 0
        %1285 = vmatpush1.bf16.msra.mxu0 %v1266
        %1286 = vmatprep.subr.bf16.mxu0 0
        %1287 = vmatpush1.bf16.msra.mxu0 %v1265
        %1288 = vmatprep.subr.bf16.mxu0 0
        %1289 = vmatpush2.bf16.msra.mxu0 0
        %1290 = vmatprep.subr.bf16.mxu0 0
        %1291 = vmatpush2.bf16.msra.mxu0 0
        %1292 = vmatprep.subr.bf16.mxu0 0
        %1293 = vmatpush2.bf16.msra.mxu0 0
        %1294 = vmatprep.subr.bf16.mxu0 0
        %1295 = vmatpush2.bf16.msra.mxu0 0
        %1296 = vmatprep.subr.bf16.mxu0 0
        %1297 = vmatpush2.bf16.msra.mxu0 0
        %1298 = vmatprep.subr.bf16.mxu0 0
        %1299 = vmatpush2.bf16.msra.mxu0 0
        %1300 = vmatprep.subr.bf16.mxu0 0
        %1301 = vmatpush2.bf16.msra.mxu0 0
        %1302 = vmatprep.subr.bf16.mxu0 0
        %1303 = vmatpush2.bf16.msra.mxu0 0
        %1304 = vmatprep.mubr.bf16.mxu0 0
        %1305 = vmatmul.mubr.bf16.gmra.mxu0 %v1270
        %v1306 = vpop.f32.mrf.mxu0
        %v1307 = vadd.f32 %v1255, %v1306
        %v1308 = vpop.f32.mrf.mxu0
        %v1309 = vpop.f32.mrf.mxu0
        %v1310 = vpop.f32.mrf.mxu0
        %1311 = vdwg.mxu0
        %v1312 = vadd.f32 %v713, %v1307
        %v1313 = vld [vmem:[%s13] sm:$0x1]
        %v1314 = vld [vmem:[%s14] sm:$0x1]
        %v1315 = vsel %vm739, %v1312, 0.0
        %1316 = vadd.xlane.f32.xlu0 %v1315
        %v1317 = vpop.xlane.xlu0 %1316
        %v1318 = vrcp.pop 32.0
        %v1319 = vmul.f32 %v1317, %v1318
        %v1320 = vsub.f32 %v1312, %v1319
        %v1321 = vmul.f32 %v1320, %v1320
        %v1322 = vsel %vm739, %v1321, 0.0
        %1323 = vadd.xlane.f32.xlu0 %v1322
        %v1324 = vpop.xlane.xlu0 %1323
        %v1325 = vmul.f32 %v1324, %v1318
        %v1326 = vadd.f32 %v1325, 1e-05
        %v1327 = vrsqrt.pop %v1326
        %v1328 = vmul.f32 %v1320, %v1327
        %v1329 = vlaneseq
        %v1330 = vshrl.u32 %v1329, 7
        %v1331 = vsub.s32 0, %v1330
        %v1332 = vrot.slane %v1313, %v1331
        %v1333 = vmul.f32 %v1328, %v1332
        %v1334 = vlaneseq
        %v1335 = vshrl.u32 %v1334, 7
        %v1336 = vsub.s32 0, %v1335
        %v1337 = vrot.slane %v1314, %v1336
        %v1338 = vadd.f32 %v1333, %v1337
        %v1339 = vpack.c.bf16 %v1338, %v1338
        %v1340 = vld [vmem:[%s7] sm:$0xf]
        %v1341 = vld [vmem:[%s7 + $0x4] sm:$0xf]
        %v1342 = vld [vmem:[%s7 + $0x8] sm:$0xf]
        %v1343 = vld [vmem:[%s7 + $0xc] sm:$0xf]
        %v1344 = vld [vmem:[%s8] sm:$0x1]
        %v1346 = vlaneseq
        %v1347 = vshrl.u32 %v1346, 7
        %v1348 = vsub.s32 0, %v1347
        %v1349 = vrot.slane %v1344, %v1348
        %v1355 = vunpack.c.l.b16 %v1340
        %v1356 = vunpack.c.l.b16 %v1341
        %v1357 = vunpack.c.l.b16 %v1342
        %v1358 = vunpack.c.l.b16 %v1343
        %v1359 = vpack.c.b16 %v1356, %v1355
        %v1360 = vpack.c.b16 %v1358, %v1357
        %v1364 = vsel %vm739, %v1339, 0
        %1366 = vmatprep.subr.bf16.mxu0 0
        %1367 = vmatpush1.bf16.msra.mxu0 0
        %1368 = vmatprep.subr.bf16.mxu0 0
        %1369 = vmatpush1.bf16.msra.mxu0 0
        %1370 = vmatprep.subr.bf16.mxu0 0
        %1371 = vmatpush1.bf16.msra.mxu0 0
        %1372 = vmatprep.subr.bf16.mxu0 0
        %1373 = vmatpush1.bf16.msra.mxu0 0
        %1374 = vmatprep.subr.bf16.mxu0 0
        %1375 = vmatpush1.bf16.msra.mxu0 0
        %1376 = vmatprep.subr.bf16.mxu0 0
        %1377 = vmatpush1.bf16.msra.mxu0 0
        %1378 = vmatprep.subr.bf16.mxu0 0
        %1379 = vmatpush1.bf16.msra.mxu0 %v1360
        %1380 = vmatprep.subr.bf16.mxu0 0
        %1381 = vmatpush1.bf16.msra.mxu0 %v1359
        %1382 = vmatprep.subr.bf16.mxu0 0
        %1383 = vmatpush2.bf16.msra.mxu0 0
        %1384 = vmatprep.subr.bf16.mxu0 0
        %1385 = vmatpush2.bf16.msra.mxu0 0
        %1386 = vmatprep.subr.bf16.mxu0 0
        %1387 = vmatpush2.bf16.msra.mxu0 0
        %1388 = vmatprep.subr.bf16.mxu0 0
        %1389 = vmatpush2.bf16.msra.mxu0 0
        %1390 = vmatprep.subr.bf16.mxu0 0
        %1391 = vmatpush2.bf16.msra.mxu0 0
        %1392 = vmatprep.subr.bf16.mxu0 0
        %1393 = vmatpush2.bf16.msra.mxu0 0
        %1394 = vmatprep.subr.bf16.mxu0 0
        %1395 = vmatpush2.bf16.msra.mxu0 0
        %1396 = vmatprep.subr.bf16.mxu0 0
        %1397 = vmatpush2.bf16.msra.mxu0 0
        %1398 = vmatprep.mubr.bf16.mxu0 0
        %1399 = vmatmul.mubr.bf16.gmra.mxu0 %v1364
        %v1400 = vpop.f32.mrf.mxu0
        %v1401 = vadd.f32 %v1349, %v1400
        %v1402 = vpop.f32.mrf.mxu0
        %v1403 = vpop.f32.mrf.mxu0
        %v1404 = vpop.f32.mrf.mxu0
        %1405 = vdwg.mxu0
        %v1406 = vpack.c.bf16 %v1401, %v1401
        %v1407 = vld [vmem:[#allocation9] sm:$0xf]
        %v1408 = vld [vmem:[#allocation9 + $0x4] sm:$0xf]
        %v1409 = vld [vmem:[#allocation9 + $0x8] sm:$0xf]
        %v1410 = vld [vmem:[#allocation9 + $0xc] sm:$0xf]
        %v1411 = vld [vmem:[%s10] sm:$0x1]
        %v1413 = vlaneseq
        %v1414 = vshrl.u32 %v1413, 7
        %v1415 = vsub.s32 0, %v1414
        %v1416 = vrot.slane %v1411, %v1415
        %v1422 = vunpack.c.l.b16 %v1407
        %v1423 = vunpack.c.l.b16 %v1408
        %v1424 = vunpack.c.l.b16 %v1409
        %v1425 = vunpack.c.l.b16 %v1410
        %v1426 = vpack.c.b16 %v1423, %v1422
        %v1427 = vpack.c.b16 %v1425, %v1424
        %v1431 = vsel %vm739, %v714, 0
        %1433 = vmatprep.subr.bf16.mxu0 0
        %1434 = vmatpush1.bf16.msra.mxu0 0
        %1435 = vmatprep.subr.bf16.mxu0 0
        %1436 = vmatpush1.bf16.msra.mxu0 0
        %1437 = vmatprep.subr.bf16.mxu0 0
        %1438 = vmatpush1.bf16.msra.mxu0 0
        %1439 = vmatprep.subr.bf16.mxu0 0
        %1440 = vmatpush1.bf16.msra.mxu0 0
        %1441 = vmatprep.subr.bf16.mxu0 0
        %1442 = vmatpush1.bf16.msra.mxu0 0
        %1443 = vmatprep.subr.bf16.mxu0 0
        %1444 = vmatpush1.bf16.msra.mxu0 0
        %1445 = vmatprep.subr.bf16.mxu0 0
        %1446 = vmatpush1.bf16.msra.mxu0 %v1427
        %1447 = vmatprep.subr.bf16.mxu0 0
        %1448 = vmatpush1.bf16.msra.mxu0 %v1426
        %1449 = vmatprep.subr.bf16.mxu0 0
        %1450 = vmatpush2.bf16.msra.mxu0 0
        %1451 = vmatprep.subr.bf16.mxu0 0
        %1452 = vmatpush2.bf16.msra.mxu0 0
        %1453 = vmatprep.subr.bf16.mxu0 0
        %1454 = vmatpush2.bf16.msra.mxu0 0
        %1455 = vmatprep.subr.bf16.mxu0 0
        %1456 = vmatpush2.bf16.msra.mxu0 0
        %1457 = vmatprep.subr.bf16.mxu0 0
        %1458 = vmatpush2.bf16.msra.mxu0 0
        %1459 = vmatprep.subr.bf16.mxu0 0
        %1460 = vmatpush2.bf16.msra.mxu0 0
        %1461 = vmatprep.subr.bf16.mxu0 0
        %1462 = vmatpush2.bf16.msra.mxu0 0
        %1463 = vmatprep.subr.bf16.mxu0 0
        %1464 = vmatpush2.bf16.msra.mxu0 0
        %1465 = vmatprep.mubr.bf16.mxu0 0
        %1466 = vmatmul.mubr.bf16.gmra.mxu0 %v1431
        %v1467 = vpop.f32.mrf.mxu0
        %v1468 = vadd.f32 %v1416, %v1467
        %v1469 = vpop.f32.mrf.mxu0
        %v1470 = vpop.f32.mrf.mxu0
        %v1471 = vpop.f32.mrf.mxu0
        %1472 = vdwg.mxu0
        %v1473 = vpack.c.bf16 %v1468, %v1468
        %v1474 = vld [vmem:[%s12] sm:$0x1]
        %v1476 = vsel %vm788, %v1406, 0
        %v1479 = vsel %vm788, %v1473, 0
        %1481 = vmatprep.subr.bf16.mxu0 0
        %1482 = vmatpush1.bf16.xpose.msra.mxu0 0
        %1483 = vmatprep.subr.bf16.mxu0 0
        %1484 = vmatpush1.bf16.xpose.msra.mxu0 0
        %1485 = vmatprep.subr.bf16.mxu0 0
        %1486 = vmatpush1.bf16.xpose.msra.mxu0 0
        %1487 = vmatprep.subr.bf16.mxu0 0
        %1488 = vmatpush1.bf16.xpose.msra.mxu0 0
        %1489 = vmatprep.subr.bf16.mxu0 0
        %1490 = vmatpush1.bf16.xpose.msra.mxu0 0
        %1491 = vmatprep.subr.bf16.mxu0 0
        %1492 = vmatpush1.bf16.xpose.msra.mxu0 0
        %1493 = vmatprep.subr.bf16.mxu0 0
        %1494 = vmatpush1.bf16.xpose.msra.mxu0 0
        %1495 = vmatprep.subr.bf16.mxu0 0
        %1496 = vmatpush1.bf16.xpose.msra.mxu0 %v1479
        %1497 = vmatprep.subr.bf16.mxu0 0
        %1498 = vmatpush2.bf16.xpose.msra.mxu0 0
        %1499 = vmatprep.subr.bf16.mxu0 0
        %1500 = vmatpush2.bf16.xpose.msra.mxu0 0
        %1501 = vmatprep.subr.bf16.mxu0 0
        %1502 = vmatpush2.bf16.xpose.msra.mxu0 0
        %1503 = vmatprep.subr.bf16.mxu0 0
        %1504 = vmatpush2.bf16.xpose.msra.mxu0 0
        %1505 = vmatprep.subr.bf16.mxu0 0
        %1506 = vmatpush2.bf16.xpose.msra.mxu0 0
        %1507 = vmatprep.subr.bf16.mxu0 0
        %1508 = vmatpush2.bf16.xpose.msra.mxu0 0
        %1509 = vmatprep.subr.bf16.mxu0 0
        %1510 = vmatpush2.bf16.xpose.msra.mxu0 0
        %1511 = vmatprep.subr.bf16.mxu0 0
        %1512 = vmatpush2.bf16.xpose.msra.mxu0 0
        %1513 = vmatprep.mubr.bf16.mxu0 0
        %1514 = vmatmul.mubr.bf16.gmra.mxu0 %v1476
        %v1515 = vpop.f32.mrf.mxu0
        %v1516 = vadd.f32 0.0, %v1515
        %v1517 = vpop.f32.mrf.mxu0
        %v1518 = vpop.f32.mrf.mxu0
        %v1519 = vpop.f32.mrf.mxu0
        %1520 = vdwg.mxu0
        %v1521 = vsel %vm788, %v1516, -inf
        %1522 = vmax.xlane.f32.xlu0 %v1521
        %v1523 = vpop.xlane.xlu0 %1522
        %v1524 = vsub.f32 %v1516, %v1523
        %v1525 = vmul.f32 %v1524, 1.442695
        %v1526 = vpow.pop %v1525
        %v1527 = vsel %vm788, %v1526, 0.0
        %1528 = vadd.xlane.f32.xlu0 %v1527
        %v1529 = vpop.xlane.xlu0 %1528
        %v1530 = vrcp.pop %v1529
        %v1531 = vmul.f32 %v1526, %v1530
        %v1532 = vpack.c.bf16 %v1531, %v1531
        %1534 = vrot.lane.b32.xlu0 %v1473, 96
        %v1535 = vpop.permute.xlu0 %1534
        %v1537 = vsel %vm788, %v1532, 0
        %v1540 = vsel %vm852, %v1535, 0
        %1542 = vmatprep.subr.bf16.mxu0 0
        %1543 = vmatpush1.bf16.msra.mxu0 0
        %1544 = vmatprep.subr.bf16.mxu0 0
        %1545 = vmatpush1.bf16.msra.mxu0 0
        %1546 = vmatprep.subr.bf16.mxu0 0
        %1547 = vmatpush1.bf16.msra.mxu0 0
        %1548 = vmatprep.subr.bf16.mxu0 0
        %1549 = vmatpush1.bf16.msra.mxu0 0
        %1550 = vmatprep.subr.bf16.mxu0 0
        %1551 = vmatpush1.bf16.msra.mxu0 0
        %1552 = vmatprep.subr.bf16.mxu0 0
        %1553 = vmatpush1.bf16.msra.mxu0 0
        %1554 = vmatprep.subr.bf16.mxu0 0
        %1555 = vmatpush1.bf16.msra.mxu0 0
        %1556 = vmatprep.subr.bf16.mxu0 0
        %1557 = vmatpush1.bf16.msra.mxu0 %v1540
        %1558 = vmatprep.subr.bf16.mxu0 0
        %1559 = vmatpush2.bf16.msra.mxu0 0
        %1560 = vmatprep.subr.bf16.mxu0 0
        %1561 = vmatpush2.bf16.msra.mxu0 0
        %1562 = vmatprep.subr.bf16.mxu0 0
        %1563 = vmatpush2.bf16.msra.mxu0 0
        %1564 = vmatprep.subr.bf16.mxu0 0
        %1565 = vmatpush2.bf16.msra.mxu0 0
        %1566 = vmatprep.subr.bf16.mxu0 0
        %1567 = vmatpush2.bf16.msra.mxu0 0
        %1568 = vmatprep.subr.bf16.mxu0 0
        %1569 = vmatpush2.bf16.msra.mxu0 0
        %1570 = vmatprep.subr.bf16.mxu0 0
        %1571 = vmatpush2.bf16.msra.mxu0 0
        %1572 = vmatprep.subr.bf16.mxu0 0
        %1573 = vmatpush2.bf16.msra.mxu0 0
        %1574 = vmatprep.mubr.bf16.mxu0 0
        %1575 = vmatmul.mubr.bf16.gmra.mxu0 %v1537
        %v1576 = vpop.f32.mrf.mxu0
        %v1577 = vadd.f32 0.0, %v1576
        %v1578 = vpop.f32.mrf.mxu0
        %v1579 = vpop.f32.mrf.mxu0
        %v1580 = vpop.f32.mrf.mxu0
        %1581 = vdwg.mxu0
        %1582 = vst.msk [vmem:[#allocation2] sm:$0xff] %vm788, %v1577
        %1584 = vrot.lane.b32.xlu0 %v1406, 120
        %v1585 = vpop.permute.xlu0 %1584
        %1586 = vrot.lane.b32.xlu0 %v1473, 120
        %v1587 = vpop.permute.xlu0 %1586
        %v1589 = vsel %vm788, %v1585, 0
        %v1592 = vsel %vm788, %v1587, 0
        %1594 = vmatprep.subr.bf16.mxu0 0
        %1595 = vmatpush1.bf16.xpose.msra.mxu0 0
        %1596 = vmatprep.subr.bf16.mxu0 0
        %1597 = vmatpush1.bf16.xpose.msra.mxu0 0
        %1598 = vmatprep.subr.bf16.mxu0 0
        %1599 = vmatpush1.bf16.xpose.msra.mxu0 0
        %1600 = vmatprep.subr.bf16.mxu0 0
        %1601 = vmatpush1.bf16.xpose.msra.mxu0 0
        %1602 = vmatprep.subr.bf16.mxu0 0
        %1603 = vmatpush1.bf16.xpose.msra.mxu0 0
        %1604 = vmatprep.subr.bf16.mxu0 0
        %1605 = vmatpush1.bf16.xpose.msra.mxu0 0
        %1606 = vmatprep.subr.bf16.mxu0 0
        %1607 = vmatpush1.bf16.xpose.msra.mxu0 0
        %1608 = vmatprep.subr.bf16.mxu0 0
        %1609 = vmatpush1.bf16.xpose.msra.mxu0 %v1592
        %1610 = vmatprep.subr.bf16.mxu0 0
        %1611 = vmatpush2.bf16.xpose.msra.mxu0 0
        %1612 = vmatprep.subr.bf16.mxu0 0
        %1613 = vmatpush2.bf16.xpose.msra.mxu0 0
        %1614 = vmatprep.subr.bf16.mxu0 0
        %1615 = vmatpush2.bf16.xpose.msra.mxu0 0
        %1616 = vmatprep.subr.bf16.mxu0 0
        %1617 = vmatpush2.bf16.xpose.msra.mxu0 0
        %1618 = vmatprep.subr.bf16.mxu0 0
        %1619 = vmatpush2.bf16.xpose.msra.mxu0 0
        %1620 = vmatprep.subr.bf16.mxu0 0
        %1621 = vmatpush2.bf16.xpose.msra.mxu0 0
        %1622 = vmatprep.subr.bf16.mxu0 0
        %1623 = vmatpush2.bf16.xpose.msra.mxu0 0
        %1624 = vmatprep.subr.bf16.mxu0 0
        %1625 = vmatpush2.bf16.xpose.msra.mxu0 0
        %1626 = vmatprep.mubr.bf16.mxu0 0
        %1627 = vmatmul.mubr.bf16.gmra.mxu0 %v1589
        %v1628 = vpop.f32.mrf.mxu0
        %v1629 = vadd.f32 0.0, %v1628
        %v1630 = vpop.f32.mrf.mxu0
        %v1631 = vpop.f32.mrf.mxu0
        %v1632 = vpop.f32.mrf.mxu0
        %1633 = vdwg.mxu0
        %v1634 = vsel %vm788, %v1629, -inf
        %1635 = vmax.xlane.f32.xlu0 %v1634
        %v1636 = vpop.xlane.xlu0 %1635
        %v1637 = vsub.f32 %v1629, %v1636
        %v1638 = vmul.f32 %v1637, 1.442695
        %v1639 = vpow.pop %v1638
        %v1640 = vsel %vm788, %v1639, 0.0
        %1641 = vadd.xlane.f32.xlu0 %v1640
        %v1642 = vpop.xlane.xlu0 %1641
        %v1643 = vrcp.pop %v1642
        %v1644 = vmul.f32 %v1639, %v1643
        %v1645 = vpack.c.bf16 %v1644, %v1644
        %1646 = vrot.lane.b32.xlu0 %v1473, 88
        %v1647 = vpop.permute.xlu0 %1646
        %v1649 = vsel %vm788, %v1645, 0
        %v1652 = vsel %vm852, %v1647, 0
        %1654 = vmatprep.subr.bf16.mxu0 0
        %1655 = vmatpush1.bf16.msra.mxu0 0
        %1656 = vmatprep.subr.bf16.mxu0 0
        %1657 = vmatpush1.bf16.msra.mxu0 0
        %1658 = vmatprep.subr.bf16.mxu0 0
        %1659 = vmatpush1.bf16.msra.mxu0 0
        %1660 = vmatprep.subr.bf16.mxu0 0
        %1661 = vmatpush1.bf16.msra.mxu0 0
        %1662 = vmatprep.subr.bf16.mxu0 0
        %1663 = vmatpush1.bf16.msra.mxu0 0
        %1664 = vmatprep.subr.bf16.mxu0 0
        %1665 = vmatpush1.bf16.msra.mxu0 0
        %1666 = vmatprep.subr.bf16.mxu0 0
        %1667 = vmatpush1.bf16.msra.mxu0 0
        %1668 = vmatprep.subr.bf16.mxu0 0
        %1669 = vmatpush1.bf16.msra.mxu0 %v1652
        %1670 = vmatprep.subr.bf16.mxu0 0
        %1671 = vmatpush2.bf16.msra.mxu0 0
        %1672 = vmatprep.subr.bf16.mxu0 0
        %1673 = vmatpush2.bf16.msra.mxu0 0
        %1674 = vmatprep.subr.bf16.mxu0 0
        %1675 = vmatpush2.bf16.msra.mxu0 0
        %1676 = vmatprep.subr.bf16.mxu0 0
        %1677 = vmatpush2.bf16.msra.mxu0 0
        %1678 = vmatprep.subr.bf16.mxu0 0
        %1679 = vmatpush2.bf16.msra.mxu0 0
        %1680 = vmatprep.subr.bf16.mxu0 0
        %1681 = vmatpush2.bf16.msra.mxu0 0
        %1682 = vmatprep.subr.bf16.mxu0 0
        %1683 = vmatpush2.bf16.msra.mxu0 0
        %1684 = vmatprep.subr.bf16.mxu0 0
        %1685 = vmatpush2.bf16.msra.mxu0 0
        %1686 = vmatprep.mubr.bf16.mxu0 0
        %1687 = vmatmul.mubr.bf16.gmra.mxu0 %v1649
        %v1688 = vpop.f32.mrf.mxu0
        %v1689 = vadd.f32 0.0, %v1688
        %v1690 = vpop.f32.mrf.mxu0
        %v1691 = vpop.f32.mrf.mxu0
        %v1692 = vpop.f32.mrf.mxu0
        %1693 = vdwg.mxu0
        %1695 = vrot.lane.b32.xlu0 %v1689, 8
        %v1696 = vpop.permute.xlu0 %1695
        %1698 = vst.msk [vmem:[#allocation2] sm:$0xff] %vm1011, %v1696
        %1699 = vrot.lane.b32.xlu0 %v1406, 112
        %v1700 = vpop.permute.xlu0 %1699
        %1701 = vrot.lane.b32.xlu0 %v1473, 112
        %v1702 = vpop.permute.xlu0 %1701
        %v1704 = vsel %vm788, %v1700, 0
        %v1707 = vsel %vm788, %v1702, 0
        %1709 = vmatprep.subr.bf16.mxu0 0
        %1710 = vmatpush1.bf16.xpose.msra.mxu0 0
        %1711 = vmatprep.subr.bf16.mxu0 0
        %1712 = vmatpush1.bf16.xpose.msra.mxu0 0
        %1713 = vmatprep.subr.bf16.mxu0 0
        %1714 = vmatpush1.bf16.xpose.msra.mxu0 0
        %1715 = vmatprep.subr.bf16.mxu0 0
        %1716 = vmatpush1.bf16.xpose.msra.mxu0 0
        %1717 = vmatprep.subr.bf16.mxu0 0
        %1718 = vmatpush1.bf16.xpose.msra.mxu0 0
        %1719 = vmatprep.subr.bf16.mxu0 0
        %1720 = vmatpush1.bf16.xpose.msra.mxu0 0
        %1721 = vmatprep.subr.bf16.mxu0 0
        %1722 = vmatpush1.bf16.xpose.msra.mxu0 0
        %1723 = vmatprep.subr.bf16.mxu0 0
        %1724 = vmatpush1.bf16.xpose.msra.mxu0 %v1707
        %1725 = vmatprep.subr.bf16.mxu0 0
        %1726 = vmatpush2.bf16.xpose.msra.mxu0 0
        %1727 = vmatprep.subr.bf16.mxu0 0
        %1728 = vmatpush2.bf16.xpose.msra.mxu0 0
        %1729 = vmatprep.subr.bf16.mxu0 0
        %1730 = vmatpush2.bf16.xpose.msra.mxu0 0
        %1731 = vmatprep.subr.bf16.mxu0 0
        %1732 = vmatpush2.bf16.xpose.msra.mxu0 0
        %1733 = vmatprep.subr.bf16.mxu0 0
        %1734 = vmatpush2.bf16.xpose.msra.mxu0 0
        %1735 = vmatprep.subr.bf16.mxu0 0
        %1736 = vmatpush2.bf16.xpose.msra.mxu0 0
        %1737 = vmatprep.subr.bf16.mxu0 0
        %1738 = vmatpush2.bf16.xpose.msra.mxu0 0
        %1739 = vmatprep.subr.bf16.mxu0 0
        %1740 = vmatpush2.bf16.xpose.msra.mxu0 0
        %1741 = vmatprep.mubr.bf16.mxu0 0
        %1742 = vmatmul.mubr.bf16.gmra.mxu0 %v1704
        %v1743 = vpop.f32.mrf.mxu0
        %v1744 = vadd.f32 0.0, %v1743
        %v1745 = vpop.f32.mrf.mxu0
        %v1746 = vpop.f32.mrf.mxu0
        %v1747 = vpop.f32.mrf.mxu0
        %1748 = vdwg.mxu0
        %v1749 = vsel %vm788, %v1744, -inf
        %1750 = vmax.xlane.f32.xlu0 %v1749
        %v1751 = vpop.xlane.xlu0 %1750
        %v1752 = vsub.f32 %v1744, %v1751
        %v1753 = vmul.f32 %v1752, 1.442695
        %v1754 = vpow.pop %v1753
        %v1755 = vsel %vm788, %v1754, 0.0
        %1756 = vadd.xlane.f32.xlu0 %v1755
        %v1757 = vpop.xlane.xlu0 %1756
        %v1758 = vrcp.pop %v1757
        %v1759 = vmul.f32 %v1754, %v1758
        %v1760 = vpack.c.bf16 %v1759, %v1759
        %1761 = vrot.lane.b32.xlu0 %v1473, 80
        %v1762 = vpop.permute.xlu0 %1761
        %v1764 = vsel %vm788, %v1760, 0
        %v1767 = vsel %vm852, %v1762, 0
        %1769 = vmatprep.subr.bf16.mxu0 0
        %1770 = vmatpush1.bf16.msra.mxu0 0
        %1771 = vmatprep.subr.bf16.mxu0 0
        %1772 = vmatpush1.bf16.msra.mxu0 0
        %1773 = vmatprep.subr.bf16.mxu0 0
        %1774 = vmatpush1.bf16.msra.mxu0 0
        %1775 = vmatprep.subr.bf16.mxu0 0
        %1776 = vmatpush1.bf16.msra.mxu0 0
        %1777 = vmatprep.subr.bf16.mxu0 0
        %1778 = vmatpush1.bf16.msra.mxu0 0
        %1779 = vmatprep.subr.bf16.mxu0 0
        %1780 = vmatpush1.bf16.msra.mxu0 0
        %1781 = vmatprep.subr.bf16.mxu0 0
        %1782 = vmatpush1.bf16.msra.mxu0 0
        %1783 = vmatprep.subr.bf16.mxu0 0
        %1784 = vmatpush1.bf16.msra.mxu0 %v1767
        %1785 = vmatprep.subr.bf16.mxu0 0
        %1786 = vmatpush2.bf16.msra.mxu0 0
        %1787 = vmatprep.subr.bf16.mxu0 0
        %1788 = vmatpush2.bf16.msra.mxu0 0
        %1789 = vmatprep.subr.bf16.mxu0 0
        %1790 = vmatpush2.bf16.msra.mxu0 0
        %1791 = vmatprep.subr.bf16.mxu0 0
        %1792 = vmatpush2.bf16.msra.mxu0 0
        %1793 = vmatprep.subr.bf16.mxu0 0
        %1794 = vmatpush2.bf16.msra.mxu0 0
        %1795 = vmatprep.subr.bf16.mxu0 0
        %1796 = vmatpush2.bf16.msra.mxu0 0
        %1797 = vmatprep.subr.bf16.mxu0 0
        %1798 = vmatpush2.bf16.msra.mxu0 0
        %1799 = vmatprep.subr.bf16.mxu0 0
        %1800 = vmatpush2.bf16.msra.mxu0 0
        %1801 = vmatprep.mubr.bf16.mxu0 0
        %1802 = vmatmul.mubr.bf16.gmra.mxu0 %v1764
        %v1803 = vpop.f32.mrf.mxu0
        %v1804 = vadd.f32 0.0, %v1803
        %v1805 = vpop.f32.mrf.mxu0
        %v1806 = vpop.f32.mrf.mxu0
        %v1807 = vpop.f32.mrf.mxu0
        %1808 = vdwg.mxu0
        %1810 = vrot.lane.b32.xlu0 %v1804, 16
        %v1811 = vpop.permute.xlu0 %1810
        %1813 = vst.msk [vmem:[#allocation2] sm:$0xff] %vm1127, %v1811
        %1814 = vrot.lane.b32.xlu0 %v1406, 104
        %v1815 = vpop.permute.xlu0 %1814
        %1816 = vrot.lane.b32.xlu0 %v1473, 104
        %v1817 = vpop.permute.xlu0 %1816
        %v1819 = vsel %vm788, %v1815, 0
        %v1822 = vsel %vm788, %v1817, 0
        %1824 = vmatprep.subr.bf16.mxu0 0
        %1825 = vmatpush1.bf16.xpose.msra.mxu0 0
        %1826 = vmatprep.subr.bf16.mxu0 0
        %1827 = vmatpush1.bf16.xpose.msra.mxu0 0
        %1828 = vmatprep.subr.bf16.mxu0 0
        %1829 = vmatpush1.bf16.xpose.msra.mxu0 0
        %1830 = vmatprep.subr.bf16.mxu0 0
        %1831 = vmatpush1.bf16.xpose.msra.mxu0 0
        %1832 = vmatprep.subr.bf16.mxu0 0
        %1833 = vmatpush1.bf16.xpose.msra.mxu0 0
        %1834 = vmatprep.subr.bf16.mxu0 0
        %1835 = vmatpush1.bf16.xpose.msra.mxu0 0
        %1836 = vmatprep.subr.bf16.mxu0 0
        %1837 = vmatpush1.bf16.xpose.msra.mxu0 0
        %1838 = vmatprep.subr.bf16.mxu0 0
        %1839 = vmatpush1.bf16.xpose.msra.mxu0 %v1822
        %1840 = vmatprep.subr.bf16.mxu0 0
        %1841 = vmatpush2.bf16.xpose.msra.mxu0 0
        %1842 = vmatprep.subr.bf16.mxu0 0
        %1843 = vmatpush2.bf16.xpose.msra.mxu0 0
        %1844 = vmatprep.subr.bf16.mxu0 0
        %1845 = vmatpush2.bf16.xpose.msra.mxu0 0
        %1846 = vmatprep.subr.bf16.mxu0 0
        %1847 = vmatpush2.bf16.xpose.msra.mxu0 0
        %1848 = vmatprep.subr.bf16.mxu0 0
        %1849 = vmatpush2.bf16.xpose.msra.mxu0 0
        %1850 = vmatprep.subr.bf16.mxu0 0
        %1851 = vmatpush2.bf16.xpose.msra.mxu0 0
        %1852 = vmatprep.subr.bf16.mxu0 0
        %1853 = vmatpush2.bf16.xpose.msra.mxu0 0
        %1854 = vmatprep.subr.bf16.mxu0 0
        %1855 = vmatpush2.bf16.xpose.msra.mxu0 0
        %1856 = vmatprep.mubr.bf16.mxu0 0
        %1857 = vmatmul.mubr.bf16.gmra.mxu0 %v1819
        %v1858 = vpop.f32.mrf.mxu0
        %v1859 = vadd.f32 0.0, %v1858
        %v1860 = vpop.f32.mrf.mxu0
        %v1861 = vpop.f32.mrf.mxu0
        %v1862 = vpop.f32.mrf.mxu0
        %1863 = vdwg.mxu0
        %v1864 = vsel %vm788, %v1859, -inf
        %1865 = vmax.xlane.f32.xlu0 %v1864
        %v1866 = vpop.xlane.xlu0 %1865
        %v1867 = vsub.f32 %v1859, %v1866
        %v1868 = vmul.f32 %v1867, 1.442695
        %v1869 = vpow.pop %v1868
        %v1870 = vsel %vm788, %v1869, 0.0
        %1871 = vadd.xlane.f32.xlu0 %v1870
        %v1872 = vpop.xlane.xlu0 %1871
        %v1873 = vrcp.pop %v1872
        %v1874 = vmul.f32 %v1869, %v1873
        %v1875 = vpack.c.bf16 %v1874, %v1874
        %1876 = vrot.lane.b32.xlu0 %v1473, 72
        %v1877 = vpop.permute.xlu0 %1876
        %v1879 = vsel %vm788, %v1875, 0
        %v1882 = vsel %vm852, %v1877, 0
        %1884 = vmatprep.subr.bf16.mxu0 0
        %1885 = vmatpush1.bf16.msra.mxu0 0
        %1886 = vmatprep.subr.bf16.mxu0 0
        %1887 = vmatpush1.bf16.msra.mxu0 0
        %1888 = vmatprep.subr.bf16.mxu0 0
        %1889 = vmatpush1.bf16.msra.mxu0 0
        %1890 = vmatprep.subr.bf16.mxu0 0
        %1891 = vmatpush1.bf16.msra.mxu0 0
        %1892 = vmatprep.subr.bf16.mxu0 0
        %1893 = vmatpush1.bf16.msra.mxu0 0
        %1894 = vmatprep.subr.bf16.mxu0 0
        %1895 = vmatpush1.bf16.msra.mxu0 0
        %1896 = vmatprep.subr.bf16.mxu0 0
        %1897 = vmatpush1.bf16.msra.mxu0 0
        %1898 = vmatprep.subr.bf16.mxu0 0
        %1899 = vmatpush1.bf16.msra.mxu0 %v1882
        %1900 = vmatprep.subr.bf16.mxu0 0
        %1901 = vmatpush2.bf16.msra.mxu0 0
        %1902 = vmatprep.subr.bf16.mxu0 0
        %1903 = vmatpush2.bf16.msra.mxu0 0
        %1904 = vmatprep.subr.bf16.mxu0 0
        %1905 = vmatpush2.bf16.msra.mxu0 0
        %1906 = vmatprep.subr.bf16.mxu0 0
        %1907 = vmatpush2.bf16.msra.mxu0 0
        %1908 = vmatprep.subr.bf16.mxu0 0
        %1909 = vmatpush2.bf16.msra.mxu0 0
        %1910 = vmatprep.subr.bf16.mxu0 0
        %1911 = vmatpush2.bf16.msra.mxu0 0
        %1912 = vmatprep.subr.bf16.mxu0 0
        %1913 = vmatpush2.bf16.msra.mxu0 0
        %1914 = vmatprep.subr.bf16.mxu0 0
        %1915 = vmatpush2.bf16.msra.mxu0 0
        %1916 = vmatprep.mubr.bf16.mxu0 0
        %1917 = vmatmul.mubr.bf16.gmra.mxu0 %v1879
        %v1918 = vpop.f32.mrf.mxu0
        %v1919 = vadd.f32 0.0, %v1918
        %v1920 = vpop.f32.mrf.mxu0
        %v1921 = vpop.f32.mrf.mxu0
        %v1922 = vpop.f32.mrf.mxu0
        %1923 = vdwg.mxu0
        %1925 = vrot.lane.b32.xlu0 %v1919, 24
        %v1926 = vpop.permute.xlu0 %1925
        %1928 = vst.msk [vmem:[#allocation2] sm:$0xff] %vm1243, %v1926
        %v1929 = vld [vmem:[#allocation2] sm:$0xff]
        %v1930 = vpack.c.bf16 %v1929, %v1929
        %v1931 = vld [vmem:[#allocation11] sm:$0xf]
        %v1932 = vld [vmem:[#allocation11 + $0x4] sm:$0xf]
        %v1933 = vld [vmem:[#allocation11 + $0x8] sm:$0xf]
        %v1934 = vld [vmem:[#allocation11 + $0xc] sm:$0xf]
        %v1936 = vlaneseq
        %v1937 = vshrl.u32 %v1936, 7
        %v1938 = vsub.s32 0, %v1937
        %v1939 = vrot.slane %v1474, %v1938
        %v1945 = vunpack.c.l.b16 %v1931
        %v1946 = vunpack.c.l.b16 %v1932
        %v1947 = vunpack.c.l.b16 %v1933
        %v1948 = vunpack.c.l.b16 %v1934
        %v1949 = vpack.c.b16 %v1946, %v1945
        %v1950 = vpack.c.b16 %v1948, %v1947
        %v1954 = vsel %vm739, %v1930, 0
        %1956 = vmatprep.subr.bf16.mxu0 0
        %1957 = vmatpush1.bf16.msra.mxu0 0
        %1958 = vmatprep.subr.bf16.mxu0 0
        %1959 = vmatpush1.bf16.msra.mxu0 0
        %1960 = vmatprep.subr.bf16.mxu0 0
        %1961 = vmatpush1.bf16.msra.mxu0 0
        %1962 = vmatprep.subr.bf16.mxu0 0
        %1963 = vmatpush1.bf16.msra.mxu0 0
        %1964 = vmatprep.subr.bf16.mxu0 0
        %1965 = vmatpush1.bf16.msra.mxu0 0
        %1966 = vmatprep.subr.bf16.mxu0 0
        %1967 = vmatpush1.bf16.msra.mxu0 0
        %1968 = vmatprep.subr.bf16.mxu0 0
        %1969 = vmatpush1.bf16.msra.mxu0 %v1950
        %1970 = vmatprep.subr.bf16.mxu0 0
        %1971 = vmatpush1.bf16.msra.mxu0 %v1949
        %1972 = vmatprep.subr.bf16.mxu0 0
        %1973 = vmatpush2.bf16.msra.mxu0 0
        %1974 = vmatprep.subr.bf16.mxu0 0
        %1975 = vmatpush2.bf16.msra.mxu0 0
        %1976 = vmatprep.subr.bf16.mxu0 0
        %1977 = vmatpush2.bf16.msra.mxu0 0
        %1978 = vmatprep.subr.bf16.mxu0 0
        %1979 = vmatpush2.bf16.msra.mxu0 0
        %1980 = vmatprep.subr.bf16.mxu0 0
        %1981 = vmatpush2.bf16.msra.mxu0 0
        %1982 = vmatprep.subr.bf16.mxu0 0
        %1983 = vmatpush2.bf16.msra.mxu0 0
        %1984 = vmatprep.subr.bf16.mxu0 0
        %1985 = vmatpush2.bf16.msra.mxu0 0
        %1986 = vmatprep.subr.bf16.mxu0 0
        %1987 = vmatpush2.bf16.msra.mxu0 0
        %1988 = vmatprep.mubr.bf16.mxu0 0
        %1989 = vmatmul.mubr.bf16.gmra.mxu0 %v1954
        %v1990 = vpop.f32.mrf.mxu0
        %v1991 = vadd.f32 %v1939, %v1990
        %v1992 = vpop.f32.mrf.mxu0
        %v1993 = vpop.f32.mrf.mxu0
        %v1994 = vpop.f32.mrf.mxu0
        %1995 = vdwg.mxu0
        %v1996 = vadd.f32 %v1338, %v1991
        %v1997 = vld [vmem:[%s13 + $0x1] sm:$0x1]
        %v1998 = vld [vmem:[%s14 + $0x1] sm:$0x1]
        %v1999 = vsel %vm739, %v1996, 0.0
        %2000 = vadd.xlane.f32.xlu0 %v1999
        %v2001 = vpop.xlane.xlu0 %2000
        %v2002 = vmul.f32 %v2001, %v1318
        %v2003 = vsub.f32 %v1996, %v2002
        %v2004 = vmul.f32 %v2003, %v2003
        %v2005 = vsel %vm739, %v2004, 0.0
        %2006 = vadd.xlane.f32.xlu0 %v2005
        %v2007 = vpop.xlane.xlu0 %2006
        %v2008 = vmul.f32 %v2007, %v1318
        %v2009 = vadd.f32 %v2008, 1e-05
        %v2010 = vrsqrt.pop %v2009
        %v2011 = vmul.f32 %v2003, %v2010
        %v2012 = vlaneseq
        %v2013 = vshrl.u32 %v2012, 7
        %v2014 = vsub.s32 0, %v2013
        %v2015 = vrot.slane %v1997, %v2014
        %v2016 = vmul.f32 %v2011, %v2015
        %v2017 = vlaneseq
        %v2018 = vshrl.u32 %v2017, 7
        %v2019 = vsub.s32 0, %v2018
        %v2020 = vrot.slane %v1998, %v2019
        %v2021 = vadd.f32 %v2016, %v2020
        %v2022 = vpack.c.bf16 %v2021, %v2021
        %v2023 = vld [vmem:[#allocation12] sm:$0xf]
        %v2024 = vld [vmem:[#allocation12 + $0x4] sm:$0xf]
        %v2025 = vld [vmem:[#allocation12 + $0x8] sm:$0xf]
        %v2026 = vld [vmem:[#allocation12 + $0xc] sm:$0xf]
        %v2027 = vld [vmem:[%s16] sm:$0x1]
        %v2029 = vlaneseq
        %v2030 = vshrl.u32 %v2029, 7
        %v2031 = vsub.s32 0, %v2030
        %v2032 = vrot.slane %v2027, %v2031
        %v2038 = vunpack.c.l.b16 %v2023
        %v2039 = vunpack.c.l.b16 %v2024
        %v2040 = vunpack.c.l.b16 %v2025
        %v2041 = vunpack.c.l.b16 %v2026
        %v2042 = vpack.c.b16 %v2039, %v2038
        %v2043 = vpack.c.b16 %v2041, %v2040
        %v2047 = vsel %vm739, %v2022, 0
        %2049 = vmatprep.subr.bf16.mxu0 0
        %2050 = vmatpush1.bf16.msra.mxu0 0
        %2051 = vmatprep.subr.bf16.mxu0 0
        %2052 = vmatpush1.bf16.msra.mxu0 0
        %2053 = vmatprep.subr.bf16.mxu0 0
        %2054 = vmatpush1.bf16.msra.mxu0 0
        %2055 = vmatprep.subr.bf16.mxu0 0
        %2056 = vmatpush1.bf16.msra.mxu0 0
        %2057 = vmatprep.subr.bf16.mxu0 0
        %2058 = vmatpush1.bf16.msra.mxu0 0
        %2059 = vmatprep.subr.bf16.mxu0 0
        %2060 = vmatpush1.bf16.msra.mxu0 0
        %2061 = vmatprep.subr.bf16.mxu0 0
        %2062 = vmatpush1.bf16.msra.mxu0 %v2043
        %2063 = vmatprep.subr.bf16.mxu0 0
        %2064 = vmatpush1.bf16.msra.mxu0 %v2042
        %2065 = vmatprep.subr.bf16.mxu0 0
        %2066 = vmatpush2.bf16.msra.mxu0 0
        %2067 = vmatprep.subr.bf16.mxu0 0
        %2068 = vmatpush2.bf16.msra.mxu0 0
        %2069 = vmatprep.subr.bf16.mxu0 0
        %2070 = vmatpush2.bf16.msra.mxu0 0
        %2071 = vmatprep.subr.bf16.mxu0 0
        %2072 = vmatpush2.bf16.msra.mxu0 0
        %2073 = vmatprep.subr.bf16.mxu0 0
        %2074 = vmatpush2.bf16.msra.mxu0 0
        %2075 = vmatprep.subr.bf16.mxu0 0
        %2076 = vmatpush2.bf16.msra.mxu0 0
        %2077 = vmatprep.subr.bf16.mxu0 0
        %2078 = vmatpush2.bf16.msra.mxu0 0
        %2079 = vmatprep.subr.bf16.mxu0 0
        %2080 = vmatpush2.bf16.msra.mxu0 0
        %2081 = vmatprep.mubr.bf16.mxu0 0
        %2082 = vmatmul.mubr.bf16.gmra.mxu0 %v2047
        %v2083 = vpop.f32.mrf.mxu0
        %v2084 = vadd.f32 %v2032, %v2083
        %v2085 = vpop.f32.mrf.mxu0
        %v2086 = vpop.f32.mrf.mxu0
        %v2087 = vpop.f32.mrf.mxu0
        %2088 = vdwg.mxu0
        %v2089 = vmax.f32 %v2084, 0.0
        %v2090 = vpack.c.bf16 %v2089, %v2089
        %v2091 = vld [vmem:[%s17] sm:$0xf]
        %v2092 = vld [vmem:[%s17 + $0x4] sm:$0xf]
        %v2093 = vld [vmem:[%s17 + $0x8] sm:$0xf]
        %v2094 = vld [vmem:[%s17 + $0xc] sm:$0xf]
        %v2095 = vld [vmem:[%s17 + $0x10] sm:$0xf]
        %v2096 = vld [vmem:[%s17 + $0x14] sm:$0xf]
        %v2097 = vld [vmem:[%s17 + $0x18] sm:$0xf]
        %v2098 = vld [vmem:[%s17 + $0x1c] sm:$0xf]
        %v2099 = vld [vmem:[%s18] sm:$0x1]
        %v2101 = vlaneseq
        %v2102 = vshrl.u32 %v2101, 7
        %v2103 = vsub.s32 0, %v2102
        %v2104 = vrot.slane %v2099, %v2103
        %v2114 = vunpack.c.l.b16 %v2091
        %v2115 = vunpack.c.l.b16 %v2092
        %v2116 = vunpack.c.l.b16 %v2093
        %v2117 = vunpack.c.l.b16 %v2094
        %v2118 = vunpack.c.l.b16 %v2095
        %v2119 = vunpack.c.l.b16 %v2096
        %v2120 = vunpack.c.l.b16 %v2097
        %v2121 = vunpack.c.l.b16 %v2098
        %v2122 = vpack.c.b16 %v2115, %v2114
        %v2123 = vpack.c.b16 %v2117, %v2116
        %v2124 = vpack.c.b16 %v2119, %v2118
        %v2125 = vpack.c.b16 %v2121, %v2120
        %vm2130 = vcmask 523264
        %v2132 = vsel %vm2130, %v2090, 0
        %2134 = vmatprep.subr.bf16.mxu0 0
        %2135 = vmatpush1.bf16.msra.mxu0 0
        %2136 = vmatprep.subr.bf16.mxu0 0
        %2137 = vmatpush1.bf16.msra.mxu0 0
        %2138 = vmatprep.subr.bf16.mxu0 0
        %2139 = vmatpush1.bf16.msra.mxu0 0
        %2140 = vmatprep.subr.bf16.mxu0 0
        %2141 = vmatpush1.bf16.msra.mxu0 0
        %2142 = vmatprep.subr.bf16.mxu0 0
        %2143 = vmatpush1.bf16.msra.mxu0 %v2125
        %2144 = vmatprep.subr.bf16.mxu0 0
        %2145 = vmatpush1.bf16.msra.mxu0 %v2124
        %2146 = vmatprep.subr.bf16.mxu0 0
        %2147 = vmatpush1.bf16.msra.mxu0 %v2123
        %2148 = vmatprep.subr.bf16.mxu0 0
        %2149 = vmatpush1.bf16.msra.mxu0 %v2122
        %2150 = vmatprep.subr.bf16.mxu0 0
        %2151 = vmatpush2.bf16.msra.mxu0 0
        %2152 = vmatprep.subr.bf16.mxu0 0
        %2153 = vmatpush2.bf16.msra.mxu0 0
        %2154 = vmatprep.subr.bf16.mxu0 0
        %2155 = vmatpush2.bf16.msra.mxu0 0
        %2156 = vmatprep.subr.bf16.mxu0 0
        %2157 = vmatpush2.bf16.msra.mxu0 0
        %2158 = vmatprep.subr.bf16.mxu0 0
        %2159 = vmatpush2.bf16.msra.mxu0 0
        %2160 = vmatprep.subr.bf16.mxu0 0
        %2161 = vmatpush2.bf16.msra.mxu0 0
        %2162 = vmatprep.subr.bf16.mxu0 0
        %2163 = vmatpush2.bf16.msra.mxu0 0
        %2164 = vmatprep.subr.bf16.mxu0 0
        %2165 = vmatpush2.bf16.msra.mxu0 0
        %2166 = vmatprep.mubr.bf16.mxu0 0
        %2167 = vmatmul.mubr.bf16.gmra.mxu0 %v2132
        %v2168 = vpop.f32.mrf.mxu0
        %v2169 = vadd.f32 %v2104, %v2168
        %v2170 = vpop.f32.mrf.mxu0
        %v2171 = vpop.f32.mrf.mxu0
        %v2172 = vpop.f32.mrf.mxu0
        %2173 = vdwg.mxu0
        %v2174 = vadd.f32 %v2021, %v2169
        %v2175 = vld [vmem:[%s13 + $0x2] sm:$0x1]
        %v2176 = vld [vmem:[%s14 + $0x2] sm:$0x1]
        %v2177 = vsel %vm739, %v2174, 0.0
        %2178 = vadd.xlane.f32.xlu0 %v2177
        %v2179 = vpop.xlane.xlu0 %2178
        %v2180 = vmul.f32 %v2179, %v1318
        %v2181 = vsub.f32 %v2174, %v2180
        %v2182 = vmul.f32 %v2181, %v2181
        %v2183 = vsel %vm739, %v2182, 0.0
        %2184 = vadd.xlane.f32.xlu0 %v2183
        %v2185 = vpop.xlane.xlu0 %2184
        %v2186 = vmul.f32 %v2185, %v1318
        %v2187 = vadd.f32 %v2186, 1e-05
        %v2188 = vrsqrt.pop %v2187
        %v2189 = vmul.f32 %v2181, %v2188
        %v2190 = vlaneseq
        %v2191 = vshrl.u32 %v2190, 7
        %v2192 = vsub.s32 0, %v2191
        %v2193 = vrot.slane %v2175, %v2192
        %v2194 = vmul.f32 %v2189, %v2193
        %v2195 = vlaneseq
        %v2196 = vshrl.u32 %v2195, 7
        %v2197 = vsub.s32 0, %v2196
        %v2198 = vrot.slane %v2176, %v2197
        %v2199 = vadd.f32 %v2194, %v2198
        %2200 = vst.msk [vmem:[%s710] sm:$0xff] %vm739, %v2199
        %s2201 = sand.u32 %s458, 1
        %s2202 = scalar_lea.sflag [#allocation5], %s2201
        %s2203 = sand.u32 %s458, 1
        %s2204 = smul.addr %s2203, 8
        %s2205 = scalar_lea.vmem [#allocation14], %s2204
        // Predicated region
        $region121: #{tpu_custom_call.1} parent=95 // pred_check
          %p2206 = pneg %p468
        $region122: #{tpu_custom_call.1} parent=95 // pred_check_branch
          %2208 = sbr.rel (%p2206) target = $region124
        $region123: #{tpu_custom_call.1} parent=95 // pred_region
          %s2210 = ssub.s32 128, 128
          %2211 = vsyncadd %s2202, %s2210
          %s2212 = smul.addr %s41, 128
          %s2213 = scalar_lea.hbm %s19, %s2212
          %s2215 = sshll.u32 %s2205, 4
          %s2216 = int_to_ptr.vmem [resolvable:$true] %s2215
          %2218 = dma.vmem_to_hbm [thread:$0]  %s2216, 128, %s2213, %s2202
        $region124: #{tpu_custom_call.1} parent=95 // pred_fallthru
          _
      $region96: #{tpu_custom_call.1} parent=5 // pred_fallthru
        _
      %p2219 = scmp.le.s32.totalorder 2, %s36
      // Predicated region
      $region125: #{tpu_custom_call.1} parent=5 // pred_check
        %p2220 = pneg %p2219
      $region126: #{tpu_custom_call.1} parent=5 // pred_check_branch
        %2222 = sbr.rel (%p2220) target = $region128
      $region127: #{tpu_custom_call.1} parent=5 // pred_region
        %s2223 = ssub.s32 %s36, 2
        // Predicated region
        $region129: #{tpu_custom_call.1} parent=127 // pred_check
          %p2224 = pneg %p474
        $region130: #{tpu_custom_call.1} parent=127 // pred_check_branch
          %2226 = sbr.rel (%p2224) target = $region132
        $region131: #{tpu_custom_call.1} parent=127 // pred_region
          %s2227 = sand.u32 %s459, 1
          %s2228 = scalar_lea.sflag [#allocation5], %s2227
          %s2229 = sand.u32 %s459, 1
          %s2230 = smul.addr %s2229, 8
          %s2231 = scalar_lea.vmem [#allocation14], %s2230
          %2232 = dma.done %s2228, 128
        $region132: #{tpu_custom_call.1} parent=127 // pred_fallthru
          _
      $region128: #{tpu_custom_call.1} parent=5 // pred_fallthru
        _
    $region6: #{tpu_custom_call.1} parent=1 // loop_footer
      %s40 = sadd.s32 1, %s36
    $region7: #{tpu_custom_call.1} parent=1 // loop_footer_branch
      %35 = sbr.rel target = $region3
    $region8: #{tpu_custom_call.1} parent=1 // loop_exit
      _
    %2233 = vsyncpa [#allocation4], 1
    %s2234 = scalar_lea.sflag [#allocation4], 1
    %2235 = vsyncpa %s2234, 1
    %2236 = vsyncpa [#allocation7], 1
    %s2237 = scalar_lea.sflag [#allocation7], 1
    %2238 = vsyncpa %s2237, 1
    %2239 = vsyncpa [#allocation10], 1
    %2240 = vsyncpa [#allocation13], 1
    %2241 = vsyncpa [#allocation5], 1
    %s2242 = scalar_lea.sflag [#allocation5], 1
    %2243 = vsyncpa %s2242, 1

</llo_original>
